<compile_context>
chip_gen: v5e
topology: v5e:2x2
jax: 0.10.0
libtpu: 0.0.40
codegen_flags: <defaults>
</compile_context>

<pallas_src>
import functools

import jax
import jax.numpy as jnp
from jax import lax
from jax.experimental import pallas as pl
from jax.experimental.pallas import tpu as pltpu


_VMEM_LIMIT = 32 * 1024 * 1024          # explicit cap, valid on v5e/v6e/v7x
_FUSED_VMEM_BUDGET = 20 * 1024 * 1024   # gate for the single-block fused path
_EPS = 1e-5

_PARALLEL = pltpu.CompilerParams(dimension_semantics=("parallel",),
                                 vmem_limit_bytes=_VMEM_LIMIT)
_SINGLE = pltpu.CompilerParams(dimension_semantics=("arbitrary",),
                               vmem_limit_bytes=_VMEM_LIMIT)


# ----------------------------- Pallas kernels --------------------------------

def _fused_mm_bn_relu_kernel(a_ref, w_ref, g_ref, b_ref, o_ref, *, groups, count, eps):
    """Fully fused layer: Y = A @ W (f32 accum), training-mode BatchNorm over the
    packed (group, channel) columns, ReLU, bf16 store.  Single block: Y stays in
    VMEM/vregs and never touches HBM."""
    acc = jnp.dot(a_ref[...], w_ref[...], preferred_element_type=jnp.float32)
    ncols = acc.shape[1]
    cp = ncols // groups
    s = jnp.sum(acc, axis=0, keepdims=True)            # (1, ncols) column sums
    q = jnp.sum(acc * acc, axis=0, keepdims=True)      # (1, ncols) column sumsq
    ch_s = s[:, 0:cp]
    ch_q = q[:, 0:cp]
    for p in range(1, groups):                         # combine groups -> per channel
        ch_s = ch_s + s[:, p * cp:(p + 1) * cp]
        ch_q = ch_q + q[:, p * cp:(p + 1) * cp]
    inv = 1.0 / count
    mean = ch_s * inv
    var = jnp.maximum(ch_q * inv - mean * mean, 0.0)   # clamp: E[x^2]-m^2 can go < 0
    scale = g_ref[...] * lax.rsqrt(var + eps)
    shift = b_ref[...] - mean * scale
    scale_full = jnp.concatenate([scale] * groups, axis=1)
    shift_full = jnp.concatenate([shift] * groups, axis=1)
    o_ref[...] = jnp.maximum(acc * scale_full + shift_full, 0.0).astype(o_ref.dtype)


def _mm_stats_kernel(a_ref, w_ref, y_ref, s_ref):
    """Fallback: Y = A @ W stored as bf16, plus per-column sum / sum-of-squares
    partials written with one dense store."""
    acc = jnp.dot(a_ref[...], w_ref[...], preferred_element_type=jnp.float32)
    y_ref[...] = acc.astype(y_ref.dtype)
    s_ref[0] = jnp.concatenate([jnp.sum(acc, axis=0, keepdims=True),
                                jnp.sum(acc * acc, axis=0, keepdims=True)], axis=0)


def _scale_shift_relu_kernel(y_ref, s_ref, t_ref, o_ref):
    """Fallback BN apply + ReLU: reads bf16 Y, upcasts in-register, f32 math."""
    y = y_ref[...].astype(jnp.float32)
    o_ref[...] = jnp.maximum(y * s_ref[...] + t_ref[...], 0.0).astype(o_ref.dtype)


def _mm_bias_tanh_kernel(a_ref, w_ref, bias_ref, o_ref):
    """Final layer: Y = tanh(A @ W + bias) (tanh runs on the EUP next to the MXU)."""
    acc = jnp.dot(a_ref[...], w_ref[...], preferred_element_type=jnp.float32)
    o_ref[...] = jnp.tanh(acc + bias_ref[...])


# ------------------------------ small helpers --------------------------------

def _round_up(x, m):
    return (x + m - 1) // m * m


def _pad_cout(cout):
    return max(32, _round_up(cout, 32))     # 4 phases * 32 = 128-lane output blocks


def _pad_rows(a, mp):
    return a if a.shape[0] == mp else jnp.pad(a, ((0, mp - a.shape[0]), (0, 0)))


def _tiles(M, tm_max):
    """Pick (tile_rows, padded_M).  Prefers a divisor of M (no pad/slice HBM copies)
    and >=2 grid steps when possible so both v7x TensorCores get work."""
    if M % 8 != 0:
        tm = min(tm_max, _round_up(M, 8))
        return tm, _round_up(M, tm)
    if M <= tm_max:
        if M >= 16 and M % 16 == 0:
            return M // 2, M                 # two steps
        return M, M                          # single full block
    t = (tm_max // 8) * 8
    while t >= 8:
        if M % t == 0:
            return t, M
        t -= 8
    return tm_max, _round_up(M, tm_max)      # unreachable (8 | M); kept for safety


# ------------------------------ Pallas wrappers -------------------------------

def fused_matmul_bn_relu(a, w, gamma, beta, *, groups, count, eps=_EPS):
    """Single pallas_call: matmul + BN (batch stats) + ReLU, bf16 out."""
    M, K = a.shape
    ncols = w.shape[1]
    mp = _round_up(M, 8)
    a = _pad_rows(a, mp)                     # zero rows contribute nothing to stats
    kern = functools.partial(_fused_mm_bn_relu_kernel,
                             groups=groups, count=float(count), eps=eps)
    out = pl.pallas_call(
        kern,
        out_shape=jax.ShapeDtypeStruct((mp, ncols), jnp.bfloat16),
        grid=(1,),
        in_specs=[pl.BlockSpec((mp, K), lambda i: (0, 0)),
                  pl.BlockSpec((K, ncols), lambda i: (0, 0)),
                  pl.BlockSpec((1, gamma.shape[1]), lambda i: (0, 0)),
                  pl.BlockSpec((1, beta.shape[1]), lambda i: (0, 0))],
        out_specs=pl.BlockSpec((mp, ncols), lambda i: (0, 0)),
        compiler_params=_SINGLE,
    )(a, w, gamma, beta)
    return out if mp == M else out[:M]


def matmul_stats(a, w, tm=512):
    """Fallback: (M,K)@(K,N) -> bf16 Y + per-M-tile column sum / sumsq (f32)."""
    M, K = a.shape
    ncols = w.shape[1]
    tm, mp = _tiles(M, tm)
    a = _pad_rows(a, mp)
    nmt = mp // tm
    y, stats = pl.pallas_call(
        _mm_stats_kernel,
        out_shape=(jax.ShapeDtypeStruct((mp, ncols), jnp.bfloat16),
                   jax.ShapeDtypeStruct((nmt, 2, ncols), jnp.float32)),
        grid=(nmt,),
        in_specs=[pl.BlockSpec((tm, K), lambda i: (i, 0)),
                  pl.BlockSpec((K, ncols), lambda i: (0, 0))],
        out_specs=(pl.BlockSpec((tm, ncols), lambda i: (i, 0)),
                   pl.BlockSpec((1, 2, ncols), lambda i: (i, 0, 0))),
        compiler_params=_PARALLEL,
    )(a, w)
    if mp != M:
        y = y[:M]
    return y, jnp.sum(stats[:, 0, :], axis=0), jnp.sum(stats[:, 1, :], axis=0)


def scale_shift_relu(y, scale, shift, tm=1024):
    """Fallback BN apply + ReLU over a bf16 Y."""
    M, N = y.shape
    tm, mp = _tiles(M, tm)
    y = _pad_rows(y, mp)
    out = pl.pallas_call(
        _scale_shift_relu_kernel,
        out_shape=jax.ShapeDtypeStruct((mp, N), jnp.bfloat16),
        grid=(mp // tm,),
        in_specs=[pl.BlockSpec((tm, N), lambda i: (i, 0)),
                  pl.BlockSpec((1, N), lambda i: (0, 0)),
                  pl.BlockSpec((1, N), lambda i: (0, 0))],
        out_specs=pl.BlockSpec((tm, N), lambda i: (i, 0)),
        compiler_params=_PARALLEL,
    )(y, scale.reshape(1, N).astype(jnp.float32),
      shift.reshape(1, N).astype(jnp.float32))
    return out if mp == M else out[:M]


def matmul_bias_tanh(a, w, bias, tm=512):
    M, K = a.shape
    ncols = w.shape[1]
    tm, mp = _tiles(M, tm)
    a = _pad_rows(a, mp)
    out = pl.pallas_call(
        _mm_bias_tanh_kernel,
        out_shape=jax.ShapeDtypeStruct((mp, ncols), jnp.float32),
        grid=(mp // tm,),
        in_specs=[pl.BlockSpec((tm, K), lambda i: (i, 0)),
                  pl.BlockSpec((K, ncols), lambda i: (0, 0)),
                  pl.BlockSpec((1, ncols), lambda i: (0, 0))],
        out_specs=pl.BlockSpec((tm, ncols), lambda i: (i, 0)),
        compiler_params=_PARALLEL,
    )(a, w, bias)
    return out if mp == M else out[:M]


# ---------------- sub-pixel (phase) decomposition of ConvTranspose -----------
# For kernel=4, stride=2, padding=1: output pixel (2a+rh, 2b+rw) only touches input
# rows a-1..a+1 / cols b-1..b+1.  With the input padded by 1, tap offset d in {0,1,2}
# maps to kernel index _KH_MAP[r][d] (or is unused).

_KH_MAP = ((3, 1, -1),   # output phase r=0 : tap d=0 -> k=3, d=1 -> k=1
           (-1, 2, 0))   # output phase r=1 : tap d=1 -> k=2, d=2 -> k=0


def pack_phase_weights(w, cout_pad):
    """PyTorch ConvTranspose2d weight (Cin,Cout,4,4) -> (9*Cin, 4*cout_pad) matrix for
    a 3x3 direct conv on the pad-1 input, the 4 sub-pixel phases on the lane axis."""
    cin, cout = w.shape[0], w.shape[1]
    wp = jnp.zeros((3, 3, cin, 4, cout_pad), jnp.float32)
    for rh in range(2):
        for dh in range(3):
            kh = _KH_MAP[rh][dh]
            if kh < 0:
                continue
            for rw in range(2):
                for dw in range(3):
                    kw = _KH_MAP[rw][dw]
                    if kw < 0:
                        continue
                    wp = wp.at[dh, dw, :, 2 * rh + rw, :cout].set(w[:, :, kh, kw])
    return wp.reshape(9 * cin, 4 * cout_pad)


def im2col_3x3(x):
    """x: (N,H,W,C) -> (N*H*W, 9*C): 3x3 windows of the pad-1 input (stride 1)."""
    N, H, W, C = x.shape
    xp = jnp.pad(x, ((0, 0), (1, 1), (1, 1), (0, 0)))
    cols = [xp[:, dh:dh + H, dw:dw + W, :] for dh in range(3) for dw in range(3)]
    return jnp.stack(cols, axis=3).reshape(N * H * W, 9 * C)


def pixel_shuffle_2x(y, N, H, W, cp, cout):
    """(N*H*W, 4*cp) phase-packed -> (N, 2H, 2W, cout) (depth-to-space + unpad)."""
    y = y.reshape(N, H, W, 2, 2, cp)
    y = jnp.transpose(y, (0, 1, 3, 2, 4, 5)).reshape(N, 2 * H, 2 * W, cp)
    return y[..., :cout] if cp != cout else y


def _bn_scale_shift(colsum, colsumsq, gamma, beta, count, groups, cp, eps=_EPS):
    """Fallback: combine per-column stats (columns = (group, channel)) into
    per-channel scale/shift, broadcast back to the packed column layout."""
    ch_sum = colsum.reshape(groups, cp).sum(axis=0)
    ch_sq = colsumsq.reshape(groups, cp).sum(axis=0)
    mean = ch_sum / count
    var = jnp.maximum(ch_sq / count - mean * mean, 0.0)
    scale = gamma.reshape(-1) * lax.rsqrt(var + eps)
    shift = beta.reshape(-1) - mean * scale
    return jnp.tile(scale, groups), jnp.tile(shift, groups)


# ------------------------- run-once parameter packing -------------------------

def prepare_generator_params(convs, bns):
    """Hoisted packing: phase decomposition, transposes, bf16 casts, gamma/beta/bias
    padding.  Returns (arrays_pytree, static_channel_meta)."""
    bf = jnp.bfloat16
    meta = tuple(int(c["w"].shape[1]) for c in convs)            # true Cout per layer
    cin0, c0 = convs[0]["w"].shape[0], meta[0]
    packed = [(
        jnp.transpose(convs[0]["w"], (0, 2, 3, 1)).reshape(cin0, 16 * c0).astype(bf),
        bns[0]["gamma"].reshape(1, c0).astype(jnp.float32),
        bns[0]["beta"].reshape(1, c0).astype(jnp.float32),
    )]
    for i in (1, 2, 3):
        cout = meta[i]
        cp = _pad_cout(cout)
        packed.append((
            pack_phase_weights(convs[i]["w"], cp).astype(bf),
            jnp.pad(bns[i]["gamma"], (0, cp - cout)).reshape(1, cp).astype(jnp.float32),
            jnp.pad(bns[i]["beta"], (0, cp - cout)).reshape(1, cp).astype(jnp.float32),
        ))
    cout = meta[4]
    cp = _pad_cout(cout)
    packed.append((
        pack_phase_weights(convs[4]["w"], cp).astype(bf),
        jnp.tile(jnp.pad(convs[4]["b"], (0, cp - cout)), 4)
           .reshape(1, 4 * cp).astype(jnp.float32),
    ))
    return tuple(packed), meta


# ------------------------------- Generator -----------------------------------

def _fused_fits(M, K, ncols, budget=_FUSED_VMEM_BUDGET):
    a_b, w_b, o_b = M * K * 2, K * ncols * 2, M * ncols * 2     # bf16 buffers (x2)
    acc_b = M * ncols * 4                                       # f32 temporaries
    return 2 * (a_b + w_b + o_b) + 3 * acc_b <= budget


def _conv_bn_relu(a, w, gamma, beta, *, groups, cp, count, force_fallback):
    M, K = a.shape
    ncols = w.shape[1]
    if not force_fallback and _fused_fits(M, K, ncols):
        return fused_matmul_bn_relu(a, w, gamma, beta, groups=groups, count=count)
    y, cs, cq = matmul_stats(a, w)
    scale, shift = _bn_scale_shift(cs, cq, gamma, beta, count, groups, cp)
    return scale_shift_relu(y, scale, shift)


def generator_forward(x_nchw, packed, meta, force_fallback=False):
    bf = jnp.bfloat16
    N = x_nchw.shape[0]
    x = jnp.transpose(x_nchw, (0, 2, 3, 1)).astype(bf)           # NCHW -> NHWC
    assert x.shape[1] == 1 and x.shape[2] == 1, "expects a (N, nf*8, 1, 1) latent"

    # layer 0: ConvTranspose(k=4, s=1, p=0) on a 1x1 latent == matmul; fused BN+ReLU
    w0, g0, b0 = packed[0]
    c0 = meta[0]
    a = x.reshape(N, x.shape[3])
    y = _conv_bn_relu(a, w0, g0, b0, groups=16, cp=c0, count=N * 16,
                      force_fallback=force_fallback)
    x = y.reshape(N, 4, 4, c0)                                   # columns are (kh,kw,co)

    # layers 1-3: phase-decomposed ConvTranspose(k=4,s=2,p=1) + fused BN + ReLU
    for i in (1, 2, 3):
        wi, gi, bi = packed[i]
        cout = meta[i]
        cp = _pad_cout(cout)
        Nb, H, W, _ = x.shape
        a = im2col_3x3(x)
        y = _conv_bn_relu(a, wi, gi, bi, groups=4, cp=cp, count=Nb * H * W * 4,
                          force_fallback=force_fallback)
        x = pixel_shuffle_2x(y, Nb, H, W, cp, cout)

    # layer 4: phase-decomposed ConvTranspose + fused bias + Tanh
    w4, bias4 = packed[4]
    cout = meta[4]
    cp = _pad_cout(cout)
    Nb, H, W, _ = x.shape
    a = im2col_3x3(x)
    y = matmul_bias_tanh(a, w4, bias4)
    x = pixel_shuffle_2x(y, Nb, H, W, cp, cout)
    return jnp.transpose(x, (0, 3, 1, 2)).astype(jnp.float32)    # NHWC -> NCHW


# ------------------- full-precision structural reference ---------------------

def _conv_transpose_ref(x, w, b, stride, pad):
    k = w.shape[2]
    w_ref = jnp.transpose(w[:, :, ::-1, ::-1], (2, 3, 0, 1))      # (kh,kw,Cin,Cout)
    y = lax.conv_general_dilated(
        x, w_ref, window_strides=(1, 1),
        padding=[(k - 1 - pad, k - 1 - pad)] * 2,
        lhs_dilation=(stride, stride),
        dimension_numbers=("NHWC", "HWIO", "NHWC"),
        precision=lax.Precision.HIGHEST)
    return y + b[None, None, None, :]


def generator_reference(x_nchw, convs, bns):
    """Pure-JAX f32 ConvTranspose/BN/ReLU/Tanh with the true (unfactored) conv."""
    x = jnp.transpose(x_nchw, (0, 2, 3, 1)).astype(jnp.float32)
    strides, pads = [1, 2, 2, 2, 2], [0, 1, 1, 1, 1]
    for i in range(5):
        x = _conv_transpose_ref(x, convs[i]["w"], convs[i]["b"], strides[i], pads[i])
        if i < 4:
            m = x.mean(axis=(0, 1, 2), keepdims=True)
            v = ((x - m) ** 2).mean(axis=(0, 1, 2), keepdims=True)
            x = (x - m) * lax.rsqrt(v + _EPS) * bns[i]["gamma"] + bns[i]["beta"]
            x = jnp.maximum(x, 0.0)
        else:
            x = jnp.tanh(x)
    return jnp.transpose(x, (0, 3, 1, 2))


# --------------------------------- params ------------------------------------

def init_generator_params(key, nf):
    chans = [(nf * 8, nf * 4), (nf * 4, nf * 2), (nf * 2, nf * 2), (nf * 2, nf), (nf, 3)]
    convs, bns = [], []
    for (ci, co) in chans:
        key, kw, kb = jax.random.split(key, 3)
        convs.append({
            "w": 0.05 * jax.random.normal(kw, (ci, co, 4, 4), jnp.float32),
            "b": 0.01 * jax.random.normal(kb, (co,), jnp.float32),
        })
    for (_, co) in chans[:4]:
        key, kg, kb2 = jax.random.split(key, 3)
        bns.append({
            "gamma": 1.0 + 0.1 * jax.random.normal(kg, (co,), jnp.float32),
            "beta": 0.1 * jax.random.normal(kb2, (co,), jnp.float32),
        })
    return convs, bns


# --------------------------------- main ---------------------------------------

if __name__ == "__main__":
    nf = 16                      # image_size; keep small
    batch = 2
    key = jax.random.PRNGKey(0)
    key, kx, kp = jax.random.split(key, 3)

    # DCGAN latent: (N, nf*8, 1, 1), NCHW like PyTorch
    x = jax.random.normal(kx, (batch, nf * 8, 1, 1), jnp.float32)
    convs, bns = init_generator_params(kp, nf)
    packed, meta = prepare_generator_params(convs, bns)   # run-once weight packing

    fwd = jax.jit(generator_forward, static_argnames=("meta", "force_fallback"))

    out = jax.block_until_ready(fwd(x, packed, meta=meta))
    assert out.shape == (batch, 3, nf * 4, nf * 4), out.shape
    assert bool(jnp.all(jnp.isfinite(out)))

    # (1) Fused single-kernel path vs the tiled two-kernel fallback path
    #     (exercises every Pallas kernel in this file).
    out_fb = jax.block_until_ready(fwd(x, packed, meta=meta, force_fallback=True))
    err_paths = float(jnp.max(jnp.abs(out - out_fb)))
    assert err_paths < 5e-2, err_paths

    # (2) Structural check of the sub-pixel decomposition + fused BN against the
    #     true f32 ConvTranspose reference (loose tolerance covers bf16 MXU operands).
    ref = jax.block_until_ready(jax.jit(generator_reference)(x, convs, bns))
    err = float(jnp.max(jnp.abs(out - ref)))
    assert err < 0.15, err

    print("KERNEL_OK")
</pallas_src>

<mosaic_0001>
module attributes {stable_mosaic.version = 11 : i64} {
  func.func @_fused_mm_bn_relu_kernel(%arg0: i32, %arg1: memref<8x128xbf16, #tpu.memory_space<vmem>>, %arg2: memref<128x1024xbf16, #tpu.memory_space<vmem>>, %arg3: memref<1x64xf32, #tpu.memory_space<vmem>>, %arg4: memref<1x64xf32, #tpu.memory_space<vmem>>, %arg5: memref<8x1024xbf16, #tpu.memory_space<vmem>>) attributes {dimension_semantics = [#tpu.dimension_semantics<arbitrary>], iteration_bounds = array<i64: 1>, scalar_prefetch = 0 : i64, scratch_operands = 0 : i64, tpu.core_type = #tpu.core_type<tc>, window_params = [{pipeline_mode = #tpu.pipeline_mode<synchronous>, transform_indices = @transform_0, window_bounds = array<i64: 8, 128>}, {pipeline_mode = #tpu.pipeline_mode<synchronous>, transform_indices = @transform_1, window_bounds = array<i64: 128, 1024>}, {pipeline_mode = #tpu.pipeline_mode<synchronous>, transform_indices = @transform_2, window_bounds = array<i64: 1, 64>}, {pipeline_mode = #tpu.pipeline_mode<synchronous>, transform_indices = @transform_3, window_bounds = array<i64: 1, 64>}, {pipeline_mode = #tpu.pipeline_mode<synchronous>, transform_indices = @transform_4, window_bounds = array<i64: 8, 1024>}]} {
    %c0 = arith.constant 0 : index
    %c0_0 = arith.constant 0 : index
    %0 = vector.load %arg1[%c0, %c0_0] : memref<8x128xbf16, #tpu.memory_space<vmem>>, vector<8x128xbf16>
    %c0_1 = arith.constant 0 : index
    %c0_2 = arith.constant 0 : index
    %1 = vector.load %arg2[%c0_1, %c0_2] : memref<128x1024xbf16, #tpu.memory_space<vmem>>, vector<128x1024xbf16>
    %cst = arith.constant dense<0.000000e+00> : vector<8x1024xf32>
    %2 = tpu.matmul %0, %1, %cst {dimension_numbers = #tpu.dot_dimension_numbers<[1], [0], [0], [1], [0, 0, 1, 1], [], []>} : vector<8x128xbf16>, vector<128x1024xbf16>, vector<8x1024xf32> -> vector<8x1024xf32>
    %cst_3 = arith.constant dense<0.000000e+00> : vector<1024xf32>
    %3 = vector.multi_reduction <add>, %2, %cst_3 [0] : vector<8x1024xf32> to vector<1024xf32>
    %4 = vector.shape_cast %3 : vector<1024xf32> to vector<1x1024xf32>
    %5 = arith.mulf %2, %2 : vector<8x1024xf32>
    %cst_4 = arith.constant dense<0.000000e+00> : vector<1024xf32>
    %6 = vector.multi_reduction <add>, %5, %cst_4 [0] : vector<8x1024xf32> to vector<1024xf32>
    %7 = vector.shape_cast %6 : vector<1024xf32> to vector<1x1024xf32>
    %8 = vector.extract_strided_slice %4 {offsets = [0, 0], sizes = [1, 64], strides = [1, 1]} : vector<1x1024xf32> to vector<1x64xf32>
    %9 = vector.extract_strided_slice %7 {offsets = [0, 0], sizes = [1, 64], strides = [1, 1]} : vector<1x1024xf32> to vector<1x64xf32>
    %10 = vector.extract_strided_slice %4 {offsets = [0, 64], sizes = [1, 64], strides = [1, 1]} : vector<1x1024xf32> to vector<1x64xf32>
    %11 = arith.addf %8, %10 : vector<1x64xf32>
    %12 = vector.extract_strided_slice %7 {offsets = [0, 64], sizes = [1, 64], strides = [1, 1]} : vector<1x1024xf32> to vector<1x64xf32>
    %13 = arith.addf %9, %12 : vector<1x64xf32>
    %14 = vector.extract_strided_slice %4 {offsets = [0, 128], sizes = [1, 64], strides = [1, 1]} : vector<1x1024xf32> to vector<1x64xf32>
    %15 = arith.addf %11, %14 : vector<1x64xf32>
    %16 = vector.extract_strided_slice %7 {offsets = [0, 128], sizes = [1, 64], strides = [1, 1]} : vector<1x1024xf32> to vector<1x64xf32>
    %17 = arith.addf %13, %16 : vector<1x64xf32>
    %18 = vector.extract_strided_slice %4 {offsets = [0, 192], sizes = [1, 64], strides = [1, 1]} : vector<1x1024xf32> to vector<1x64xf32>
    %19 = arith.addf %15, %18 : vector<1x64xf32>
    %20 = vector.extract_strided_slice %7 {offsets = [0, 192], sizes = [1, 64], strides = [1, 1]} : vector<1x1024xf32> to vector<1x64xf32>
    %21 = arith.addf %17, %20 : vector<1x64xf32>
    %22 = vector.extract_strided_slice %4 {offsets = [0, 256], sizes = [1, 64], strides = [1, 1]} : vector<1x1024xf32> to vector<1x64xf32>
    %23 = arith.addf %19, %22 : vector<1x64xf32>
    %24 = vector.extract_strided_slice %7 {offsets = [0, 256], sizes = [1, 64], strides = [1, 1]} : vector<1x1024xf32> to vector<1x64xf32>
    %25 = arith.addf %21, %24 : vector<1x64xf32>
    %26 = vector.extract_strided_slice %4 {offsets = [0, 320], sizes = [1, 64], strides = [1, 1]} : vector<1x1024xf32> to vector<1x64xf32>
    %27 = arith.addf %23, %26 : vector<1x64xf32>
    %28 = vector.extract_strided_slice %7 {offsets = [0, 320], sizes = [1, 64], strides = [1, 1]} : vector<1x1024xf32> to vector<1x64xf32>
    %29 = arith.addf %25, %28 : vector<1x64xf32>
    %30 = vector.extract_strided_slice %4 {offsets = [0, 384], sizes = [1, 64], strides = [1, 1]} : vector<1x1024xf32> to vector<1x64xf32>
    %31 = arith.addf %27, %30 : vector<1x64xf32>
    %32 = vector.extract_strided_slice %7 {offsets = [0, 384], sizes = [1, 64], strides = [1, 1]} : vector<1x1024xf32> to vector<1x64xf32>
    %33 = arith.addf %29, %32 : vector<1x64xf32>
    %34 = vector.extract_strided_slice %4 {offsets = [0, 448], sizes = [1, 64], strides = [1, 1]} : vector<1x1024xf32> to vector<1x64xf32>
    %35 = arith.addf %31, %34 : vector<1x64xf32>
    %36 = vector.extract_strided_slice %7 {offsets = [0, 448], sizes = [1, 64], strides = [1, 1]} : vector<1x1024xf32> to vector<1x64xf32>
    %37 = arith.addf %33, %36 : vector<1x64xf32>
    %38 = vector.extract_strided_slice %4 {offsets = [0, 512], sizes = [1, 64], strides = [1, 1]} : vector<1x1024xf32> to vector<1x64xf32>
    %39 = arith.addf %35, %38 : vector<1x64xf32>
    %40 = vector.extract_strided_slice %7 {offsets = [0, 512], sizes = [1, 64], strides = [1, 1]} : vector<1x1024xf32> to vector<1x64xf32>
    %41 = arith.addf %37, %40 : vector<1x64xf32>
    %42 = vector.extract_strided_slice %4 {offsets = [0, 576], sizes = [1, 64], strides = [1, 1]} : vector<1x1024xf32> to vector<1x64xf32>
    %43 = arith.addf %39, %42 : vector<1x64xf32>
    %44 = vector.extract_strided_slice %7 {offsets = [0, 576], sizes = [1, 64], strides = [1, 1]} : vector<1x1024xf32> to vector<1x64xf32>
    %45 = arith.addf %41, %44 : vector<1x64xf32>
    %46 = vector.extract_strided_slice %4 {offsets = [0, 640], sizes = [1, 64], strides = [1, 1]} : vector<1x1024xf32> to vector<1x64xf32>
    %47 = arith.addf %43, %46 : vector<1x64xf32>
    %48 = vector.extract_strided_slice %7 {offsets = [0, 640], sizes = [1, 64], strides = [1, 1]} : vector<1x1024xf32> to vector<1x64xf32>
    %49 = arith.addf %45, %48 : vector<1x64xf32>
    %50 = vector.extract_strided_slice %4 {offsets = [0, 704], sizes = [1, 64], strides = [1, 1]} : vector<1x1024xf32> to vector<1x64xf32>
    %51 = arith.addf %47, %50 : vector<1x64xf32>
    %52 = vector.extract_strided_slice %7 {offsets = [0, 704], sizes = [1, 64], strides = [1, 1]} : vector<1x1024xf32> to vector<1x64xf32>
    %53 = arith.addf %49, %52 : vector<1x64xf32>
    %54 = vector.extract_strided_slice %4 {offsets = [0, 768], sizes = [1, 64], strides = [1, 1]} : vector<1x1024xf32> to vector<1x64xf32>
    %55 = arith.addf %51, %54 : vector<1x64xf32>
    %56 = vector.extract_strided_slice %7 {offsets = [0, 768], sizes = [1, 64], strides = [1, 1]} : vector<1x1024xf32> to vector<1x64xf32>
    %57 = arith.addf %53, %56 : vector<1x64xf32>
    %58 = vector.extract_strided_slice %4 {offsets = [0, 832], sizes = [1, 64], strides = [1, 1]} : vector<1x1024xf32> to vector<1x64xf32>
    %59 = arith.addf %55, %58 : vector<1x64xf32>
    %60 = vector.extract_strided_slice %7 {offsets = [0, 832], sizes = [1, 64], strides = [1, 1]} : vector<1x1024xf32> to vector<1x64xf32>
    %61 = arith.addf %57, %60 : vector<1x64xf32>
    %62 = vector.extract_strided_slice %4 {offsets = [0, 896], sizes = [1, 64], strides = [1, 1]} : vector<1x1024xf32> to vector<1x64xf32>
    %63 = arith.addf %59, %62 : vector<1x64xf32>
    %64 = vector.extract_strided_slice %7 {offsets = [0, 896], sizes = [1, 64], strides = [1, 1]} : vector<1x1024xf32> to vector<1x64xf32>
    %65 = arith.addf %61, %64 : vector<1x64xf32>
    %66 = vector.extract_strided_slice %4 {offsets = [0, 960], sizes = [1, 64], strides = [1, 1]} : vector<1x1024xf32> to vector<1x64xf32>
    %67 = arith.addf %63, %66 : vector<1x64xf32>
    %68 = vector.extract_strided_slice %7 {offsets = [0, 960], sizes = [1, 64], strides = [1, 1]} : vector<1x1024xf32> to vector<1x64xf32>
    %69 = arith.addf %65, %68 : vector<1x64xf32>
    %cst_5 = arith.constant 3.125000e-02 : f32
    %70 = vector.broadcast %cst_5 : f32 to vector<1x64xf32>
    %71 = arith.mulf %67, %70 : vector<1x64xf32>
    %cst_6 = arith.constant 3.125000e-02 : f32
    %72 = vector.broadcast %cst_6 : f32 to vector<1x64xf32>
    %73 = arith.mulf %69, %72 : vector<1x64xf32>
    %74 = arith.mulf %71, %71 : vector<1x64xf32>
    %75 = arith.subf %73, %74 : vector<1x64xf32>
    %cst_7 = arith.constant 0.000000e+00 : f32
    %76 = vector.broadcast %cst_7 : f32 to vector<1x64xf32>
    %77 = arith.maximumf %75, %76 : vector<1x64xf32>
    %c0_8 = arith.constant 0 : index
    %c0_9 = arith.constant 0 : index
    %78 = vector.load %arg3[%c0_8, %c0_9] : memref<1x64xf32, #tpu.memory_space<vmem>>, vector<1x64xf32>
    %cst_10 = arith.constant 9.99999974E-6 : f32
    %79 = vector.broadcast %cst_10 : f32 to vector<1x64xf32>
    %80 = arith.addf %77, %79 : vector<1x64xf32>
    %81 = math.rsqrt %80 : vector<1x64xf32>
    %82 = arith.mulf %78, %81 : vector<1x64xf32>
    %c0_11 = arith.constant 0 : index
    %c0_12 = arith.constant 0 : index
    %83 = vector.load %arg4[%c0_11, %c0_12] : memref<1x64xf32, #tpu.memory_space<vmem>>, vector<1x64xf32>
    %84 = arith.mulf %71, %82 : vector<1x64xf32>
    %85 = arith.subf %83, %84 : vector<1x64xf32>
    %86 = tpu.concatenate %82, %82, %82, %82, %82, %82, %82, %82, %82, %82, %82, %82, %82, %82, %82, %82 in 1 : vector<1x64xf32>, vector<1x64xf32>, vector<1x64xf32>, vector<1x64xf32>, vector<1x64xf32>, vector<1x64xf32>, vector<1x64xf32>, vector<1x64xf32>, vector<1x64xf32>, vector<1x64xf32>, vector<1x64xf32>, vector<1x64xf32>, vector<1x64xf32>, vector<1x64xf32>, vector<1x64xf32>, vector<1x64xf32> -> vector<1x1024xf32>
    %87 = tpu.concatenate %85, %85, %85, %85, %85, %85, %85, %85, %85, %85, %85, %85, %85, %85, %85, %85 in 1 : vector<1x64xf32>, vector<1x64xf32>, vector<1x64xf32>, vector<1x64xf32>, vector<1x64xf32>, vector<1x64xf32>, vector<1x64xf32>, vector<1x64xf32>, vector<1x64xf32>, vector<1x64xf32>, vector<1x64xf32>, vector<1x64xf32>, vector<1x64xf32>, vector<1x64xf32>, vector<1x64xf32>, vector<1x64xf32> -> vector<1x1024xf32>
    %88 = vector.broadcast %86 : vector<1x1024xf32> to vector<8x1024xf32>
    %89 = arith.mulf %2, %88 : vector<8x1024xf32>
    %90 = vector.broadcast %87 : vector<1x1024xf32> to vector<8x1024xf32>
    %91 = arith.addf %89, %90 : vector<8x1024xf32>
    %cst_13 = arith.constant 0.000000e+00 : f32
    %92 = vector.broadcast %cst_13 : f32 to vector<8x1024xf32>
    %93 = arith.maximumf %91, %92 : vector<8x1024xf32>
    %94 = arith.truncf %93 : vector<8x1024xf32> to vector<8x1024xbf16>
    %c0_14 = arith.constant 0 : index
    %c0_15 = arith.constant 0 : index
    %95 = vector.load %arg5[%c0_14, %c0_15] : memref<8x1024xbf16, #tpu.memory_space<vmem>>, vector<8x1024xbf16>
    tpu.vector_store %arg5[%c0_14, %c0_15], %94 {strides = array<i32>} : memref<8x1024xbf16, #tpu.memory_space<vmem>>, vector<8x1024xbf16>,
    return
  }
  func.func @transform_0(%arg0: i32) -> (i32, i32) {
    %c0_i32 = arith.constant 0 : i32
    %c0_i32_0 = arith.constant 0 : i32
    %c0_i32_1 = arith.constant 0 : i32
    return %c0_i32, %c0_i32_0 : i32, i32
  }
  func.func @transform_1(%arg0: i32) -> (i32, i32) {
    %c0_i32 = arith.constant 0 : i32
    %c0_i32_0 = arith.constant 0 : i32
    %c0_i32_1 = arith.constant 0 : i32
    return %c0_i32, %c0_i32_0 : i32, i32
  }
  func.func @transform_2(%arg0: i32) -> (i32, i32) {
    %c0_i32 = arith.constant 0 : i32
    %c0_i32_0 = arith.constant 0 : i32
    %c0_i32_1 = arith.constant 0 : i32
    return %c0_i32, %c0_i32_0 : i32, i32
  }
  func.func @transform_3(%arg0: i32) -> (i32, i32) {
    %c0_i32 = arith.constant 0 : i32
    %c0_i32_0 = arith.constant 0 : i32
    %c0_i32_1 = arith.constant 0 : i32
    return %c0_i32, %c0_i32_0 : i32, i32
  }
  func.func @transform_4(%arg0: i32) -> (i32, i32) {
    %c0_i32 = arith.constant 0 : i32
    %c0_i32_0 = arith.constant 0 : i32
    %c0_i32_1 = arith.constant 0 : i32
    return %c0_i32, %c0_i32_0 : i32, i32
  }
}

module attributes {stable_mosaic.version = 11 : i64} {
  func.func @_fused_mm_bn_relu_kernel(%arg0: i32, %arg1: memref<32x576xbf16, #tpu.memory_space<vmem>>, %arg2: memref<576x128xbf16, #tpu.memory_space<vmem>>, %arg3: memref<1x32xf32, #tpu.memory_space<vmem>>, %arg4: memref<1x32xf32, #tpu.memory_space<vmem>>, %arg5: memref<32x128xbf16, #tpu.memory_space<vmem>>) attributes {dimension_semantics = [#tpu.dimension_semantics<arbitrary>], iteration_bounds = array<i64: 1>, scalar_prefetch = 0 : i64, scratch_operands = 0 : i64, tpu.core_type = #tpu.core_type<tc>, window_params = [{pipeline_mode = #tpu.pipeline_mode<synchronous>, transform_indices = @transform_0, window_bounds = array<i64: 32, 576>}, {pipeline_mode = #tpu.pipeline_mode<synchronous>, transform_indices = @transform_1, window_bounds = array<i64: 576, 128>}, {pipeline_mode = #tpu.pipeline_mode<synchronous>, transform_indices = @transform_2, window_bounds = array<i64: 1, 32>}, {pipeline_mode = #tpu.pipeline_mode<synchronous>, transform_indices = @transform_3, window_bounds = array<i64: 1, 32>}, {pipeline_mode = #tpu.pipeline_mode<synchronous>, transform_indices = @transform_4, window_bounds = array<i64: 32, 128>}]} {
    %c0 = arith.constant 0 : index
    %c0_0 = arith.constant 0 : index
    %0 = vector.load %arg1[%c0, %c0_0] : memref<32x576xbf16, #tpu.memory_space<vmem>>, vector<32x576xbf16>
    %c0_1 = arith.constant 0 : index
    %c0_2 = arith.constant 0 : index
    %1 = vector.load %arg2[%c0_1, %c0_2] : memref<576x128xbf16, #tpu.memory_space<vmem>>, vector<576x128xbf16>
    %cst = arith.constant dense<0.000000e+00> : vector<32x128xf32>
    %2 = tpu.matmul %0, %1, %cst {dimension_numbers = #tpu.dot_dimension_numbers<[1], [0], [0], [1], [0, 0, 1, 1], [], []>} : vector<32x576xbf16>, vector<576x128xbf16>, vector<32x128xf32> -> vector<32x128xf32>
    %cst_3 = arith.constant dense<0.000000e+00> : vector<128xf32>
    %3 = vector.multi_reduction <add>, %2, %cst_3 [0] : vector<32x128xf32> to vector<128xf32>
    %4 = vector.shape_cast %3 : vector<128xf32> to vector<1x128xf32>
    %5 = arith.mulf %2, %2 : vector<32x128xf32>
    %cst_4 = arith.constant dense<0.000000e+00> : vector<128xf32>
    %6 = vector.multi_reduction <add>, %5, %cst_4 [0] : vector<32x128xf32> to vector<128xf32>
    %7 = vector.shape_cast %6 : vector<128xf32> to vector<1x128xf32>
    %8 = vector.extract_strided_slice %4 {offsets = [0, 0], sizes = [1, 32], strides = [1, 1]} : vector<1x128xf32> to vector<1x32xf32>
    %9 = vector.extract_strided_slice %7 {offsets = [0, 0], sizes = [1, 32], strides = [1, 1]} : vector<1x128xf32> to vector<1x32xf32>
    %10 = vector.extract_strided_slice %4 {offsets = [0, 32], sizes = [1, 32], strides = [1, 1]} : vector<1x128xf32> to vector<1x32xf32>
    %11 = arith.addf %8, %10 : vector<1x32xf32>
    %12 = vector.extract_strided_slice %7 {offsets = [0, 32], sizes = [1, 32], strides = [1, 1]} : vector<1x128xf32> to vector<1x32xf32>
    %13 = arith.addf %9, %12 : vector<1x32xf32>
    %14 = vector.extract_strided_slice %4 {offsets = [0, 64], sizes = [1, 32], strides = [1, 1]} : vector<1x128xf32> to vector<1x32xf32>
    %15 = arith.addf %11, %14 : vector<1x32xf32>
    %16 = vector.extract_strided_slice %7 {offsets = [0, 64], sizes = [1, 32], strides = [1, 1]} : vector<1x128xf32> to vector<1x32xf32>
    %17 = arith.addf %13, %16 : vector<1x32xf32>
    %18 = vector.extract_strided_slice %4 {offsets = [0, 96], sizes = [1, 32], strides = [1, 1]} : vector<1x128xf32> to vector<1x32xf32>
    %19 = arith.addf %15, %18 : vector<1x32xf32>
    %20 = vector.extract_strided_slice %7 {offsets = [0, 96], sizes = [1, 32], strides = [1, 1]} : vector<1x128xf32> to vector<1x32xf32>
    %21 = arith.addf %17, %20 : vector<1x32xf32>
    %cst_5 = arith.constant 7.812500e-03 : f32
    %22 = vector.broadcast %cst_5 : f32 to vector<1x32xf32>
    %23 = arith.mulf %19, %22 : vector<1x32xf32>
    %cst_6 = arith.constant 7.812500e-03 : f32
    %24 = vector.broadcast %cst_6 : f32 to vector<1x32xf32>
    %25 = arith.mulf %21, %24 : vector<1x32xf32>
    %26 = arith.mulf %23, %23 : vector<1x32xf32>
    %27 = arith.subf %25, %26 : vector<1x32xf32>
    %cst_7 = arith.constant 0.000000e+00 : f32
    %28 = vector.broadcast %cst_7 : f32 to vector<1x32xf32>
    %29 = arith.maximumf %27, %28 : vector<1x32xf32>
    %c0_8 = arith.constant 0 : index
    %c0_9 = arith.constant 0 : index
    %30 = vector.load %arg3[%c0_8, %c0_9] : memref<1x32xf32, #tpu.memory_space<vmem>>, vector<1x32xf32>
    %cst_10 = arith.constant 9.99999974E-6 : f32
    %31 = vector.broadcast %cst_10 : f32 to vector<1x32xf32>
    %32 = arith.addf %29, %31 : vector<1x32xf32>
    %33 = math.rsqrt %32 : vector<1x32xf32>
    %34 = arith.mulf %30, %33 : vector<1x32xf32>
    %c0_11 = arith.constant 0 : index
    %c0_12 = arith.constant 0 : index
    %35 = vector.load %arg4[%c0_11, %c0_12] : memref<1x32xf32, #tpu.memory_space<vmem>>, vector<1x32xf32>
    %36 = arith.mulf %23, %34 : vector<1x32xf32>
    %37 = arith.subf %35, %36 : vector<1x32xf32>
    %38 = tpu.concatenate %34, %34, %34, %34 in 1 : vector<1x32xf32>, vector<1x32xf32>, vector<1x32xf32>, vector<1x32xf32> -> vector<1x128xf32>
    %39 = tpu.concatenate %37, %37, %37, %37 in 1 : vector<1x32xf32>, vector<1x32xf32>, vector<1x32xf32>, vector<1x32xf32> -> vector<1x128xf32>
    %40 = vector.broadcast %38 : vector<1x128xf32> to vector<32x128xf32>
    %41 = arith.mulf %2, %40 : vector<32x128xf32>
    %42 = vector.broadcast %39 : vector<1x128xf32> to vector<32x128xf32>
    %43 = arith.addf %41, %42 : vector<32x128xf32>
    %cst_13 = arith.constant 0.000000e+00 : f32
    %44 = vector.broadcast %cst_13 : f32 to vector<32x128xf32>
    %45 = arith.maximumf %43, %44 : vector<32x128xf32>
    %46 = arith.truncf %45 : vector<32x128xf32> to vector<32x128xbf16>
    %c0_14 = arith.constant 0 : index
    %c0_15 = arith.constant 0 : index
    %47 = vector.load %arg5[%c0_14, %c0_15] : memref<32x128xbf16, #tpu.memory_space<vmem>>, vector<32x128xbf16>
    tpu.vector_store %arg5[%c0_14, %c0_15], %46 {strides = array<i32>} : memref<32x128xbf16, #tpu.memory_space<vmem>>, vector<32x128xbf16>,
    return
  }
  func.func @transform_0(%arg0: i32) -> (i32, i32) {
    %c0_i32 = arith.constant 0 : i32
    %c0_i32_0 = arith.constant 0 : i32
    %c0_i32_1 = arith.constant 0 : i32
    return %c0_i32, %c0_i32_0 : i32, i32
  }
  func.func @transform_1(%arg0: i32) -> (i32, i32) {
    %c0_i32 = arith.constant 0 : i32
    %c0_i32_0 = arith.constant 0 : i32
    %c0_i32_1 = arith.constant 0 : i32
    return %c0_i32, %c0_i32_0 : i32, i32
  }
  func.func @transform_2(%arg0: i32) -> (i32, i32) {
    %c0_i32 = arith.constant 0 : i32
    %c0_i32_0 = arith.constant 0 : i32
    %c0_i32_1 = arith.constant 0 : i32
    return %c0_i32, %c0_i32_0 : i32, i32
  }
  func.func @transform_3(%arg0: i32) -> (i32, i32) {
    %c0_i32 = arith.constant 0 : i32
    %c0_i32_0 = arith.constant 0 : i32
    %c0_i32_1 = arith.constant 0 : i32
    return %c0_i32, %c0_i32_0 : i32, i32
  }
  func.func @transform_4(%arg0: i32) -> (i32, i32) {
    %c0_i32 = arith.constant 0 : i32
    %c0_i32_0 = arith.constant 0 : i32
    %c0_i32_1 = arith.constant 0 : i32
    return %c0_i32, %c0_i32_0 : i32, i32
  }
}

module attributes {stable_mosaic.version = 11 : i64} {
  func.func @_fused_mm_bn_relu_kernel(%arg0: i32, %arg1: memref<128x288xbf16, #tpu.memory_space<vmem>>, %arg2: memref<288x128xbf16, #tpu.memory_space<vmem>>, %arg3: memref<1x32xf32, #tpu.memory_space<vmem>>, %arg4: memref<1x32xf32, #tpu.memory_space<vmem>>, %arg5: memref<128x128xbf16, #tpu.memory_space<vmem>>) attributes {dimension_semantics = [#tpu.dimension_semantics<arbitrary>], iteration_bounds = array<i64: 1>, scalar_prefetch = 0 : i64, scratch_operands = 0 : i64, tpu.core_type = #tpu.core_type<tc>, window_params = [{pipeline_mode = #tpu.pipeline_mode<synchronous>, transform_indices = @transform_0, window_bounds = array<i64: 128, 288>}, {pipeline_mode = #tpu.pipeline_mode<synchronous>, transform_indices = @transform_1, window_bounds = array<i64: 288, 128>}, {pipeline_mode = #tpu.pipeline_mode<synchronous>, transform_indices = @transform_2, window_bounds = array<i64: 1, 32>}, {pipeline_mode = #tpu.pipeline_mode<synchronous>, transform_indices = @transform_3, window_bounds = array<i64: 1, 32>}, {pipeline_mode = #tpu.pipeline_mode<synchronous>, transform_indices = @transform_4, window_bounds = array<i64: 128, 128>}]} {
    %c0 = arith.constant 0 : index
    %c0_0 = arith.constant 0 : index
    %0 = vector.load %arg1[%c0, %c0_0] : memref<128x288xbf16, #tpu.memory_space<vmem>>, vector<128x288xbf16>
    %c0_1 = arith.constant 0 : index
    %c0_2 = arith.constant 0 : index
    %1 = vector.load %arg2[%c0_1, %c0_2] : memref<288x128xbf16, #tpu.memory_space<vmem>>, vector<288x128xbf16>
    %cst = arith.constant dense<0.000000e+00> : vector<128x128xf32>
    %2 = tpu.matmul %0, %1, %cst {dimension_numbers = #tpu.dot_dimension_numbers<[1], [0], [0], [1], [0, 0, 1, 1], [], []>} : vector<128x288xbf16>, vector<288x128xbf16>, vector<128x128xf32> -> vector<128x128xf32>
    %cst_3 = arith.constant dense<0.000000e+00> : vector<128xf32>
    %3 = vector.multi_reduction <add>, %2, %cst_3 [0] : vector<128x128xf32> to vector<128xf32>
    %4 = vector.shape_cast %3 : vector<128xf32> to vector<1x128xf32>
    %5 = arith.mulf %2, %2 : vector<128x128xf32>
    %cst_4 = arith.constant dense<0.000000e+00> : vector<128xf32>
    %6 = vector.multi_reduction <add>, %5, %cst_4 [0] : vector<128x128xf32> to vector<128xf32>
    %7 = vector.shape_cast %6 : vector<128xf32> to vector<1x128xf32>
    %8 = vector.extract_strided_slice %4 {offsets = [0, 0], sizes = [1, 32], strides = [1, 1]} : vector<1x128xf32> to vector<1x32xf32>
    %9 = vector.extract_strided_slice %7 {offsets = [0, 0], sizes = [1, 32], strides = [1, 1]} : vector<1x128xf32> to vector<1x32xf32>
    %10 = vector.extract_strided_slice %4 {offsets = [0, 32], sizes = [1, 32], strides = [1, 1]} : vector<1x128xf32> to vector<1x32xf32>
    %11 = arith.addf %8, %10 : vector<1x32xf32>
    %12 = vector.extract_strided_slice %7 {offsets = [0, 32], sizes = [1, 32], strides = [1, 1]} : vector<1x128xf32> to vector<1x32xf32>
    %13 = arith.addf %9, %12 : vector<1x32xf32>
    %14 = vector.extract_strided_slice %4 {offsets = [0, 64], sizes = [1, 32], strides = [1, 1]} : vector<1x128xf32> to vector<1x32xf32>
    %15 = arith.addf %11, %14 : vector<1x32xf32>
    %16 = vector.extract_strided_slice %7 {offsets = [0, 64], sizes = [1, 32], strides = [1, 1]} : vector<1x128xf32> to vector<1x32xf32>
    %17 = arith.addf %13, %16 : vector<1x32xf32>
    %18 = vector.extract_strided_slice %4 {offsets = [0, 96], sizes = [1, 32], strides = [1, 1]} : vector<1x128xf32> to vector<1x32xf32>
    %19 = arith.addf %15, %18 : vector<1x32xf32>
    %20 = vector.extract_strided_slice %7 {offsets = [0, 96], sizes = [1, 32], strides = [1, 1]} : vector<1x128xf32> to vector<1x32xf32>
    %21 = arith.addf %17, %20 : vector<1x32xf32>
    %cst_5 = arith.constant 0.001953125 : f32
    %22 = vector.broadcast %cst_5 : f32 to vector<1x32xf32>
    %23 = arith.mulf %19, %22 : vector<1x32xf32>
    %cst_6 = arith.constant 0.001953125 : f32
    %24 = vector.broadcast %cst_6 : f32 to vector<1x32xf32>
    %25 = arith.mulf %21, %24 : vector<1x32xf32>
    %26 = arith.mulf %23, %23 : vector<1x32xf32>
    %27 = arith.subf %25, %26 : vector<1x32xf32>
    %cst_7 = arith.constant 0.000000e+00 : f32
    %28 = vector.broadcast %cst_7 : f32 to vector<1x32xf32>
    %29 = arith.maximumf %27, %28 : vector<1x32xf32>
    %c0_8 = arith.constant 0 : index
    %c0_9 = arith.constant 0 : index
    %30 = vector.load %arg3[%c0_8, %c0_9] : memref<1x32xf32, #tpu.memory_space<vmem>>, vector<1x32xf32>
    %cst_10 = arith.constant 9.99999974E-6 : f32
    %31 = vector.broadcast %cst_10 : f32 to vector<1x32xf32>
    %32 = arith.addf %29, %31 : vector<1x32xf32>
    %33 = math.rsqrt %32 : vector<1x32xf32>
    %34 = arith.mulf %30, %33 : vector<1x32xf32>
    %c0_11 = arith.constant 0 : index
    %c0_12 = arith.constant 0 : index
    %35 = vector.load %arg4[%c0_11, %c0_12] : memref<1x32xf32, #tpu.memory_space<vmem>>, vector<1x32xf32>
    %36 = arith.mulf %23, %34 : vector<1x32xf32>
    %37 = arith.subf %35, %36 : vector<1x32xf32>
    %38 = tpu.concatenate %34, %34, %34, %34 in 1 : vector<1x32xf32>, vector<1x32xf32>, vector<1x32xf32>, vector<1x32xf32> -> vector<1x128xf32>
    %39 = tpu.concatenate %37, %37, %37, %37 in 1 : vector<1x32xf32>, vector<1x32xf32>, vector<1x32xf32>, vector<1x32xf32> -> vector<1x128xf32>
    %40 = vector.broadcast %38 : vector<1x128xf32> to vector<128x128xf32>
    %41 = arith.mulf %2, %40 : vector<128x128xf32>
    %42 = vector.broadcast %39 : vector<1x128xf32> to vector<128x128xf32>
    %43 = arith.addf %41, %42 : vector<128x128xf32>
    %cst_13 = arith.constant 0.000000e+00 : f32
    %44 = vector.broadcast %cst_13 : f32 to vector<128x128xf32>
    %45 = arith.maximumf %43, %44 : vector<128x128xf32>
    %46 = arith.truncf %45 : vector<128x128xf32> to vector<128x128xbf16>
    %c0_14 = arith.constant 0 : index
    %c0_15 = arith.constant 0 : index
    %47 = vector.load %arg5[%c0_14, %c0_15] : memref<128x128xbf16, #tpu.memory_space<vmem>>, vector<128x128xbf16>
    tpu.vector_store %arg5[%c0_14, %c0_15], %46 {strides = array<i32>} : memref<128x128xbf16, #tpu.memory_space<vmem>>, vector<128x128xbf16>,
    return
  }
  func.func @transform_0(%arg0: i32) -> (i32, i32) {
    %c0_i32 = arith.constant 0 : i32
    %c0_i32_0 = arith.constant 0 : i32
    %c0_i32_1 = arith.constant 0 : i32
    return %c0_i32, %c0_i32_0 : i32, i32
  }
  func.func @transform_1(%arg0: i32) -> (i32, i32) {
    %c0_i32 = arith.constant 0 : i32
    %c0_i32_0 = arith.constant 0 : i32
    %c0_i32_1 = arith.constant 0 : i32
    return %c0_i32, %c0_i32_0 : i32, i32
  }
  func.func @transform_2(%arg0: i32) -> (i32, i32) {
    %c0_i32 = arith.constant 0 : i32
    %c0_i32_0 = arith.constant 0 : i32
    %c0_i32_1 = arith.constant 0 : i32
    return %c0_i32, %c0_i32_0 : i32, i32
  }
  func.func @transform_3(%arg0: i32) -> (i32, i32) {
    %c0_i32 = arith.constant 0 : i32
    %c0_i32_0 = arith.constant 0 : i32
    %c0_i32_1 = arith.constant 0 : i32
    return %c0_i32, %c0_i32_0 : i32, i32
  }
  func.func @transform_4(%arg0: i32) -> (i32, i32) {
    %c0_i32 = arith.constant 0 : i32
    %c0_i32_0 = arith.constant 0 : i32
    %c0_i32_1 = arith.constant 0 : i32
    return %c0_i32, %c0_i32_0 : i32, i32
  }
}

module attributes {stable_mosaic.version = 11 : i64} {
  func.func @_fused_mm_bn_relu_kernel(%arg0: i32, %arg1: memref<512x288xbf16, #tpu.memory_space<vmem>>, %arg2: memref<288x128xbf16, #tpu.memory_space<vmem>>, %arg3: memref<1x32xf32, #tpu.memory_space<vmem>>, %arg4: memref<1x32xf32, #tpu.memory_space<vmem>>, %arg5: memref<512x128xbf16, #tpu.memory_space<vmem>>) attributes {dimension_semantics = [#tpu.dimension_semantics<arbitrary>], iteration_bounds = array<i64: 1>, scalar_prefetch = 0 : i64, scratch_operands = 0 : i64, tpu.core_type = #tpu.core_type<tc>, window_params = [{pipeline_mode = #tpu.pipeline_mode<synchronous>, transform_indices = @transform_0, window_bounds = array<i64: 512, 288>}, {pipeline_mode = #tpu.pipeline_mode<synchronous>, transform_indices = @transform_1, window_bounds = array<i64: 288, 128>}, {pipeline_mode = #tpu.pipeline_mode<synchronous>, transform_indices = @transform_2, window_bounds = array<i64: 1, 32>}, {pipeline_mode = #tpu.pipeline_mode<synchronous>, transform_indices = @transform_3, window_bounds = array<i64: 1, 32>}, {pipeline_mode = #tpu.pipeline_mode<synchronous>, transform_indices = @transform_4, window_bounds = array<i64: 512, 128>}]} {
    %c0 = arith.constant 0 : index
    %c0_0 = arith.constant 0 : index
    %0 = vector.load %arg1[%c0, %c0_0] : memref<512x288xbf16, #tpu.memory_space<vmem>>, vector<512x288xbf16>
    %c0_1 = arith.constant 0 : index
    %c0_2 = arith.constant 0 : index
    %1 = vector.load %arg2[%c0_1, %c0_2] : memref<288x128xbf16, #tpu.memory_space<vmem>>, vector<288x128xbf16>
    %cst = arith.constant dense<0.000000e+00> : vector<512x128xf32>
    %2 = tpu.matmul %0, %1, %cst {dimension_numbers = #tpu.dot_dimension_numbers<[1], [0], [0], [1], [0, 0, 1, 1], [], []>} : vector<512x288xbf16>, vector<288x128xbf16>, vector<512x128xf32> -> vector<512x128xf32>
    %cst_3 = arith.constant dense<0.000000e+00> : vector<128xf32>
    %3 = vector.multi_reduction <add>, %2, %cst_3 [0] : vector<512x128xf32> to vector<128xf32>
    %4 = vector.shape_cast %3 : vector<128xf32> to vector<1x128xf32>
    %5 = arith.mulf %2, %2 : vector<512x128xf32>
    %cst_4 = arith.constant dense<0.000000e+00> : vector<128xf32>
    %6 = vector.multi_reduction <add>, %5, %cst_4 [0] : vector<512x128xf32> to vector<128xf32>
    %7 = vector.shape_cast %6 : vector<128xf32> to vector<1x128xf32>
    %8 = vector.extract_strided_slice %4 {offsets = [0, 0], sizes = [1, 32], strides = [1, 1]} : vector<1x128xf32> to vector<1x32xf32>
    %9 = vector.extract_strided_slice %7 {offsets = [0, 0], sizes = [1, 32], strides = [1, 1]} : vector<1x128xf32> to vector<1x32xf32>
    %10 = vector.extract_strided_slice %4 {offsets = [0, 32], sizes = [1, 32], strides = [1, 1]} : vector<1x128xf32> to vector<1x32xf32>
    %11 = arith.addf %8, %10 : vector<1x32xf32>
    %12 = vector.extract_strided_slice %7 {offsets = [0, 32], sizes = [1, 32], strides = [1, 1]} : vector<1x128xf32> to vector<1x32xf32>
    %13 = arith.addf %9, %12 : vector<1x32xf32>
    %14 = vector.extract_strided_slice %4 {offsets = [0, 64], sizes = [1, 32], strides = [1, 1]} : vector<1x128xf32> to vector<1x32xf32>
    %15 = arith.addf %11, %14 : vector<1x32xf32>
    %16 = vector.extract_strided_slice %7 {offsets = [0, 64], sizes = [1, 32], strides = [1, 1]} : vector<1x128xf32> to vector<1x32xf32>
    %17 = arith.addf %13, %16 : vector<1x32xf32>
    %18 = vector.extract_strided_slice %4 {offsets = [0, 96], sizes = [1, 32], strides = [1, 1]} : vector<1x128xf32> to vector<1x32xf32>
    %19 = arith.addf %15, %18 : vector<1x32xf32>
    %20 = vector.extract_strided_slice %7 {offsets = [0, 96], sizes = [1, 32], strides = [1, 1]} : vector<1x128xf32> to vector<1x32xf32>
    %21 = arith.addf %17, %20 : vector<1x32xf32>
    %cst_5 = arith.constant 4.8828125E-4 : f32
    %22 = vector.broadcast %cst_5 : f32 to vector<1x32xf32>
    %23 = arith.mulf %19, %22 : vector<1x32xf32>
    %cst_6 = arith.constant 4.8828125E-4 : f32
    %24 = vector.broadcast %cst_6 : f32 to vector<1x32xf32>
    %25 = arith.mulf %21, %24 : vector<1x32xf32>
    %26 = arith.mulf %23, %23 : vector<1x32xf32>
    %27 = arith.subf %25, %26 : vector<1x32xf32>
    %cst_7 = arith.constant 0.000000e+00 : f32
    %28 = vector.broadcast %cst_7 : f32 to vector<1x32xf32>
    %29 = arith.maximumf %27, %28 : vector<1x32xf32>
    %c0_8 = arith.constant 0 : index
    %c0_9 = arith.constant 0 : index
    %30 = vector.load %arg3[%c0_8, %c0_9] : memref<1x32xf32, #tpu.memory_space<vmem>>, vector<1x32xf32>
    %cst_10 = arith.constant 9.99999974E-6 : f32
    %31 = vector.broadcast %cst_10 : f32 to vector<1x32xf32>
    %32 = arith.addf %29, %31 : vector<1x32xf32>
    %33 = math.rsqrt %32 : vector<1x32xf32>
    %34 = arith.mulf %30, %33 : vector<1x32xf32>
    %c0_11 = arith.constant 0 : index
    %c0_12 = arith.constant 0 : index
    %35 = vector.load %arg4[%c0_11, %c0_12] : memref<1x32xf32, #tpu.memory_space<vmem>>, vector<1x32xf32>
    %36 = arith.mulf %23, %34 : vector<1x32xf32>
    %37 = arith.subf %35, %36 : vector<1x32xf32>
    %38 = tpu.concatenate %34, %34, %34, %34 in 1 : vector<1x32xf32>, vector<1x32xf32>, vector<1x32xf32>, vector<1x32xf32> -> vector<1x128xf32>
    %39 = tpu.concatenate %37, %37, %37, %37 in 1 : vector<1x32xf32>, vector<1x32xf32>, vector<1x32xf32>, vector<1x32xf32> -> vector<1x128xf32>
    %40 = vector.broadcast %38 : vector<1x128xf32> to vector<512x128xf32>
    %41 = arith.mulf %2, %40 : vector<512x128xf32>
    %42 = vector.broadcast %39 : vector<1x128xf32> to vector<512x128xf32>
    %43 = arith.addf %41, %42 : vector<512x128xf32>
    %cst_13 = arith.constant 0.000000e+00 : f32
    %44 = vector.broadcast %cst_13 : f32 to vector<512x128xf32>
    %45 = arith.maximumf %43, %44 : vector<512x128xf32>
    %46 = arith.truncf %45 : vector<512x128xf32> to vector<512x128xbf16>
    %c0_14 = arith.constant 0 : index
    %c0_15 = arith.constant 0 : index
    %47 = vector.load %arg5[%c0_14, %c0_15] : memref<512x128xbf16, #tpu.memory_space<vmem>>, vector<512x128xbf16>
    tpu.vector_store %arg5[%c0_14, %c0_15], %46 {strides = array<i32>} : memref<512x128xbf16, #tpu.memory_space<vmem>>, vector<512x128xbf16>,
    return
  }
  func.func @transform_0(%arg0: i32) -> (i32, i32) {
    %c0_i32 = arith.constant 0 : i32
    %c0_i32_0 = arith.constant 0 : i32
    %c0_i32_1 = arith.constant 0 : i32
    return %c0_i32, %c0_i32_0 : i32, i32
  }
  func.func @transform_1(%arg0: i32) -> (i32, i32) {
    %c0_i32 = arith.constant 0 : i32
    %c0_i32_0 = arith.constant 0 : i32
    %c0_i32_1 = arith.constant 0 : i32
    return %c0_i32, %c0_i32_0 : i32, i32
  }
  func.func @transform_2(%arg0: i32) -> (i32, i32) {
    %c0_i32 = arith.constant 0 : i32
    %c0_i32_0 = arith.constant 0 : i32
    %c0_i32_1 = arith.constant 0 : i32
    return %c0_i32, %c0_i32_0 : i32, i32
  }
  func.func @transform_3(%arg0: i32) -> (i32, i32) {
    %c0_i32 = arith.constant 0 : i32
    %c0_i32_0 = arith.constant 0 : i32
    %c0_i32_1 = arith.constant 0 : i32
    return %c0_i32, %c0_i32_0 : i32, i32
  }
  func.func @transform_4(%arg0: i32) -> (i32, i32) {
    %c0_i32 = arith.constant 0 : i32
    %c0_i32_0 = arith.constant 0 : i32
    %c0_i32_1 = arith.constant 0 : i32
    return %c0_i32, %c0_i32_0 : i32, i32
  }
}

module attributes {stable_mosaic.version = 11 : i64} {
  func.func @_mm_bias_tanh_kernel(%arg0: i32, %arg1: memref<512x144xbf16, #tpu.memory_space<vmem>>, %arg2: memref<144x128xbf16, #tpu.memory_space<vmem>>, %arg3: memref<1x128xf32, #tpu.memory_space<vmem>>, %arg4: memref<512x128xf32, #tpu.memory_space<vmem>>) attributes {dimension_semantics = [#tpu.dimension_semantics<parallel>], iteration_bounds = array<i64: 4>, scalar_prefetch = 0 : i64, scratch_operands = 0 : i64, tpu.core_type = #tpu.core_type<tc>, window_params = [{transform_indices = @transform_0, window_bounds = array<i64: 512, 144>}, {pipeline_mode = #tpu.pipeline_mode<synchronous>, transform_indices = @transform_1, window_bounds = array<i64: 144, 128>}, {pipeline_mode = #tpu.pipeline_mode<synchronous>, transform_indices = @transform_2, window_bounds = array<i64: 1, 128>}, {transform_indices = @transform_3, window_bounds = array<i64: 512, 128>}]} {
    %c0 = arith.constant 0 : index
    %c0_0 = arith.constant 0 : index
    %0 = vector.load %arg1[%c0, %c0_0] : memref<512x144xbf16, #tpu.memory_space<vmem>>, vector<512x144xbf16>
    %c0_1 = arith.constant 0 : index
    %c0_2 = arith.constant 0 : index
    %1 = vector.load %arg2[%c0_1, %c0_2] : memref<144x128xbf16, #tpu.memory_space<vmem>>, vector<144x128xbf16>
    %cst = arith.constant dense<0.000000e+00> : vector<512x128xf32>
    %2 = tpu.matmul %0, %1, %cst {dimension_numbers = #tpu.dot_dimension_numbers<[1], [0], [0], [1], [0, 0, 1, 1], [], []>} : vector<512x144xbf16>, vector<144x128xbf16>, vector<512x128xf32> -> vector<512x128xf32>
    %c0_3 = arith.constant 0 : index
    %c0_4 = arith.constant 0 : index
    %3 = vector.load %arg3[%c0_3, %c0_4] : memref<1x128xf32, #tpu.memory_space<vmem>>, vector<1x128xf32>
    %4 = vector.broadcast %3 : vector<1x128xf32> to vector<512x128xf32>
    %5 = arith.addf %2, %4 : vector<512x128xf32>
    %6 = math.tanh %5 : vector<512x128xf32>
    %c0_5 = arith.constant 0 : index
    %c0_6 = arith.constant 0 : index
    %7 = vector.load %arg4[%c0_5, %c0_6] : memref<512x128xf32, #tpu.memory_space<vmem>>, vector<512x128xf32>
    tpu.vector_store %arg4[%c0_5, %c0_6], %6 {strides = array<i32>} : memref<512x128xf32, #tpu.memory_space<vmem>>, vector<512x128xf32>,
    return
  }
  func.func @transform_0(%arg0: i32) -> (i32, i32) {
    %c0_i32 = arith.constant 0 : i32
    %c0_i32_0 = arith.constant 0 : i32
    return %arg0, %c0_i32 : i32, i32
  }
  func.func @transform_1(%arg0: i32) -> (i32, i32) {
    %c0_i32 = arith.constant 0 : i32
    %c0_i32_0 = arith.constant 0 : i32
    %c0_i32_1 = arith.constant 0 : i32
    return %c0_i32, %c0_i32_0 : i32, i32
  }
  func.func @transform_2(%arg0: i32) -> (i32, i32) {
    %c0_i32 = arith.constant 0 : i32
    %c0_i32_0 = arith.constant 0 : i32
    %c0_i32_1 = arith.constant 0 : i32
    return %c0_i32, %c0_i32_0 : i32, i32
  }
  func.func @transform_3(%arg0: i32) -> (i32, i32) {
    %c0_i32 = arith.constant 0 : i32
    %c0_i32_0 = arith.constant 0 : i32
    return %arg0, %c0_i32 : i32, i32
  }
}

</mosaic_0001>

<llo_original>
// kernel: generator_forward.5
$region0: #{generator_forward.5}
  #allocation0 [shape = 'u32[]', space=smem, size = 0x4, offset = 0x4, fixed_abs, tag = 'smem constant byte address 0x4 - core index']
  #allocation1 [shape = 'u32[72,128]{1,0:T(1,128)}', space=vmem, size = 0x9000, scoped, tag = 'internal scratch']
  %s0 = inlined_call_operand.vmem [shape: bf16[8,128], index: 0, kind: input, shape index: {}]
  %s1 = inlined_call_operand.hbm [shape: bf16[128,1024], index: 1, kind: input, shape index: {}]
  %s2 = inlined_call_operand.hbm [shape: f32[1,64], index: 2, kind: input, shape index: {}]
  %s3 = inlined_call_operand.hbm [shape: f32[1,64], index: 3, kind: input, shape index: {}]
  %s4 = inlined_call_operand.vmem [shape: bf16[8,1024], index: 4, kind: output, shape index: {}]
  %s5 = sld [smem:[#allocation0]]
  $region38: #{generator_forward.5} parent=0
    _
  %s7 = ssub.s32 1, %s5
  %s8 = scalar_select 0, %s7, %s5
  $region1: #{generator_forward.5} parent=0
    #allocation2 [shape = 'u8[262144]{0}', space=vmem, size = 0x40000, scoped, tag = 'input window, operand 1, single buffered']
    #allocation3 [shape = 's32[1]{0}', space=sflag, size = 0x4, scoped, tag = 'scoped memory for generator_forward.5']
    #allocation4 [shape = 'u8[512]{0}', space=vmem, size = 0x400, scoped, tag = 'input window, operand 2, single buffered']
    #allocation5 [shape = 's32[1]{0}', space=sflag, size = 0x4, scoped, tag = 'scoped memory for generator_forward.5']
    #allocation6 [shape = 'u8[512]{0}', space=vmem, size = 0x400, scoped, tag = 'input window, operand 3, single buffered']
    %9 = vsyncpa [#allocation3], 0
    %10 = vsyncpa [#allocation5], 0
    // Predicated region
    $region2: #{generator_forward.5} parent=1 // pred_check
      _
    $region3: #{generator_forward.5} parent=1 // pred_check_branch
      %12 = sbr.rel (0) target = $region5
    $region4: #{generator_forward.5} parent=1 // pred_region
      _
    $region5: #{generator_forward.5} parent=1 // pred_fallthru
      _
    // Predicated region
    $region6: #{generator_forward.5} parent=1 // pred_check
      _
    $region7: #{generator_forward.5} parent=1 // pred_check_branch
      %14 = sbr.rel (0) target = $region9
    $region8: #{generator_forward.5} parent=1 // pred_region
      %16 = vsyncadd [#allocation3], 0
      %s17 = sshll.u32 %s1, 4
      %s18 = int_to_ptr.hbm [resolvable:$true] %s17
      %s19 = sshll.u32 [#allocation2], 4
      %s20 = int_to_ptr.vmem [resolvable:$true] %s19
      %25 = dma.hbm_to_vmem [thread:$0]  %s18, 8192, %s20, [#allocation3], 512, 512, 32
    $region9: #{generator_forward.5} parent=1 // pred_fallthru
      _
    // Predicated region
    $region10: #{generator_forward.5} parent=1 // pred_check
      _
    $region11: #{generator_forward.5} parent=1 // pred_check_branch
      %27 = sbr.rel (0) target = $region13
    $region12: #{generator_forward.5} parent=1 // pred_region
      %29 = vsyncadd [#allocation5], 0
      %s31 = sshll.u32 %s2, 4
      %s32 = int_to_ptr.hbm [resolvable:$true] %s31
      %s33 = sshll.u32 [#allocation4], 4
      %s34 = int_to_ptr.vmem [resolvable:$true] %s33
      %36 = dma.hbm_to_vmem [thread:$0]  %s32, 16, %s34, [#allocation5]
    $region13: #{generator_forward.5} parent=1 // pred_fallthru
      _
    // Predicated region
    $region14: #{generator_forward.5} parent=1 // pred_check
      _
    $region15: #{generator_forward.5} parent=1 // pred_check_branch
      %38 = sbr.rel (0) target = $region17
    $region16: #{generator_forward.5} parent=1 // pred_region
      %40 = vsyncadd [#allocation5], 0
      %s42 = sshll.u32 %s3, 4
      %s43 = int_to_ptr.hbm [resolvable:$true] %s42
      %s44 = sshll.u32 [#allocation6], 4
      %s45 = int_to_ptr.vmem [resolvable:$true] %s44
      %47 = dma.hbm_to_vmem [thread:$0]  %s43, 16, %s45, [#allocation5]
    $region17: #{generator_forward.5} parent=1 // pred_fallthru
      _
    // Predicated region
    $region18: #{generator_forward.5} parent=1 // pred_check
      _
    $region19: #{generator_forward.5} parent=1 // pred_check_branch
      %49 = sbr.rel (0) target = $region21
    $region20: #{generator_forward.5} parent=1 // pred_region
      %51 = dma.done [#allocation3], 8192
    $region21: #{generator_forward.5} parent=1 // pred_fallthru
      _
    // Predicated region
    $region22: #{generator_forward.5} parent=1 // pred_check
      _
    $region23: #{generator_forward.5} parent=1 // pred_check_branch
      %53 = sbr.rel (0) target = $region25
    $region24: #{generator_forward.5} parent=1 // pred_region
      %55 = dma.done [#allocation5], 16
    $region25: #{generator_forward.5} parent=1 // pred_fallthru
      _
    // Predicated region
    $region26: #{generator_forward.5} parent=1 // pred_check
      _
    $region27: #{generator_forward.5} parent=1 // pred_check_branch
      %57 = sbr.rel (0) target = $region29
    $region28: #{generator_forward.5} parent=1 // pred_region
      %59 = dma.done [#allocation5], 16
    $region29: #{generator_forward.5} parent=1 // pred_fallthru
      _
    %v60 = vld [vmem:[%s0] sm:$0xf]
    %v61 = vld [vmem:[#allocation2] sm:$0xff]
    %v62 = vld [vmem:[#allocation2 + $0x8] sm:$0xff]
    %v63 = vld [vmem:[#allocation2 + $0x10] sm:$0xff]
    %v64 = vld [vmem:[#allocation2 + $0x18] sm:$0xff]
    %v65 = vld [vmem:[#allocation2 + $0x20] sm:$0xff]
    %v66 = vld [vmem:[#allocation2 + $0x28] sm:$0xff]
    %v67 = vld [vmem:[#allocation2 + $0x30] sm:$0xff]
    %v68 = vld [vmem:[#allocation2 + $0x38] sm:$0xff]
    %v69 = vld [vmem:[#allocation2 + $0x40] sm:$0xff]
    %v70 = vld [vmem:[#allocation2 + $0x48] sm:$0xff]
    %v71 = vld [vmem:[#allocation2 + $0x50] sm:$0xff]
    %v72 = vld [vmem:[#allocation2 + $0x58] sm:$0xff]
    %v73 = vld [vmem:[#allocation2 + $0x60] sm:$0xff]
    %v74 = vld [vmem:[#allocation2 + $0x68] sm:$0xff]
    %v75 = vld [vmem:[#allocation2 + $0x70] sm:$0xff]
    %v76 = vld [vmem:[#allocation2 + $0x78] sm:$0xff]
    %v77 = vld [vmem:[#allocation2 + $0x80] sm:$0xff]
    %v78 = vld [vmem:[#allocation2 + $0x88] sm:$0xff]
    %v79 = vld [vmem:[#allocation2 + $0x90] sm:$0xff]
    %v80 = vld [vmem:[#allocation2 + $0x98] sm:$0xff]
    %v81 = vld [vmem:[#allocation2 + $0xa0] sm:$0xff]
    %v82 = vld [vmem:[#allocation2 + $0xa8] sm:$0xff]
    %v83 = vld [vmem:[#allocation2 + $0xb0] sm:$0xff]
    %v84 = vld [vmem:[#allocation2 + $0xb8] sm:$0xff]
    %v85 = vld [vmem:[#allocation2 + $0xc0] sm:$0xff]
    %v86 = vld [vmem:[#allocation2 + $0xc8] sm:$0xff]
    %v87 = vld [vmem:[#allocation2 + $0xd0] sm:$0xff]
    %v88 = vld [vmem:[#allocation2 + $0xd8] sm:$0xff]
    %v89 = vld [vmem:[#allocation2 + $0xe0] sm:$0xff]
    %v90 = vld [vmem:[#allocation2 + $0xe8] sm:$0xff]
    %v91 = vld [vmem:[#allocation2 + $0xf0] sm:$0xff]
    %v92 = vld [vmem:[#allocation2 + $0xf8] sm:$0xff]
    %v93 = vld [vmem:[#allocation2 + $0x100] sm:$0xff]
    %v94 = vld [vmem:[#allocation2 + $0x108] sm:$0xff]
    %v95 = vld [vmem:[#allocation2 + $0x110] sm:$0xff]
    %v96 = vld [vmem:[#allocation2 + $0x118] sm:$0xff]
    %v97 = vld [vmem:[#allocation2 + $0x120] sm:$0xff]
    %v98 = vld [vmem:[#allocation2 + $0x128] sm:$0xff]
    %v99 = vld [vmem:[#allocation2 + $0x130] sm:$0xff]
    %v100 = vld [vmem:[#allocation2 + $0x138] sm:$0xff]
    %v101 = vld [vmem:[#allocation2 + $0x140] sm:$0xff]
    %v102 = vld [vmem:[#allocation2 + $0x148] sm:$0xff]
    %v103 = vld [vmem:[#allocation2 + $0x150] sm:$0xff]
    %v104 = vld [vmem:[#allocation2 + $0x158] sm:$0xff]
    %v105 = vld [vmem:[#allocation2 + $0x160] sm:$0xff]
    %v106 = vld [vmem:[#allocation2 + $0x168] sm:$0xff]
    %v107 = vld [vmem:[#allocation2 + $0x170] sm:$0xff]
    %v108 = vld [vmem:[#allocation2 + $0x178] sm:$0xff]
    %v109 = vld [vmem:[#allocation2 + $0x180] sm:$0xff]
    %v110 = vld [vmem:[#allocation2 + $0x188] sm:$0xff]
    %v111 = vld [vmem:[#allocation2 + $0x190] sm:$0xff]
    %v112 = vld [vmem:[#allocation2 + $0x198] sm:$0xff]
    %v113 = vld [vmem:[#allocation2 + $0x1a0] sm:$0xff]
    %v114 = vld [vmem:[#allocation2 + $0x1a8] sm:$0xff]
    %v115 = vld [vmem:[#allocation2 + $0x1b0] sm:$0xff]
    %v116 = vld [vmem:[#allocation2 + $0x1b8] sm:$0xff]
    %v117 = vld [vmem:[#allocation2 + $0x1c0] sm:$0xff]
    %v118 = vld [vmem:[#allocation2 + $0x1c8] sm:$0xff]
    %v119 = vld [vmem:[#allocation2 + $0x1d0] sm:$0xff]
    %v120 = vld [vmem:[#allocation2 + $0x1d8] sm:$0xff]
    %v121 = vld [vmem:[#allocation2 + $0x1e0] sm:$0xff]
    %v122 = vld [vmem:[#allocation2 + $0x1e8] sm:$0xff]
    %v123 = vld [vmem:[#allocation2 + $0x1f0] sm:$0xff]
    %v124 = vld [vmem:[#allocation2 + $0x1f8] sm:$0xff]
    %v189 = vunpack.c.l.b16 %v61
    %v190 = vunpack.c.h.b16 %v61
    %v191 = vunpack.c.l.b16 %v62
    %v192 = vunpack.c.h.b16 %v62
    %v193 = vunpack.c.l.b16 %v63
    %v194 = vunpack.c.h.b16 %v63
    %v195 = vunpack.c.l.b16 %v64
    %v196 = vunpack.c.h.b16 %v64
    %v197 = vunpack.c.l.b16 %v65
    %v198 = vunpack.c.h.b16 %v65
    %v199 = vunpack.c.l.b16 %v66
    %v200 = vunpack.c.h.b16 %v66
    %v201 = vunpack.c.l.b16 %v67
    %v202 = vunpack.c.h.b16 %v67
    %v203 = vunpack.c.l.b16 %v68
    %v204 = vunpack.c.h.b16 %v68
    %v205 = vunpack.c.l.b16 %v69
    %v206 = vunpack.c.h.b16 %v69
    %v207 = vunpack.c.l.b16 %v70
    %v208 = vunpack.c.h.b16 %v70
    %v209 = vunpack.c.l.b16 %v71
    %v210 = vunpack.c.h.b16 %v71
    %v211 = vunpack.c.l.b16 %v72
    %v212 = vunpack.c.h.b16 %v72
    %v213 = vunpack.c.l.b16 %v73
    %v214 = vunpack.c.h.b16 %v73
    %v215 = vunpack.c.l.b16 %v74
    %v216 = vunpack.c.h.b16 %v74
    %v217 = vunpack.c.l.b16 %v75
    %v218 = vunpack.c.h.b16 %v75
    %v219 = vunpack.c.l.b16 %v76
    %v220 = vunpack.c.h.b16 %v76
    %v221 = vunpack.c.l.b16 %v77
    %v222 = vunpack.c.h.b16 %v77
    %v223 = vunpack.c.l.b16 %v78
    %v224 = vunpack.c.h.b16 %v78
    %v225 = vunpack.c.l.b16 %v79
    %v226 = vunpack.c.h.b16 %v79
    %v227 = vunpack.c.l.b16 %v80
    %v228 = vunpack.c.h.b16 %v80
    %v229 = vunpack.c.l.b16 %v81
    %v230 = vunpack.c.h.b16 %v81
    %v231 = vunpack.c.l.b16 %v82
    %v232 = vunpack.c.h.b16 %v82
    %v233 = vunpack.c.l.b16 %v83
    %v234 = vunpack.c.h.b16 %v83
    %v235 = vunpack.c.l.b16 %v84
    %v236 = vunpack.c.h.b16 %v84
    %v237 = vunpack.c.l.b16 %v85
    %v238 = vunpack.c.h.b16 %v85
    %v239 = vunpack.c.l.b16 %v86
    %v240 = vunpack.c.h.b16 %v86
    %v241 = vunpack.c.l.b16 %v87
    %v242 = vunpack.c.h.b16 %v87
    %v243 = vunpack.c.l.b16 %v88
    %v244 = vunpack.c.h.b16 %v88
    %v245 = vunpack.c.l.b16 %v89
    %v246 = vunpack.c.h.b16 %v89
    %v247 = vunpack.c.l.b16 %v90
    %v248 = vunpack.c.h.b16 %v90
    %v249 = vunpack.c.l.b16 %v91
    %v250 = vunpack.c.h.b16 %v91
    %v251 = vunpack.c.l.b16 %v92
    %v252 = vunpack.c.h.b16 %v92
    %v253 = vunpack.c.l.b16 %v93
    %v254 = vunpack.c.h.b16 %v93
    %v255 = vunpack.c.l.b16 %v94
    %v256 = vunpack.c.h.b16 %v94
    %v257 = vunpack.c.l.b16 %v95
    %v258 = vunpack.c.h.b16 %v95
    %v259 = vunpack.c.l.b16 %v96
    %v260 = vunpack.c.h.b16 %v96
    %v261 = vunpack.c.l.b16 %v97
    %v262 = vunpack.c.h.b16 %v97
    %v263 = vunpack.c.l.b16 %v98
    %v264 = vunpack.c.h.b16 %v98
    %v265 = vunpack.c.l.b16 %v99
    %v266 = vunpack.c.h.b16 %v99
    %v267 = vunpack.c.l.b16 %v100
    %v268 = vunpack.c.h.b16 %v100
    %v269 = vunpack.c.l.b16 %v101
    %v270 = vunpack.c.h.b16 %v101
    %v271 = vunpack.c.l.b16 %v102
    %v272 = vunpack.c.h.b16 %v102
    %v273 = vunpack.c.l.b16 %v103
    %v274 = vunpack.c.h.b16 %v103
    %v275 = vunpack.c.l.b16 %v104
    %v276 = vunpack.c.h.b16 %v104
    %v277 = vunpack.c.l.b16 %v105
    %v278 = vunpack.c.h.b16 %v105
    %v279 = vunpack.c.l.b16 %v106
    %v280 = vunpack.c.h.b16 %v106
    %v281 = vunpack.c.l.b16 %v107
    %v282 = vunpack.c.h.b16 %v107
    %v283 = vunpack.c.l.b16 %v108
    %v284 = vunpack.c.h.b16 %v108
    %v285 = vunpack.c.l.b16 %v109
    %v286 = vunpack.c.h.b16 %v109
    %v287 = vunpack.c.l.b16 %v110
    %v288 = vunpack.c.h.b16 %v110
    %v289 = vunpack.c.l.b16 %v111
    %v290 = vunpack.c.h.b16 %v111
    %v291 = vunpack.c.l.b16 %v112
    %v292 = vunpack.c.h.b16 %v112
    %v293 = vunpack.c.l.b16 %v113
    %v294 = vunpack.c.h.b16 %v113
    %v295 = vunpack.c.l.b16 %v114
    %v296 = vunpack.c.h.b16 %v114
    %v297 = vunpack.c.l.b16 %v115
    %v298 = vunpack.c.h.b16 %v115
    %v299 = vunpack.c.l.b16 %v116
    %v300 = vunpack.c.h.b16 %v116
    %v301 = vunpack.c.l.b16 %v117
    %v302 = vunpack.c.h.b16 %v117
    %v303 = vunpack.c.l.b16 %v118
    %v304 = vunpack.c.h.b16 %v118
    %v305 = vunpack.c.l.b16 %v119
    %v306 = vunpack.c.h.b16 %v119
    %v307 = vunpack.c.l.b16 %v120
    %v308 = vunpack.c.h.b16 %v120
    %v309 = vunpack.c.l.b16 %v121
    %v310 = vunpack.c.h.b16 %v121
    %v311 = vunpack.c.l.b16 %v122
    %v312 = vunpack.c.h.b16 %v122
    %v313 = vunpack.c.l.b16 %v123
    %v314 = vunpack.c.h.b16 %v123
    %v315 = vunpack.c.l.b16 %v124
    %v316 = vunpack.c.h.b16 %v124
    %v317 = vpack.c.b16 %v197, %v189
    %v318 = vpack.c.b16 %v198, %v190
    %v319 = vpack.c.b16 %v199, %v191
    %v320 = vpack.c.b16 %v200, %v192
    %v321 = vpack.c.b16 %v201, %v193
    %v322 = vpack.c.b16 %v202, %v194
    %v323 = vpack.c.b16 %v203, %v195
    %v324 = vpack.c.b16 %v204, %v196
    %v325 = vpack.c.b16 %v213, %v205
    %v326 = vpack.c.b16 %v214, %v206
    %v327 = vpack.c.b16 %v215, %v207
    %v328 = vpack.c.b16 %v216, %v208
    %v329 = vpack.c.b16 %v217, %v209
    %v330 = vpack.c.b16 %v218, %v210
    %v331 = vpack.c.b16 %v219, %v211
    %v332 = vpack.c.b16 %v220, %v212
    %v333 = vpack.c.b16 %v229, %v221
    %v334 = vpack.c.b16 %v230, %v222
    %v335 = vpack.c.b16 %v231, %v223
    %v336 = vpack.c.b16 %v232, %v224
    %v337 = vpack.c.b16 %v233, %v225
    %v338 = vpack.c.b16 %v234, %v226
    %v339 = vpack.c.b16 %v235, %v227
    %v340 = vpack.c.b16 %v236, %v228
    %v341 = vpack.c.b16 %v245, %v237
    %v342 = vpack.c.b16 %v246, %v238
    %v343 = vpack.c.b16 %v247, %v239
    %v344 = vpack.c.b16 %v248, %v240
    %v345 = vpack.c.b16 %v249, %v241
    %v346 = vpack.c.b16 %v250, %v242
    %v347 = vpack.c.b16 %v251, %v243
    %v348 = vpack.c.b16 %v252, %v244
    %v349 = vpack.c.b16 %v261, %v253
    %v350 = vpack.c.b16 %v262, %v254
    %v351 = vpack.c.b16 %v263, %v255
    %v352 = vpack.c.b16 %v264, %v256
    %v353 = vpack.c.b16 %v265, %v257
    %v354 = vpack.c.b16 %v266, %v258
    %v355 = vpack.c.b16 %v267, %v259
    %v356 = vpack.c.b16 %v268, %v260
    %v357 = vpack.c.b16 %v277, %v269
    %v358 = vpack.c.b16 %v278, %v270
    %v359 = vpack.c.b16 %v279, %v271
    %v360 = vpack.c.b16 %v280, %v272
    %v361 = vpack.c.b16 %v281, %v273
    %v362 = vpack.c.b16 %v282, %v274
    %v363 = vpack.c.b16 %v283, %v275
    %v364 = vpack.c.b16 %v284, %v276
    %v365 = vpack.c.b16 %v293, %v285
    %v366 = vpack.c.b16 %v294, %v286
    %v367 = vpack.c.b16 %v295, %v287
    %v368 = vpack.c.b16 %v296, %v288
    %v369 = vpack.c.b16 %v297, %v289
    %v370 = vpack.c.b16 %v298, %v290
    %v371 = vpack.c.b16 %v299, %v291
    %v372 = vpack.c.b16 %v300, %v292
    %v373 = vpack.c.b16 %v309, %v301
    %v374 = vpack.c.b16 %v310, %v302
    %v375 = vpack.c.b16 %v311, %v303
    %v376 = vpack.c.b16 %v312, %v304
    %v377 = vpack.c.b16 %v313, %v305
    %v378 = vpack.c.b16 %v314, %v306
    %v379 = vpack.c.b16 %v315, %v307
    %v380 = vpack.c.b16 %v316, %v308
    %445 = vmatpush.bf16.msra.mxu0 %v373
    %446 = vmatpush.bf16.msra.mxu0 %v365
    %447 = vmatpush.bf16.msra.mxu0 %v357
    %448 = vmatpush.bf16.msra.mxu0 %v349
    %449 = vmatpush.bf16.msra.mxu0 %v341
    %450 = vmatpush.bf16.msra.mxu0 %v333
    %451 = vmatpush.bf16.msra.mxu0 %v325
    %452 = vmatpush.bf16.msra.mxu0 %v317
    %453 = vmatmul.bf16.gmra.mxu0 %v60
    %v454 = vpop.f32.mrf.mxu0
    %v455 = vadd.f32 0.0, %v454
    %v456 = vpop.f32.mrf.mxu0
    %457 = vdwg.mxu0
    %458 = vmatpush.bf16.msra.mxu0 %v374
    %459 = vmatpush.bf16.msra.mxu0 %v366
    %460 = vmatpush.bf16.msra.mxu0 %v358
    %461 = vmatpush.bf16.msra.mxu0 %v350
    %462 = vmatpush.bf16.msra.mxu0 %v342
    %463 = vmatpush.bf16.msra.mxu0 %v334
    %464 = vmatpush.bf16.msra.mxu0 %v326
    %465 = vmatpush.bf16.msra.mxu0 %v318
    %466 = vmatmul.bf16.gmra.mxu0 %v60
    %v467 = vpop.f32.mrf.mxu0
    %v468 = vadd.f32 0.0, %v467
    %v469 = vpop.f32.mrf.mxu0
    %470 = vdwg.mxu0
    %471 = vmatpush.bf16.msra.mxu0 %v375
    %472 = vmatpush.bf16.msra.mxu0 %v367
    %473 = vmatpush.bf16.msra.mxu0 %v359
    %474 = vmatpush.bf16.msra.mxu0 %v351
    %475 = vmatpush.bf16.msra.mxu0 %v343
    %476 = vmatpush.bf16.msra.mxu0 %v335
    %477 = vmatpush.bf16.msra.mxu0 %v327
    %478 = vmatpush.bf16.msra.mxu0 %v319
    %479 = vmatmul.bf16.gmra.mxu0 %v60
    %v480 = vpop.f32.mrf.mxu0
    %v481 = vadd.f32 0.0, %v480
    %v482 = vpop.f32.mrf.mxu0
    %483 = vdwg.mxu0
    %484 = vmatpush.bf16.msra.mxu0 %v376
    %485 = vmatpush.bf16.msra.mxu0 %v368
    %486 = vmatpush.bf16.msra.mxu0 %v360
    %487 = vmatpush.bf16.msra.mxu0 %v352
    %488 = vmatpush.bf16.msra.mxu0 %v344
    %489 = vmatpush.bf16.msra.mxu0 %v336
    %490 = vmatpush.bf16.msra.mxu0 %v328
    %491 = vmatpush.bf16.msra.mxu0 %v320
    %492 = vmatmul.bf16.gmra.mxu0 %v60
    %v493 = vpop.f32.mrf.mxu0
    %v494 = vadd.f32 0.0, %v493
    %v495 = vpop.f32.mrf.mxu0
    %496 = vdwg.mxu0
    %497 = vmatpush.bf16.msra.mxu0 %v377
    %498 = vmatpush.bf16.msra.mxu0 %v369
    %499 = vmatpush.bf16.msra.mxu0 %v361
    %500 = vmatpush.bf16.msra.mxu0 %v353
    %501 = vmatpush.bf16.msra.mxu0 %v345
    %502 = vmatpush.bf16.msra.mxu0 %v337
    %503 = vmatpush.bf16.msra.mxu0 %v329
    %504 = vmatpush.bf16.msra.mxu0 %v321
    %505 = vmatmul.bf16.gmra.mxu0 %v60
    %v506 = vpop.f32.mrf.mxu0
    %v507 = vadd.f32 0.0, %v506
    %v508 = vpop.f32.mrf.mxu0
    %509 = vdwg.mxu0
    %510 = vmatpush.bf16.msra.mxu0 %v378
    %511 = vmatpush.bf16.msra.mxu0 %v370
    %512 = vmatpush.bf16.msra.mxu0 %v362
    %513 = vmatpush.bf16.msra.mxu0 %v354
    %514 = vmatpush.bf16.msra.mxu0 %v346
    %515 = vmatpush.bf16.msra.mxu0 %v338
    %516 = vmatpush.bf16.msra.mxu0 %v330
    %517 = vmatpush.bf16.msra.mxu0 %v322
    %518 = vmatmul.bf16.gmra.mxu0 %v60
    %v519 = vpop.f32.mrf.mxu0
    %v520 = vadd.f32 0.0, %v519
    %v521 = vpop.f32.mrf.mxu0
    %522 = vdwg.mxu0
    %523 = vmatpush.bf16.msra.mxu0 %v379
    %524 = vmatpush.bf16.msra.mxu0 %v371
    %525 = vmatpush.bf16.msra.mxu0 %v363
    %526 = vmatpush.bf16.msra.mxu0 %v355
    %527 = vmatpush.bf16.msra.mxu0 %v347
    %528 = vmatpush.bf16.msra.mxu0 %v339
    %529 = vmatpush.bf16.msra.mxu0 %v331
    %530 = vmatpush.bf16.msra.mxu0 %v323
    %531 = vmatmul.bf16.gmra.mxu0 %v60
    %v532 = vpop.f32.mrf.mxu0
    %v533 = vadd.f32 0.0, %v532
    %v534 = vpop.f32.mrf.mxu0
    %535 = vdwg.mxu0
    %536 = vmatpush.bf16.msra.mxu0 %v380
    %537 = vmatpush.bf16.msra.mxu0 %v372
    %538 = vmatpush.bf16.msra.mxu0 %v364
    %539 = vmatpush.bf16.msra.mxu0 %v356
    %540 = vmatpush.bf16.msra.mxu0 %v348
    %541 = vmatpush.bf16.msra.mxu0 %v340
    %542 = vmatpush.bf16.msra.mxu0 %v332
    %543 = vmatpush.bf16.msra.mxu0 %v324
    %544 = vmatmul.bf16.gmra.mxu0 %v60
    %v545 = vpop.f32.mrf.mxu0
    %v546 = vadd.f32 0.0, %v545
    %v547 = vpop.f32.mrf.mxu0
    %548 = vdwg.mxu0
    %v549 = vrot.slane %v455, 4
    %v550 = vadd.f32 %v455, %v549
    %v551 = vrot.slane %v550, 2
    %v552 = vadd.f32 %v550, %v551
    %v553 = vrot.slane %v552, 1
    %v554 = vadd.f32 %v552, %v553
    %v555 = vrot.slane %v468, 4
    %v556 = vadd.f32 %v468, %v555
    %v557 = vrot.slane %v556, 2
    %v558 = vadd.f32 %v556, %v557
    %v559 = vrot.slane %v558, 1
    %v560 = vadd.f32 %v558, %v559
    %v561 = vrot.slane %v481, 4
    %v562 = vadd.f32 %v481, %v561
    %v563 = vrot.slane %v562, 2
    %v564 = vadd.f32 %v562, %v563
    %v565 = vrot.slane %v564, 1
    %v566 = vadd.f32 %v564, %v565
    %v567 = vrot.slane %v494, 4
    %v568 = vadd.f32 %v494, %v567
    %v569 = vrot.slane %v568, 2
    %v570 = vadd.f32 %v568, %v569
    %v571 = vrot.slane %v570, 1
    %v572 = vadd.f32 %v570, %v571
    %v573 = vrot.slane %v507, 4
    %v574 = vadd.f32 %v507, %v573
    %v575 = vrot.slane %v574, 2
    %v576 = vadd.f32 %v574, %v575
    %v577 = vrot.slane %v576, 1
    %v578 = vadd.f32 %v576, %v577
    %v579 = vrot.slane %v520, 4
    %v580 = vadd.f32 %v520, %v579
    %v581 = vrot.slane %v580, 2
    %v582 = vadd.f32 %v580, %v581
    %v583 = vrot.slane %v582, 1
    %v584 = vadd.f32 %v582, %v583
    %v585 = vrot.slane %v533, 4
    %v586 = vadd.f32 %v533, %v585
    %v587 = vrot.slane %v586, 2
    %v588 = vadd.f32 %v586, %v587
    %v589 = vrot.slane %v588, 1
    %v590 = vadd.f32 %v588, %v589
    %v591 = vrot.slane %v546, 4
    %v592 = vadd.f32 %v546, %v591
    %v593 = vrot.slane %v592, 2
    %v594 = vadd.f32 %v592, %v593
    %v595 = vrot.slane %v594, 1
    %v596 = vadd.f32 %v594, %v595
    %v597 = vmul.f32 %v455, %v455
    %v598 = vmul.f32 %v468, %v468
    %v599 = vmul.f32 %v481, %v481
    %v600 = vmul.f32 %v494, %v494
    %v601 = vmul.f32 %v507, %v507
    %v602 = vmul.f32 %v520, %v520
    %v603 = vmul.f32 %v533, %v533
    %v604 = vmul.f32 %v546, %v546
    %v605 = vrot.slane %v597, 4
    %v606 = vadd.f32 %v597, %v605
    %v607 = vrot.slane %v606, 2
    %v608 = vadd.f32 %v606, %v607
    %v609 = vrot.slane %v608, 1
    %v610 = vadd.f32 %v608, %v609
    %v611 = vrot.slane %v598, 4
    %v612 = vadd.f32 %v598, %v611
    %v613 = vrot.slane %v612, 2
    %v614 = vadd.f32 %v612, %v613
    %v615 = vrot.slane %v614, 1
    %v616 = vadd.f32 %v614, %v615
    %v617 = vrot.slane %v599, 4
    %v618 = vadd.f32 %v599, %v617
    %v619 = vrot.slane %v618, 2
    %v620 = vadd.f32 %v618, %v619
    %v621 = vrot.slane %v620, 1
    %v622 = vadd.f32 %v620, %v621
    %v623 = vrot.slane %v600, 4
    %v624 = vadd.f32 %v600, %v623
    %v625 = vrot.slane %v624, 2
    %v626 = vadd.f32 %v624, %v625
    %v627 = vrot.slane %v626, 1
    %v628 = vadd.f32 %v626, %v627
    %v629 = vrot.slane %v601, 4
    %v630 = vadd.f32 %v601, %v629
    %v631 = vrot.slane %v630, 2
    %v632 = vadd.f32 %v630, %v631
    %v633 = vrot.slane %v632, 1
    %v634 = vadd.f32 %v632, %v633
    %v635 = vrot.slane %v602, 4
    %v636 = vadd.f32 %v602, %v635
    %v637 = vrot.slane %v636, 2
    %v638 = vadd.f32 %v636, %v637
    %v639 = vrot.slane %v638, 1
    %v640 = vadd.f32 %v638, %v639
    %v641 = vrot.slane %v603, 4
    %v642 = vadd.f32 %v603, %v641
    %v643 = vrot.slane %v642, 2
    %v644 = vadd.f32 %v642, %v643
    %v645 = vrot.slane %v644, 1
    %v646 = vadd.f32 %v644, %v645
    %v647 = vrot.slane %v604, 4
    %v648 = vadd.f32 %v604, %v647
    %v649 = vrot.slane %v648, 2
    %v650 = vadd.f32 %v648, %v649
    %v651 = vrot.slane %v650, 1
    %v652 = vadd.f32 %v650, %v651
    %654 = vrot.lane.b32.xlu0 %v554, 64
    %v655 = vpop.permute.xlu0 %654
    %v657 = vadd.f32 %v554, %v655
    %659 = vrot.lane.b32.xlu0 %v610, 64
    %v660 = vpop.permute.xlu0 %659
    %v662 = vadd.f32 %v610, %v660
    %v663 = vadd.f32 %v657, %v560
    %v664 = vadd.f32 %v662, %v616
    %666 = vrot.lane.b32.xlu0 %v560, 64
    %v667 = vpop.permute.xlu0 %666
    %v669 = vadd.f32 %v663, %v667
    %671 = vrot.lane.b32.xlu0 %v616, 64
    %v672 = vpop.permute.xlu0 %671
    %v674 = vadd.f32 %v664, %v672
    %v675 = vadd.f32 %v669, %v566
    %v676 = vadd.f32 %v674, %v622
    %678 = vrot.lane.b32.xlu0 %v566, 64
    %v679 = vpop.permute.xlu0 %678
    %v681 = vadd.f32 %v675, %v679
    %683 = vrot.lane.b32.xlu0 %v622, 64
    %v684 = vpop.permute.xlu0 %683
    %v686 = vadd.f32 %v676, %v684
    %v687 = vadd.f32 %v681, %v572
    %v688 = vadd.f32 %v686, %v628
    %690 = vrot.lane.b32.xlu0 %v572, 64
    %v691 = vpop.permute.xlu0 %690
    %v693 = vadd.f32 %v687, %v691
    %695 = vrot.lane.b32.xlu0 %v628, 64
    %v696 = vpop.permute.xlu0 %695
    %v698 = vadd.f32 %v688, %v696
    %v699 = vadd.f32 %v693, %v578
    %v700 = vadd.f32 %v698, %v634
    %702 = vrot.lane.b32.xlu0 %v578, 64
    %v703 = vpop.permute.xlu0 %702
    %v705 = vadd.f32 %v699, %v703
    %707 = vrot.lane.b32.xlu0 %v634, 64
    %v708 = vpop.permute.xlu0 %707
    %v710 = vadd.f32 %v700, %v708
    %v711 = vadd.f32 %v705, %v584
    %v712 = vadd.f32 %v710, %v640
    %714 = vrot.lane.b32.xlu0 %v584, 64
    %v715 = vpop.permute.xlu0 %714
    %v717 = vadd.f32 %v711, %v715
    %719 = vrot.lane.b32.xlu0 %v640, 64
    %v720 = vpop.permute.xlu0 %719
    %v722 = vadd.f32 %v712, %v720
    %v723 = vadd.f32 %v717, %v590
    %v724 = vadd.f32 %v722, %v646
    %726 = vrot.lane.b32.xlu0 %v590, 64
    %v727 = vpop.permute.xlu0 %726
    %v729 = vadd.f32 %v723, %v727
    %731 = vrot.lane.b32.xlu0 %v646, 64
    %v732 = vpop.permute.xlu0 %731
    %v734 = vadd.f32 %v724, %v732
    %v735 = vadd.f32 %v729, %v596
    %v736 = vadd.f32 %v734, %v652
    %738 = vrot.lane.b32.xlu0 %v596, 64
    %v739 = vpop.permute.xlu0 %738
    %v741 = vadd.f32 %v735, %v739
    %743 = vrot.lane.b32.xlu0 %v652, 64
    %v744 = vpop.permute.xlu0 %743
    %v746 = vadd.f32 %v736, %v744
    %v747 = vmul.f32 %v741, 0.03125
    %v748 = vmul.f32 %v746, 0.03125
    %v749 = vmul.f32 %v747, %v747
    %v750 = vsub.f32 %v748, %v749
    %v751 = vmax.f32 %v750, 0.0
    %v752 = vld [vmem:[#allocation4] sm:$0x1]
    %v753 = vadd.f32 %v751, 1e-05
    %v754 = vrsqrt.pop %v753
    %v755 = vmul.f32 %v754, %v753
    %v756 = vmul.f32 %v755, %v754
    %v757 = vmul.f32 0.5, %v756
    %v758 = vsub.f32 1.5, %v757
    %v759 = vmul.f32 %v754, %v758
    %vm760 = vweird.f32 %v753
    %vm761 = vweird.f32 %v754
    %vm762 = vmor %vm760, %vm761
    %v763 = vsel %vm762, %v754, %v759
    %v764 = vmul.f32 %v752, %v763
    %v765 = vld [vmem:[#allocation6] sm:$0x1]
    %v766 = vmul.f32 %v747, %v764
    %v767 = vsub.f32 %v765, %v766
    %v769 = vperm.slane %v764, 0
    %770 = vrot.lane.b32.xlu0 %v769, 64
    %v771 = vpop.permute.xlu0 %770
    %vm773 = vcmask 523264
    %v774 = vsel %vm773, %v764, %v771
    %v776 = vperm.slane %v767, 0
    %777 = vrot.lane.b32.xlu0 %v776, 64
    %v778 = vpop.permute.xlu0 %777
    %v780 = vsel %vm773, %v767, %v778
    %v781 = vperm.slane %v774, 0
    %v782 = vmul.f32 %v455, %v781
    %v783 = vmul.f32 %v468, %v781
    %v784 = vmul.f32 %v481, %v781
    %v785 = vmul.f32 %v494, %v781
    %v786 = vmul.f32 %v507, %v781
    %v787 = vmul.f32 %v520, %v781
    %v788 = vmul.f32 %v533, %v781
    %v789 = vmul.f32 %v546, %v781
    %v790 = vperm.slane %v780, 0
    %v791 = vadd.f32 %v782, %v790
    %v792 = vadd.f32 %v783, %v790
    %v793 = vadd.f32 %v784, %v790
    %v794 = vadd.f32 %v785, %v790
    %v795 = vadd.f32 %v786, %v790
    %v796 = vadd.f32 %v787, %v790
    %v797 = vadd.f32 %v788, %v790
    %v798 = vadd.f32 %v789, %v790
    %v799 = vmax.f32 %v791, 0.0
    %v800 = vmax.f32 %v792, 0.0
    %v801 = vmax.f32 %v793, 0.0
    %v802 = vmax.f32 %v794, 0.0
    %v803 = vmax.f32 %v795, 0.0
    %v804 = vmax.f32 %v796, 0.0
    %v805 = vmax.f32 %v797, 0.0
    %v806 = vmax.f32 %v798, 0.0
    %v807 = vpack.c.bf16 %v800, %v799
    %v808 = vpack.c.bf16 %v802, %v801
    %v809 = vpack.c.bf16 %v804, %v803
    %v810 = vpack.c.bf16 %v806, %v805
    %811 = vst [vmem:[%s4] sm:$0xff] %v807
    %812 = vst [vmem:[%s4 + $0x8] sm:$0xff] %v808
    %813 = vst [vmem:[%s4 + $0x10] sm:$0xff] %v809
    %814 = vst [vmem:[%s4 + $0x18] sm:$0xff] %v810
    // Predicated region
    $region30: #{generator_forward.5} parent=1 // pred_check
      _
    $region31: #{generator_forward.5} parent=1 // pred_check_branch
      %816 = sbr.rel (0) target = $region33
    $region32: #{generator_forward.5} parent=1 // pred_region
      _
    $region33: #{generator_forward.5} parent=1 // pred_fallthru
      _
    // Predicated region
    $region34: #{generator_forward.5} parent=1 // pred_check
      _
    $region35: #{generator_forward.5} parent=1 // pred_check_branch
      %818 = sbr.rel (0) target = $region37
    $region36: #{generator_forward.5} parent=1 // pred_region
      _
    $region37: #{generator_forward.5} parent=1 // pred_fallthru
      _
    %819 = vsyncpa [#allocation3], 1
    %820 = vsyncpa [#allocation5], 1

// kernel: generator_forward.6
$region0: #{generator_forward.6}
  #allocation0 [shape = 'u32[]', space=smem, size = 0x4, offset = 0x4, fixed_abs, tag = 'smem constant byte address 0x4 - core index']
  #allocation1 [shape = 'u32[72,128]{1,0:T(1,128)}', space=vmem, size = 0x9000, scoped, tag = 'internal scratch']
  %s0 = inlined_call_operand.vmem [shape: bf16[32,576], index: 0, kind: input, shape index: {}]
  %s1 = inlined_call_operand.hbm [shape: bf16[576,128], index: 1, kind: input, shape index: {}]
  %s2 = inlined_call_operand.hbm [shape: f32[1,32], index: 2, kind: input, shape index: {}]
  %s3 = inlined_call_operand.hbm [shape: f32[1,32], index: 3, kind: input, shape index: {}]
  %s4 = inlined_call_operand.vmem [shape: bf16[32,128], index: 4, kind: output, shape index: {}]
  %s5 = sld [smem:[#allocation0]]
  $region38: #{generator_forward.6} parent=0
    _
  %s7 = ssub.s32 1, %s5
  %s8 = scalar_select 0, %s7, %s5
  $region1: #{generator_forward.6} parent=0
    #allocation2 [shape = 'u8[147456]{0}', space=vmem, size = 0x24000, scoped, tag = 'input window, operand 1, single buffered']
    #allocation3 [shape = 's32[1]{0}', space=sflag, size = 0x4, scoped, tag = 'scoped memory for generator_forward.6']
    #allocation4 [shape = 'u8[512]{0}', space=vmem, size = 0x400, scoped, tag = 'input window, operand 2, single buffered']
    #allocation5 [shape = 's32[1]{0}', space=sflag, size = 0x4, scoped, tag = 'scoped memory for generator_forward.6']
    #allocation6 [shape = 'u8[512]{0}', space=vmem, size = 0x400, scoped, tag = 'input window, operand 3, single buffered']
    %9 = vsyncpa [#allocation3], 0
    %10 = vsyncpa [#allocation5], 0
    // Predicated region
    $region2: #{generator_forward.6} parent=1 // pred_check
      _
    $region3: #{generator_forward.6} parent=1 // pred_check_branch
      %12 = sbr.rel (0) target = $region5
    $region4: #{generator_forward.6} parent=1 // pred_region
      _
    $region5: #{generator_forward.6} parent=1 // pred_fallthru
      _
    // Predicated region
    $region6: #{generator_forward.6} parent=1 // pred_check
      _
    $region7: #{generator_forward.6} parent=1 // pred_check_branch
      %14 = sbr.rel (0) target = $region9
    $region8: #{generator_forward.6} parent=1 // pred_region
      %16 = vsyncadd [#allocation3], 0
      %s17 = sshll.u32 %s1, 4
      %s18 = int_to_ptr.hbm [resolvable:$true] %s17
      %s19 = sshll.u32 [#allocation2], 4
      %s20 = int_to_ptr.vmem [resolvable:$true] %s19
      %25 = dma.hbm_to_vmem [thread:$0]  %s18, 4608, %s20, [#allocation3], 64, 64, 4
    $region9: #{generator_forward.6} parent=1 // pred_fallthru
      _
    // Predicated region
    $region10: #{generator_forward.6} parent=1 // pred_check
      _
    $region11: #{generator_forward.6} parent=1 // pred_check_branch
      %27 = sbr.rel (0) target = $region13
    $region12: #{generator_forward.6} parent=1 // pred_region
      %29 = vsyncadd [#allocation5], 0
      %s31 = sshll.u32 %s2, 4
      %s32 = int_to_ptr.hbm [resolvable:$true] %s31
      %s33 = sshll.u32 [#allocation4], 4
      %s34 = int_to_ptr.vmem [resolvable:$true] %s33
      %36 = dma.hbm_to_vmem [thread:$0]  %s32, 16, %s34, [#allocation5]
    $region13: #{generator_forward.6} parent=1 // pred_fallthru
      _
    // Predicated region
    $region14: #{generator_forward.6} parent=1 // pred_check
      _
    $region15: #{generator_forward.6} parent=1 // pred_check_branch
      %38 = sbr.rel (0) target = $region17
    $region16: #{generator_forward.6} parent=1 // pred_region
      %40 = vsyncadd [#allocation5], 0
      %s42 = sshll.u32 %s3, 4
      %s43 = int_to_ptr.hbm [resolvable:$true] %s42
      %s44 = sshll.u32 [#allocation6], 4
      %s45 = int_to_ptr.vmem [resolvable:$true] %s44
      %47 = dma.hbm_to_vmem [thread:$0]  %s43, 16, %s45, [#allocation5]
    $region17: #{generator_forward.6} parent=1 // pred_fallthru
      _
    // Predicated region
    $region18: #{generator_forward.6} parent=1 // pred_check
      _
    $region19: #{generator_forward.6} parent=1 // pred_check_branch
      %49 = sbr.rel (0) target = $region21
    $region20: #{generator_forward.6} parent=1 // pred_region
      %51 = dma.done [#allocation3], 4608
    $region21: #{generator_forward.6} parent=1 // pred_fallthru
      _
    // Predicated region
    $region22: #{generator_forward.6} parent=1 // pred_check
      _
    $region23: #{generator_forward.6} parent=1 // pred_check_branch
      %53 = sbr.rel (0) target = $region25
    $region24: #{generator_forward.6} parent=1 // pred_region
      %55 = dma.done [#allocation5], 16
    $region25: #{generator_forward.6} parent=1 // pred_fallthru
      _
    // Predicated region
    $region26: #{generator_forward.6} parent=1 // pred_check
      _
    $region27: #{generator_forward.6} parent=1 // pred_check_branch
      %57 = sbr.rel (0) target = $region29
    $region28: #{generator_forward.6} parent=1 // pred_region
      %59 = dma.done [#allocation5], 16
    $region29: #{generator_forward.6} parent=1 // pred_fallthru
      _
    %v61 = vld [vmem:[%s0] sm:$0xff]
    %v62 = vld [vmem:[%s0 + $0x8] sm:$0xff]
    %v63 = vld [vmem:[%s0 + $0x10] sm:$0xf]
    %v64 = vld [vmem:[%s0 + $0x14] sm:$0xff]
    %v65 = vld [vmem:[%s0 + $0x1c] sm:$0xff]
    %v66 = vld [vmem:[%s0 + $0x24] sm:$0xf]
    %v67 = vld [vmem:[%s0 + $0x28] sm:$0xff]
    %v68 = vld [vmem:[%s0 + $0x30] sm:$0xff]
    %v69 = vld [vmem:[%s0 + $0x38] sm:$0xf]
    %v70 = vld [vmem:[%s0 + $0x3c] sm:$0xff]
    %v71 = vld [vmem:[%s0 + $0x44] sm:$0xff]
    %v72 = vld [vmem:[%s0 + $0x4c] sm:$0xf]
    %v73 = vld [vmem:[#allocation2] sm:$0xf]
    %v74 = vld [vmem:[#allocation2 + $0x4] sm:$0xf]
    %v75 = vld [vmem:[#allocation2 + $0x8] sm:$0xf]
    %v76 = vld [vmem:[#allocation2 + $0xc] sm:$0xf]
    %v77 = vld [vmem:[#allocation2 + $0x10] sm:$0xf]
    %v78 = vld [vmem:[#allocation2 + $0x14] sm:$0xf]
    %v79 = vld [vmem:[#allocation2 + $0x18] sm:$0xf]
    %v80 = vld [vmem:[#allocation2 + $0x1c] sm:$0xf]
    %v81 = vld [vmem:[#allocation2 + $0x20] sm:$0xf]
    %v82 = vld [vmem:[#allocation2 + $0x24] sm:$0xf]
    %v83 = vld [vmem:[#allocation2 + $0x28] sm:$0xf]
    %v84 = vld [vmem:[#allocation2 + $0x2c] sm:$0xf]
    %v85 = vld [vmem:[#allocation2 + $0x30] sm:$0xf]
    %v86 = vld [vmem:[#allocation2 + $0x34] sm:$0xf]
    %v87 = vld [vmem:[#allocation2 + $0x38] sm:$0xf]
    %v88 = vld [vmem:[#allocation2 + $0x3c] sm:$0xf]
    %v89 = vld [vmem:[#allocation2 + $0x40] sm:$0xf]
    %v90 = vld [vmem:[#allocation2 + $0x44] sm:$0xf]
    %v91 = vld [vmem:[#allocation2 + $0x48] sm:$0xf]
    %v92 = vld [vmem:[#allocation2 + $0x4c] sm:$0xf]
    %v93 = vld [vmem:[#allocation2 + $0x50] sm:$0xf]
    %v94 = vld [vmem:[#allocation2 + $0x54] sm:$0xf]
    %v95 = vld [vmem:[#allocation2 + $0x58] sm:$0xf]
    %v96 = vld [vmem:[#allocation2 + $0x5c] sm:$0xf]
    %v97 = vld [vmem:[#allocation2 + $0x60] sm:$0xf]
    %v98 = vld [vmem:[#allocation2 + $0x64] sm:$0xf]
    %v99 = vld [vmem:[#allocation2 + $0x68] sm:$0xf]
    %v100 = vld [vmem:[#allocation2 + $0x6c] sm:$0xf]
    %v101 = vld [vmem:[#allocation2 + $0x70] sm:$0xf]
    %v102 = vld [vmem:[#allocation2 + $0x74] sm:$0xf]
    %v103 = vld [vmem:[#allocation2 + $0x78] sm:$0xf]
    %v104 = vld [vmem:[#allocation2 + $0x7c] sm:$0xf]
    %v105 = vld [vmem:[#allocation2 + $0x80] sm:$0xf]
    %v106 = vld [vmem:[#allocation2 + $0x84] sm:$0xf]
    %v107 = vld [vmem:[#allocation2 + $0x88] sm:$0xf]
    %v108 = vld [vmem:[#allocation2 + $0x8c] sm:$0xf]
    %v109 = vld [vmem:[#allocation2 + $0x90] sm:$0xf]
    %v110 = vld [vmem:[#allocation2 + $0x94] sm:$0xf]
    %v111 = vld [vmem:[#allocation2 + $0x98] sm:$0xf]
    %v112 = vld [vmem:[#allocation2 + $0x9c] sm:$0xf]
    %v113 = vld [vmem:[#allocation2 + $0xa0] sm:$0xf]
    %v114 = vld [vmem:[#allocation2 + $0xa4] sm:$0xf]
    %v115 = vld [vmem:[#allocation2 + $0xa8] sm:$0xf]
    %v116 = vld [vmem:[#allocation2 + $0xac] sm:$0xf]
    %v117 = vld [vmem:[#allocation2 + $0xb0] sm:$0xf]
    %v118 = vld [vmem:[#allocation2 + $0xb4] sm:$0xf]
    %v119 = vld [vmem:[#allocation2 + $0xb8] sm:$0xf]
    %v120 = vld [vmem:[#allocation2 + $0xbc] sm:$0xf]
    %v121 = vld [vmem:[#allocation2 + $0xc0] sm:$0xf]
    %v122 = vld [vmem:[#allocation2 + $0xc4] sm:$0xf]
    %v123 = vld [vmem:[#allocation2 + $0xc8] sm:$0xf]
    %v124 = vld [vmem:[#allocation2 + $0xcc] sm:$0xf]
    %v125 = vld [vmem:[#allocation2 + $0xd0] sm:$0xf]
    %v126 = vld [vmem:[#allocation2 + $0xd4] sm:$0xf]
    %v127 = vld [vmem:[#allocation2 + $0xd8] sm:$0xf]
    %v128 = vld [vmem:[#allocation2 + $0xdc] sm:$0xf]
    %v129 = vld [vmem:[#allocation2 + $0xe0] sm:$0xf]
    %v130 = vld [vmem:[#allocation2 + $0xe4] sm:$0xf]
    %v131 = vld [vmem:[#allocation2 + $0xe8] sm:$0xf]
    %v132 = vld [vmem:[#allocation2 + $0xec] sm:$0xf]
    %v133 = vld [vmem:[#allocation2 + $0xf0] sm:$0xf]
    %v134 = vld [vmem:[#allocation2 + $0xf4] sm:$0xf]
    %v135 = vld [vmem:[#allocation2 + $0xf8] sm:$0xf]
    %v136 = vld [vmem:[#allocation2 + $0xfc] sm:$0xf]
    %v137 = vld [vmem:[#allocation2 + $0x100] sm:$0xf]
    %v138 = vld [vmem:[#allocation2 + $0x104] sm:$0xf]
    %v139 = vld [vmem:[#allocation2 + $0x108] sm:$0xf]
    %v140 = vld [vmem:[#allocation2 + $0x10c] sm:$0xf]
    %v141 = vld [vmem:[#allocation2 + $0x110] sm:$0xf]
    %v142 = vld [vmem:[#allocation2 + $0x114] sm:$0xf]
    %v143 = vld [vmem:[#allocation2 + $0x118] sm:$0xf]
    %v144 = vld [vmem:[#allocation2 + $0x11c] sm:$0xf]
    %v157 = vunpack.c.l.b16 %v61
    %v158 = vunpack.c.h.b16 %v61
    %v159 = vunpack.c.l.b16 %v62
    %v160 = vunpack.c.h.b16 %v62
    %v161 = vunpack.c.l.b16 %v63
    %v162 = vunpack.c.l.b16 %v64
    %v163 = vunpack.c.h.b16 %v64
    %v164 = vunpack.c.l.b16 %v65
    %v165 = vunpack.c.h.b16 %v65
    %v166 = vunpack.c.l.b16 %v66
    %v167 = vunpack.c.l.b16 %v67
    %v168 = vunpack.c.h.b16 %v67
    %v169 = vunpack.c.l.b16 %v68
    %v170 = vunpack.c.h.b16 %v68
    %v171 = vunpack.c.l.b16 %v69
    %v172 = vunpack.c.l.b16 %v70
    %v173 = vunpack.c.h.b16 %v70
    %v174 = vunpack.c.l.b16 %v71
    %v175 = vunpack.c.h.b16 %v71
    %v176 = vunpack.c.l.b16 %v72
    %v177 = vpack.c.b16 %v162, %v157
    %v178 = vpack.c.b16 %v163, %v158
    %v179 = vpack.c.b16 %v164, %v159
    %v180 = vpack.c.b16 %v165, %v160
    %v181 = vpack.c.b16 %v166, %v161
    %v182 = vpack.c.b16 %v172, %v167
    %v183 = vpack.c.b16 %v173, %v168
    %v184 = vpack.c.b16 %v174, %v169
    %v185 = vpack.c.b16 %v175, %v170
    %v186 = vpack.c.b16 %v176, %v171
    %v267 = vunpack.c.l.b16 %v73
    %v268 = vunpack.c.l.b16 %v74
    %v269 = vunpack.c.l.b16 %v75
    %v270 = vunpack.c.l.b16 %v76
    %v271 = vunpack.c.l.b16 %v77
    %v272 = vunpack.c.l.b16 %v78
    %v273 = vunpack.c.l.b16 %v79
    %v274 = vunpack.c.l.b16 %v80
    %v275 = vunpack.c.l.b16 %v81
    %v276 = vunpack.c.l.b16 %v82
    %v277 = vunpack.c.l.b16 %v83
    %v278 = vunpack.c.l.b16 %v84
    %v279 = vunpack.c.l.b16 %v85
    %v280 = vunpack.c.l.b16 %v86
    %v281 = vunpack.c.l.b16 %v87
    %v282 = vunpack.c.l.b16 %v88
    %v283 = vunpack.c.l.b16 %v89
    %v284 = vunpack.c.l.b16 %v90
    %v285 = vunpack.c.l.b16 %v91
    %v286 = vunpack.c.l.b16 %v92
    %v287 = vunpack.c.l.b16 %v93
    %v288 = vunpack.c.l.b16 %v94
    %v289 = vunpack.c.l.b16 %v95
    %v290 = vunpack.c.l.b16 %v96
    %v291 = vunpack.c.l.b16 %v97
    %v292 = vunpack.c.l.b16 %v98
    %v293 = vunpack.c.l.b16 %v99
    %v294 = vunpack.c.l.b16 %v100
    %v295 = vunpack.c.l.b16 %v101
    %v296 = vunpack.c.l.b16 %v102
    %v297 = vunpack.c.l.b16 %v103
    %v298 = vunpack.c.l.b16 %v104
    %v299 = vunpack.c.l.b16 %v105
    %v300 = vunpack.c.l.b16 %v106
    %v301 = vunpack.c.l.b16 %v107
    %v302 = vunpack.c.l.b16 %v108
    %v303 = vunpack.c.l.b16 %v109
    %v304 = vunpack.c.l.b16 %v110
    %v305 = vunpack.c.l.b16 %v111
    %v306 = vunpack.c.l.b16 %v112
    %v307 = vunpack.c.l.b16 %v113
    %v308 = vunpack.c.l.b16 %v114
    %v309 = vunpack.c.l.b16 %v115
    %v310 = vunpack.c.l.b16 %v116
    %v311 = vunpack.c.l.b16 %v117
    %v312 = vunpack.c.l.b16 %v118
    %v313 = vunpack.c.l.b16 %v119
    %v314 = vunpack.c.l.b16 %v120
    %v315 = vunpack.c.l.b16 %v121
    %v316 = vunpack.c.l.b16 %v122
    %v317 = vunpack.c.l.b16 %v123
    %v318 = vunpack.c.l.b16 %v124
    %v319 = vunpack.c.l.b16 %v125
    %v320 = vunpack.c.l.b16 %v126
    %v321 = vunpack.c.l.b16 %v127
    %v322 = vunpack.c.l.b16 %v128
    %v323 = vunpack.c.l.b16 %v129
    %v324 = vunpack.c.l.b16 %v130
    %v325 = vunpack.c.l.b16 %v131
    %v326 = vunpack.c.l.b16 %v132
    %v327 = vunpack.c.l.b16 %v133
    %v328 = vunpack.c.l.b16 %v134
    %v329 = vunpack.c.l.b16 %v135
    %v330 = vunpack.c.l.b16 %v136
    %v331 = vunpack.c.l.b16 %v137
    %v332 = vunpack.c.l.b16 %v138
    %v333 = vunpack.c.l.b16 %v139
    %v334 = vunpack.c.l.b16 %v140
    %v335 = vunpack.c.l.b16 %v141
    %v336 = vunpack.c.l.b16 %v142
    %v337 = vunpack.c.l.b16 %v143
    %v338 = vunpack.c.l.b16 %v144
    %v339 = vpack.c.b16 %v268, %v267
    %v340 = vpack.c.b16 %v270, %v269
    %v341 = vpack.c.b16 %v272, %v271
    %v342 = vpack.c.b16 %v274, %v273
    %v343 = vpack.c.b16 %v276, %v275
    %v344 = vpack.c.b16 %v278, %v277
    %v345 = vpack.c.b16 %v280, %v279
    %v346 = vpack.c.b16 %v282, %v281
    %v347 = vpack.c.b16 %v284, %v283
    %v348 = vpack.c.b16 %v286, %v285
    %v349 = vpack.c.b16 %v288, %v287
    %v350 = vpack.c.b16 %v290, %v289
    %v351 = vpack.c.b16 %v292, %v291
    %v352 = vpack.c.b16 %v294, %v293
    %v353 = vpack.c.b16 %v296, %v295
    %v354 = vpack.c.b16 %v298, %v297
    %v355 = vpack.c.b16 %v300, %v299
    %v356 = vpack.c.b16 %v302, %v301
    %v357 = vpack.c.b16 %v304, %v303
    %v358 = vpack.c.b16 %v306, %v305
    %v359 = vpack.c.b16 %v308, %v307
    %v360 = vpack.c.b16 %v310, %v309
    %v361 = vpack.c.b16 %v312, %v311
    %v362 = vpack.c.b16 %v314, %v313
    %v363 = vpack.c.b16 %v316, %v315
    %v364 = vpack.c.b16 %v318, %v317
    %v365 = vpack.c.b16 %v320, %v319
    %v366 = vpack.c.b16 %v322, %v321
    %v367 = vpack.c.b16 %v324, %v323
    %v368 = vpack.c.b16 %v326, %v325
    %v369 = vpack.c.b16 %v328, %v327
    %v370 = vpack.c.b16 %v330, %v329
    %v371 = vpack.c.b16 %v332, %v331
    %v372 = vpack.c.b16 %v334, %v333
    %v373 = vpack.c.b16 %v336, %v335
    %v374 = vpack.c.b16 %v338, %v337
    %vm411 = vcmask 523264
    %v413 = vsel %vm411, %v181, 0
    %v416 = vsel %vm411, %v186, 0
    %418 = vmatpush.bf16.msra.mxu0 %v346
    %419 = vmatpush.bf16.msra.mxu0 %v345
    %420 = vmatpush.bf16.msra.mxu0 %v344
    %421 = vmatpush.bf16.msra.mxu0 %v343
    %422 = vmatpush.bf16.msra.mxu0 %v342
    %423 = vmatpush.bf16.msra.mxu0 %v341
    %424 = vmatpush.bf16.msra.mxu0 %v340
    %425 = vmatpush.bf16.msra.mxu0 %v339
    %426 = vmatmul.bf16.gmra.mxu0 %v177
    %v427 = vpop.f32.mrf.mxu0
    %v428 = vadd.f32 0.0, %v427
    %v429 = vpop.f32.mrf.mxu0
    %v430 = vadd.f32 0.0, %v429
    %431 = vmatmul.bf16.gmra.mxu0 %v182
    %v432 = vpop.f32.mrf.mxu0
    %v433 = vadd.f32 0.0, %v432
    %v434 = vpop.f32.mrf.mxu0
    %v435 = vadd.f32 0.0, %v434
    %436 = vdwg.mxu0
    %437 = vmatpush.bf16.msra.mxu0 %v354
    %438 = vmatpush.bf16.msra.mxu0 %v353
    %439 = vmatpush.bf16.msra.mxu0 %v352
    %440 = vmatpush.bf16.msra.mxu0 %v351
    %441 = vmatpush.bf16.msra.mxu0 %v350
    %442 = vmatpush.bf16.msra.mxu0 %v349
    %443 = vmatpush.bf16.msra.mxu0 %v348
    %444 = vmatpush.bf16.msra.mxu0 %v347
    %445 = vmatmul.bf16.gmra.mxu0 %v178
    %v446 = vpop.f32.mrf.mxu0
    %v447 = vadd.f32 %v428, %v446
    %v448 = vpop.f32.mrf.mxu0
    %v449 = vadd.f32 %v430, %v448
    %450 = vmatmul.bf16.gmra.mxu0 %v183
    %v451 = vpop.f32.mrf.mxu0
    %v452 = vadd.f32 %v433, %v451
    %v453 = vpop.f32.mrf.mxu0
    %v454 = vadd.f32 %v435, %v453
    %455 = vdwg.mxu0
    %456 = vmatpush.bf16.msra.mxu0 %v362
    %457 = vmatpush.bf16.msra.mxu0 %v361
    %458 = vmatpush.bf16.msra.mxu0 %v360
    %459 = vmatpush.bf16.msra.mxu0 %v359
    %460 = vmatpush.bf16.msra.mxu0 %v358
    %461 = vmatpush.bf16.msra.mxu0 %v357
    %462 = vmatpush.bf16.msra.mxu0 %v356
    %463 = vmatpush.bf16.msra.mxu0 %v355
    %464 = vmatmul.bf16.gmra.mxu0 %v179
    %v465 = vpop.f32.mrf.mxu0
    %v466 = vadd.f32 %v447, %v465
    %v467 = vpop.f32.mrf.mxu0
    %v468 = vadd.f32 %v449, %v467
    %469 = vmatmul.bf16.gmra.mxu0 %v184
    %v470 = vpop.f32.mrf.mxu0
    %v471 = vadd.f32 %v452, %v470
    %v472 = vpop.f32.mrf.mxu0
    %v473 = vadd.f32 %v454, %v472
    %474 = vdwg.mxu0
    %475 = vmatpush.bf16.msra.mxu0 %v370
    %476 = vmatpush.bf16.msra.mxu0 %v369
    %477 = vmatpush.bf16.msra.mxu0 %v368
    %478 = vmatpush.bf16.msra.mxu0 %v367
    %479 = vmatpush.bf16.msra.mxu0 %v366
    %480 = vmatpush.bf16.msra.mxu0 %v365
    %481 = vmatpush.bf16.msra.mxu0 %v364
    %482 = vmatpush.bf16.msra.mxu0 %v363
    %483 = vmatmul.bf16.gmra.mxu0 %v180
    %v484 = vpop.f32.mrf.mxu0
    %v485 = vadd.f32 %v466, %v484
    %v486 = vpop.f32.mrf.mxu0
    %v487 = vadd.f32 %v468, %v486
    %488 = vmatmul.bf16.gmra.mxu0 %v185
    %v489 = vpop.f32.mrf.mxu0
    %v490 = vadd.f32 %v471, %v489
    %v491 = vpop.f32.mrf.mxu0
    %v492 = vadd.f32 %v473, %v491
    %493 = vdwg.mxu0
    %494 = vmatpush.bf16.msra.mxu0 0
    %495 = vmatpush.bf16.msra.mxu0 0
    %496 = vmatpush.bf16.msra.mxu0 0
    %497 = vmatpush.bf16.msra.mxu0 0
    %498 = vmatpush.bf16.msra.mxu0 %v374
    %499 = vmatpush.bf16.msra.mxu0 %v373
    %500 = vmatpush.bf16.msra.mxu0 %v372
    %501 = vmatpush.bf16.msra.mxu0 %v371
    %502 = vmatmul.bf16.gmra.mxu0 %v413
    %v503 = vpop.f32.mrf.mxu0
    %v504 = vadd.f32 %v485, %v503
    %v505 = vpop.f32.mrf.mxu0
    %v506 = vadd.f32 %v487, %v505
    %507 = vmatmul.bf16.gmra.mxu0 %v416
    %v508 = vpop.f32.mrf.mxu0
    %v509 = vadd.f32 %v490, %v508
    %v510 = vpop.f32.mrf.mxu0
    %v511 = vadd.f32 %v492, %v510
    %512 = vdwg.mxu0
    %v513 = vadd.f32 %v504, %v506
    %v514 = vadd.f32 %v513, %v509
    %v515 = vadd.f32 %v514, %v511
    %v516 = vrot.slane %v515, 4
    %v517 = vadd.f32 %v515, %v516
    %v518 = vrot.slane %v517, 2
    %v519 = vadd.f32 %v517, %v518
    %v520 = vrot.slane %v519, 1
    %v521 = vadd.f32 %v519, %v520
    %v522 = vmul.f32 %v504, %v504
    %v523 = vmul.f32 %v506, %v506
    %v524 = vmul.f32 %v509, %v509
    %v525 = vmul.f32 %v511, %v511
    %v526 = vadd.f32 %v522, %v523
    %v527 = vadd.f32 %v526, %v524
    %v528 = vadd.f32 %v527, %v525
    %v529 = vrot.slane %v528, 4
    %v530 = vadd.f32 %v528, %v529
    %v531 = vrot.slane %v530, 2
    %v532 = vadd.f32 %v530, %v531
    %v533 = vrot.slane %v532, 1
    %v534 = vadd.f32 %v532, %v533
    %536 = vrot.lane.b32.xlu0 %v521, 96
    %v537 = vpop.permute.xlu0 %536
    %v539 = vadd.f32 %v521, %v537
    %541 = vrot.lane.b32.xlu0 %v534, 96
    %v542 = vpop.permute.xlu0 %541
    %v544 = vadd.f32 %v534, %v542
    %545 = vrot.lane.b32.xlu0 %v521, 64
    %v546 = vpop.permute.xlu0 %545
    %v548 = vadd.f32 %v539, %v546
    %549 = vrot.lane.b32.xlu0 %v534, 64
    %v550 = vpop.permute.xlu0 %549
    %v552 = vadd.f32 %v544, %v550
    %553 = vrot.lane.b32.xlu0 %v521, 32
    %v554 = vpop.permute.xlu0 %553
    %v556 = vadd.f32 %v548, %v554
    %557 = vrot.lane.b32.xlu0 %v534, 32
    %v558 = vpop.permute.xlu0 %557
    %v560 = vadd.f32 %v552, %v558
    %v561 = vmul.f32 %v556, 0.0078125
    %v562 = vmul.f32 %v560, 0.0078125
    %v563 = vmul.f32 %v561, %v561
    %v564 = vsub.f32 %v562, %v563
    %v565 = vmax.f32 %v564, 0.0
    %v566 = vld [vmem:[#allocation4] sm:$0x1]
    %v567 = vadd.f32 %v565, 1e-05
    %v568 = vrsqrt.pop %v567
    %v569 = vmul.f32 %v568, %v567
    %v570 = vmul.f32 %v569, %v568
    %v571 = vmul.f32 0.5, %v570
    %v572 = vsub.f32 1.5, %v571
    %v573 = vmul.f32 %v568, %v572
    %vm574 = vweird.f32 %v567
    %vm575 = vweird.f32 %v568
    %vm576 = vmor %vm574, %vm575
    %v577 = vsel %vm576, %v568, %v573
    %v578 = vmul.f32 %v566, %v577
    %v579 = vld [vmem:[#allocation6] sm:$0x1]
    %v580 = vmul.f32 %v561, %v578
    %v581 = vsub.f32 %v579, %v580
    %v583 = vperm.slane %v578, 0
    %584 = vrot.lane.b32.xlu0 %v583, 32
    %v585 = vpop.permute.xlu0 %584
    %587 = vrot.lane.b32.xlu0 %v583, 64
    %v588 = vpop.permute.xlu0 %587
    %590 = vrot.lane.b32.xlu0 %v583, 96
    %v591 = vpop.permute.xlu0 %590
    %vm593 = vcmask 261120
    %v594 = vsel %vm593, %v578, %v585
    %v595 = vsel %vm411, %v594, %v588
    %vm596 = vcmask 785408
    %v597 = vsel %vm596, %v595, %v591
    %v599 = vperm.slane %v581, 0
    %600 = vrot.lane.b32.xlu0 %v599, 32
    %v601 = vpop.permute.xlu0 %600
    %603 = vrot.lane.b32.xlu0 %v599, 64
    %v604 = vpop.permute.xlu0 %603
    %606 = vrot.lane.b32.xlu0 %v599, 96
    %v607 = vpop.permute.xlu0 %606
    %v609 = vsel %vm593, %v581, %v601
    %v610 = vsel %vm411, %v609, %v604
    %v611 = vsel %vm596, %v610, %v607
    %v612 = vperm.slane %v597, 0
    %v613 = vmul.f32 %v504, %v612
    %v614 = vmul.f32 %v506, %v612
    %v615 = vmul.f32 %v509, %v612
    %v616 = vmul.f32 %v511, %v612
    %v617 = vperm.slane %v611, 0
    %v618 = vadd.f32 %v613, %v617
    %v619 = vadd.f32 %v614, %v617
    %v620 = vadd.f32 %v615, %v617
    %v621 = vadd.f32 %v616, %v617
    %v622 = vmax.f32 %v618, 0.0
    %v623 = vmax.f32 %v619, 0.0
    %v624 = vmax.f32 %v620, 0.0
    %v625 = vmax.f32 %v621, 0.0
    %v626 = vpack.c.bf16 %v622, %v622
    %v627 = vpack.c.bf16 %v623, %v623
    %v628 = vpack.c.bf16 %v624, %v624
    %v629 = vpack.c.bf16 %v625, %v625
    %630 = vst [vmem:[%s4] sm:$0xf] %v626
    %631 = vst [vmem:[%s4 + $0x4] sm:$0xf] %v627
    %632 = vst [vmem:[%s4 + $0x8] sm:$0xf] %v628
    %633 = vst [vmem:[%s4 + $0xc] sm:$0xf] %v629
    // Predicated region
    $region30: #{generator_forward.6} parent=1 // pred_check
      _
    $region31: #{generator_forward.6} parent=1 // pred_check_branch
      %635 = sbr.rel (0) target = $region33
    $region32: #{generator_forward.6} parent=1 // pred_region
      _
    $region33: #{generator_forward.6} parent=1 // pred_fallthru
      _
    // Predicated region
    $region34: #{generator_forward.6} parent=1 // pred_check
      _
    $region35: #{generator_forward.6} parent=1 // pred_check_branch
      %637 = sbr.rel (0) target = $region37
    $region36: #{generator_forward.6} parent=1 // pred_region
      _
    $region37: #{generator_forward.6} parent=1 // pred_fallthru
      _
    %638 = vsyncpa [#allocation3], 1
    %639 = vsyncpa [#allocation5], 1

// kernel: generator_forward.7
$region0: #{generator_forward.7}
  #allocation0 [shape = 'u32[]', space=smem, size = 0x4, offset = 0x4, fixed_abs, tag = 'smem constant byte address 0x4 - core index']
  #allocation1 [shape = 'u32[72,128]{1,0:T(1,128)}', space=vmem, size = 0x9000, scoped, tag = 'internal scratch']
  %s0 = inlined_call_operand.vmem [shape: bf16[128,288], index: 0, kind: input, shape index: {}]
  %s1 = inlined_call_operand.hbm [shape: bf16[288,128], index: 1, kind: input, shape index: {}]
  %s2 = inlined_call_operand.hbm [shape: f32[1,32], index: 2, kind: input, shape index: {}]
  %s3 = inlined_call_operand.hbm [shape: f32[1,32], index: 3, kind: input, shape index: {}]
  %s4 = inlined_call_operand.vmem [shape: bf16[128,128], index: 4, kind: output, shape index: {}]
  %s5 = sld [smem:[#allocation0]]
  $region38: #{generator_forward.7} parent=0
    _
  %s7 = ssub.s32 1, %s5
  %s8 = scalar_select 0, %s7, %s5
  $region1: #{generator_forward.7} parent=0
    #allocation2 [shape = 'u8[73728]{0}', space=vmem, size = 0x12000, scoped, tag = 'input window, operand 1, single buffered']
    #allocation3 [shape = 's32[1]{0}', space=sflag, size = 0x4, scoped, tag = 'scoped memory for generator_forward.7']
    #allocation4 [shape = 'u8[512]{0}', space=vmem, size = 0x400, scoped, tag = 'input window, operand 2, single buffered']
    #allocation5 [shape = 's32[1]{0}', space=sflag, size = 0x4, scoped, tag = 'scoped memory for generator_forward.7']
    #allocation6 [shape = 'u8[512]{0}', space=vmem, size = 0x400, scoped, tag = 'input window, operand 3, single buffered']
    %9 = vsyncpa [#allocation3], 0
    %10 = vsyncpa [#allocation5], 0
    // Predicated region
    $region2: #{generator_forward.7} parent=1 // pred_check
      _
    $region3: #{generator_forward.7} parent=1 // pred_check_branch
      %12 = sbr.rel (0) target = $region5
    $region4: #{generator_forward.7} parent=1 // pred_region
      _
    $region5: #{generator_forward.7} parent=1 // pred_fallthru
      _
    // Predicated region
    $region6: #{generator_forward.7} parent=1 // pred_check
      _
    $region7: #{generator_forward.7} parent=1 // pred_check_branch
      %14 = sbr.rel (0) target = $region9
    $region8: #{generator_forward.7} parent=1 // pred_region
      %16 = vsyncadd [#allocation3], 0
      %s17 = sshll.u32 %s1, 4
      %s18 = int_to_ptr.hbm [resolvable:$true] %s17
      %s19 = sshll.u32 [#allocation2], 4
      %s20 = int_to_ptr.vmem [resolvable:$true] %s19
      %25 = dma.hbm_to_vmem [thread:$0]  %s18, 2304, %s20, [#allocation3], 64, 64, 4
    $region9: #{generator_forward.7} parent=1 // pred_fallthru
      _
    // Predicated region
    $region10: #{generator_forward.7} parent=1 // pred_check
      _
    $region11: #{generator_forward.7} parent=1 // pred_check_branch
      %27 = sbr.rel (0) target = $region13
    $region12: #{generator_forward.7} parent=1 // pred_region
      %29 = vsyncadd [#allocation5], 0
      %s31 = sshll.u32 %s2, 4
      %s32 = int_to_ptr.hbm [resolvable:$true] %s31
      %s33 = sshll.u32 [#allocation4], 4
      %s34 = int_to_ptr.vmem [resolvable:$true] %s33
      %36 = dma.hbm_to_vmem [thread:$0]  %s32, 16, %s34, [#allocation5]
    $region13: #{generator_forward.7} parent=1 // pred_fallthru
      _
    // Predicated region
    $region14: #{generator_forward.7} parent=1 // pred_check
      _
    $region15: #{generator_forward.7} parent=1 // pred_check_branch
      %38 = sbr.rel (0) target = $region17
    $region16: #{generator_forward.7} parent=1 // pred_region
      %40 = vsyncadd [#allocation5], 0
      %s42 = sshll.u32 %s3, 4
      %s43 = int_to_ptr.hbm [resolvable:$true] %s42
      %s44 = sshll.u32 [#allocation6], 4
      %s45 = int_to_ptr.vmem [resolvable:$true] %s44
      %47 = dma.hbm_to_vmem [thread:$0]  %s43, 16, %s45, [#allocation5]
    $region17: #{generator_forward.7} parent=1 // pred_fallthru
      _
    // Predicated region
    $region18: #{generator_forward.7} parent=1 // pred_check
      _
    $region19: #{generator_forward.7} parent=1 // pred_check_branch
      %49 = sbr.rel (0) target = $region21
    $region20: #{generator_forward.7} parent=1 // pred_region
      %51 = dma.done [#allocation3], 2304
    $region21: #{generator_forward.7} parent=1 // pred_fallthru
      _
    // Predicated region
    $region22: #{generator_forward.7} parent=1 // pred_check
      _
    $region23: #{generator_forward.7} parent=1 // pred_check_branch
      %53 = sbr.rel (0) target = $region25
    $region24: #{generator_forward.7} parent=1 // pred_region
      %55 = dma.done [#allocation5], 16
    $region25: #{generator_forward.7} parent=1 // pred_fallthru
      _
    // Predicated region
    $region26: #{generator_forward.7} parent=1 // pred_check
      _
    $region27: #{generator_forward.7} parent=1 // pred_check_branch
      %57 = sbr.rel (0) target = $region29
    $region28: #{generator_forward.7} parent=1 // pred_region
      %59 = dma.done [#allocation5], 16
    $region29: #{generator_forward.7} parent=1 // pred_fallthru
      _
    %v61 = vld [vmem:[%s0] sm:$0xff]
    %v62 = vld [vmem:[%s0 + $0x8] sm:$0xf]
    %v63 = vld [vmem:[%s0 + $0xc] sm:$0xff]
    %v64 = vld [vmem:[%s0 + $0x14] sm:$0xf]
    %v65 = vld [vmem:[%s0 + $0x18] sm:$0xff]
    %v66 = vld [vmem:[%s0 + $0x20] sm:$0xf]
    %v67 = vld [vmem:[%s0 + $0x24] sm:$0xff]
    %v68 = vld [vmem:[%s0 + $0x2c] sm:$0xf]
    %v69 = vld [vmem:[%s0 + $0x30] sm:$0xff]
    %v70 = vld [vmem:[%s0 + $0x38] sm:$0xf]
    %v71 = vld [vmem:[%s0 + $0x3c] sm:$0xff]
    %v72 = vld [vmem:[%s0 + $0x44] sm:$0xf]
    %v73 = vld [vmem:[%s0 + $0x48] sm:$0xff]
    %v74 = vld [vmem:[%s0 + $0x50] sm:$0xf]
    %v75 = vld [vmem:[%s0 + $0x54] sm:$0xff]
    %v76 = vld [vmem:[%s0 + $0x5c] sm:$0xf]
    %v77 = vld [vmem:[%s0 + $0x60] sm:$0xff]
    %v78 = vld [vmem:[%s0 + $0x68] sm:$0xf]
    %v79 = vld [vmem:[%s0 + $0x6c] sm:$0xff]
    %v80 = vld [vmem:[%s0 + $0x74] sm:$0xf]
    %v81 = vld [vmem:[%s0 + $0x78] sm:$0xff]
    %v82 = vld [vmem:[%s0 + $0x80] sm:$0xf]
    %v83 = vld [vmem:[%s0 + $0x84] sm:$0xff]
    %v84 = vld [vmem:[%s0 + $0x8c] sm:$0xf]
    %v85 = vld [vmem:[%s0 + $0x90] sm:$0xff]
    %v86 = vld [vmem:[%s0 + $0x98] sm:$0xf]
    %v87 = vld [vmem:[%s0 + $0x9c] sm:$0xff]
    %v88 = vld [vmem:[%s0 + $0xa4] sm:$0xf]
    %v89 = vld [vmem:[%s0 + $0xa8] sm:$0xff]
    %v90 = vld [vmem:[%s0 + $0xb0] sm:$0xf]
    %v91 = vld [vmem:[%s0 + $0xb4] sm:$0xff]
    %v92 = vld [vmem:[%s0 + $0xbc] sm:$0xf]
    %v93 = vld [vmem:[#allocation2] sm:$0xf]
    %v94 = vld [vmem:[#allocation2 + $0x4] sm:$0xf]
    %v95 = vld [vmem:[#allocation2 + $0x8] sm:$0xf]
    %v96 = vld [vmem:[#allocation2 + $0xc] sm:$0xf]
    %v97 = vld [vmem:[#allocation2 + $0x10] sm:$0xf]
    %v98 = vld [vmem:[#allocation2 + $0x14] sm:$0xf]
    %v99 = vld [vmem:[#allocation2 + $0x18] sm:$0xf]
    %v100 = vld [vmem:[#allocation2 + $0x1c] sm:$0xf]
    %v101 = vld [vmem:[#allocation2 + $0x20] sm:$0xf]
    %v102 = vld [vmem:[#allocation2 + $0x24] sm:$0xf]
    %v103 = vld [vmem:[#allocation2 + $0x28] sm:$0xf]
    %v104 = vld [vmem:[#allocation2 + $0x2c] sm:$0xf]
    %v105 = vld [vmem:[#allocation2 + $0x30] sm:$0xf]
    %v106 = vld [vmem:[#allocation2 + $0x34] sm:$0xf]
    %v107 = vld [vmem:[#allocation2 + $0x38] sm:$0xf]
    %v108 = vld [vmem:[#allocation2 + $0x3c] sm:$0xf]
    %v109 = vld [vmem:[#allocation2 + $0x40] sm:$0xf]
    %v110 = vld [vmem:[#allocation2 + $0x44] sm:$0xf]
    %v111 = vld [vmem:[#allocation2 + $0x48] sm:$0xf]
    %v112 = vld [vmem:[#allocation2 + $0x4c] sm:$0xf]
    %v113 = vld [vmem:[#allocation2 + $0x50] sm:$0xf]
    %v114 = vld [vmem:[#allocation2 + $0x54] sm:$0xf]
    %v115 = vld [vmem:[#allocation2 + $0x58] sm:$0xf]
    %v116 = vld [vmem:[#allocation2 + $0x5c] sm:$0xf]
    %v117 = vld [vmem:[#allocation2 + $0x60] sm:$0xf]
    %v118 = vld [vmem:[#allocation2 + $0x64] sm:$0xf]
    %v119 = vld [vmem:[#allocation2 + $0x68] sm:$0xf]
    %v120 = vld [vmem:[#allocation2 + $0x6c] sm:$0xf]
    %v121 = vld [vmem:[#allocation2 + $0x70] sm:$0xf]
    %v122 = vld [vmem:[#allocation2 + $0x74] sm:$0xf]
    %v123 = vld [vmem:[#allocation2 + $0x78] sm:$0xf]
    %v124 = vld [vmem:[#allocation2 + $0x7c] sm:$0xf]
    %v125 = vld [vmem:[#allocation2 + $0x80] sm:$0xf]
    %v126 = vld [vmem:[#allocation2 + $0x84] sm:$0xf]
    %v127 = vld [vmem:[#allocation2 + $0x88] sm:$0xf]
    %v128 = vld [vmem:[#allocation2 + $0x8c] sm:$0xf]
    %v161 = vunpack.c.l.b16 %v61
    %v162 = vunpack.c.h.b16 %v61
    %v163 = vunpack.c.l.b16 %v62
    %v164 = vunpack.c.l.b16 %v63
    %v165 = vunpack.c.h.b16 %v63
    %v166 = vunpack.c.l.b16 %v64
    %v167 = vunpack.c.l.b16 %v65
    %v168 = vunpack.c.h.b16 %v65
    %v169 = vunpack.c.l.b16 %v66
    %v170 = vunpack.c.l.b16 %v67
    %v171 = vunpack.c.h.b16 %v67
    %v172 = vunpack.c.l.b16 %v68
    %v173 = vunpack.c.l.b16 %v69
    %v174 = vunpack.c.h.b16 %v69
    %v175 = vunpack.c.l.b16 %v70
    %v176 = vunpack.c.l.b16 %v71
    %v177 = vunpack.c.h.b16 %v71
    %v178 = vunpack.c.l.b16 %v72
    %v179 = vunpack.c.l.b16 %v73
    %v180 = vunpack.c.h.b16 %v73
    %v181 = vunpack.c.l.b16 %v74
    %v182 = vunpack.c.l.b16 %v75
    %v183 = vunpack.c.h.b16 %v75
    %v184 = vunpack.c.l.b16 %v76
    %v185 = vunpack.c.l.b16 %v77
    %v186 = vunpack.c.h.b16 %v77
    %v187 = vunpack.c.l.b16 %v78
    %v188 = vunpack.c.l.b16 %v79
    %v189 = vunpack.c.h.b16 %v79
    %v190 = vunpack.c.l.b16 %v80
    %v191 = vunpack.c.l.b16 %v81
    %v192 = vunpack.c.h.b16 %v81
    %v193 = vunpack.c.l.b16 %v82
    %v194 = vunpack.c.l.b16 %v83
    %v195 = vunpack.c.h.b16 %v83
    %v196 = vunpack.c.l.b16 %v84
    %v197 = vunpack.c.l.b16 %v85
    %v198 = vunpack.c.h.b16 %v85
    %v199 = vunpack.c.l.b16 %v86
    %v200 = vunpack.c.l.b16 %v87
    %v201 = vunpack.c.h.b16 %v87
    %v202 = vunpack.c.l.b16 %v88
    %v203 = vunpack.c.l.b16 %v89
    %v204 = vunpack.c.h.b16 %v89
    %v205 = vunpack.c.l.b16 %v90
    %v206 = vunpack.c.l.b16 %v91
    %v207 = vunpack.c.h.b16 %v91
    %v208 = vunpack.c.l.b16 %v92
    %v209 = vpack.c.b16 %v164, %v161
    %v210 = vpack.c.b16 %v165, %v162
    %v211 = vpack.c.b16 %v166, %v163
    %v212 = vpack.c.b16 %v170, %v167
    %v213 = vpack.c.b16 %v171, %v168
    %v214 = vpack.c.b16 %v172, %v169
    %v215 = vpack.c.b16 %v176, %v173
    %v216 = vpack.c.b16 %v177, %v174
    %v217 = vpack.c.b16 %v178, %v175
    %v218 = vpack.c.b16 %v182, %v179
    %v219 = vpack.c.b16 %v183, %v180
    %v220 = vpack.c.b16 %v184, %v181
    %v221 = vpack.c.b16 %v188, %v185
    %v222 = vpack.c.b16 %v189, %v186
    %v223 = vpack.c.b16 %v190, %v187
    %v224 = vpack.c.b16 %v194, %v191
    %v225 = vpack.c.b16 %v195, %v192
    %v226 = vpack.c.b16 %v196, %v193
    %v227 = vpack.c.b16 %v200, %v197
    %v228 = vpack.c.b16 %v201, %v198
    %v229 = vpack.c.b16 %v202, %v199
    %v230 = vpack.c.b16 %v206, %v203
    %v231 = vpack.c.b16 %v207, %v204
    %v232 = vpack.c.b16 %v208, %v205
    %v285 = vunpack.c.l.b16 %v93
    %v286 = vunpack.c.l.b16 %v94
    %v287 = vunpack.c.l.b16 %v95
    %v288 = vunpack.c.l.b16 %v96
    %v289 = vunpack.c.l.b16 %v97
    %v290 = vunpack.c.l.b16 %v98
    %v291 = vunpack.c.l.b16 %v99
    %v292 = vunpack.c.l.b16 %v100
    %v293 = vunpack.c.l.b16 %v101
    %v294 = vunpack.c.l.b16 %v102
    %v295 = vunpack.c.l.b16 %v103
    %v296 = vunpack.c.l.b16 %v104
    %v297 = vunpack.c.l.b16 %v105
    %v298 = vunpack.c.l.b16 %v106
    %v299 = vunpack.c.l.b16 %v107
    %v300 = vunpack.c.l.b16 %v108
    %v301 = vunpack.c.l.b16 %v109
    %v302 = vunpack.c.l.b16 %v110
    %v303 = vunpack.c.l.b16 %v111
    %v304 = vunpack.c.l.b16 %v112
    %v305 = vunpack.c.l.b16 %v113
    %v306 = vunpack.c.l.b16 %v114
    %v307 = vunpack.c.l.b16 %v115
    %v308 = vunpack.c.l.b16 %v116
    %v309 = vunpack.c.l.b16 %v117
    %v310 = vunpack.c.l.b16 %v118
    %v311 = vunpack.c.l.b16 %v119
    %v312 = vunpack.c.l.b16 %v120
    %v313 = vunpack.c.l.b16 %v121
    %v314 = vunpack.c.l.b16 %v122
    %v315 = vunpack.c.l.b16 %v123
    %v316 = vunpack.c.l.b16 %v124
    %v317 = vunpack.c.l.b16 %v125
    %v318 = vunpack.c.l.b16 %v126
    %v319 = vunpack.c.l.b16 %v127
    %v320 = vunpack.c.l.b16 %v128
    %v321 = vpack.c.b16 %v286, %v285
    %v322 = vpack.c.b16 %v288, %v287
    %v323 = vpack.c.b16 %v290, %v289
    %v324 = vpack.c.b16 %v292, %v291
    %v325 = vpack.c.b16 %v294, %v293
    %v326 = vpack.c.b16 %v296, %v295
    %v327 = vpack.c.b16 %v298, %v297
    %v328 = vpack.c.b16 %v300, %v299
    %v329 = vpack.c.b16 %v302, %v301
    %v330 = vpack.c.b16 %v304, %v303
    %v331 = vpack.c.b16 %v306, %v305
    %v332 = vpack.c.b16 %v308, %v307
    %v333 = vpack.c.b16 %v310, %v309
    %v334 = vpack.c.b16 %v312, %v311
    %v335 = vpack.c.b16 %v314, %v313
    %v336 = vpack.c.b16 %v316, %v315
    %v337 = vpack.c.b16 %v318, %v317
    %v338 = vpack.c.b16 %v320, %v319
    %vm357 = vcmask 261120
    %v359 = vsel %vm357, %v211, 0
    %v362 = vsel %vm357, %v214, 0
    %v365 = vsel %vm357, %v217, 0
    %v368 = vsel %vm357, %v220, 0
    %v371 = vsel %vm357, %v223, 0
    %v374 = vsel %vm357, %v226, 0
    %v377 = vsel %vm357, %v229, 0
    %v380 = vsel %vm357, %v232, 0
    %382 = vmatpush.bf16.msra.mxu0 %v328
    %383 = vmatpush.bf16.msra.mxu0 %v327
    %384 = vmatpush.bf16.msra.mxu0 %v326
    %385 = vmatpush.bf16.msra.mxu0 %v325
    %386 = vmatpush.bf16.msra.mxu0 %v324
    %387 = vmatpush.bf16.msra.mxu0 %v323
    %388 = vmatpush.bf16.msra.mxu0 %v322
    %389 = vmatpush.bf16.msra.mxu0 %v321
    %390 = vmatmul.bf16.gmra.mxu0 %v209
    %v391 = vpop.f32.mrf.mxu0
    %v392 = vadd.f32 0.0, %v391
    %v393 = vpop.f32.mrf.mxu0
    %v394 = vadd.f32 0.0, %v393
    %395 = vmatmul.bf16.gmra.mxu0 %v212
    %v396 = vpop.f32.mrf.mxu0
    %v397 = vadd.f32 0.0, %v396
    %v398 = vpop.f32.mrf.mxu0
    %v399 = vadd.f32 0.0, %v398
    %400 = vmatmul.bf16.gmra.mxu0 %v215
    %v401 = vpop.f32.mrf.mxu0
    %v402 = vadd.f32 0.0, %v401
    %v403 = vpop.f32.mrf.mxu0
    %v404 = vadd.f32 0.0, %v403
    %405 = vmatmul.bf16.gmra.mxu0 %v218
    %v406 = vpop.f32.mrf.mxu0
    %v407 = vadd.f32 0.0, %v406
    %v408 = vpop.f32.mrf.mxu0
    %v409 = vadd.f32 0.0, %v408
    %410 = vmatmul.bf16.gmra.mxu0 %v221
    %v411 = vpop.f32.mrf.mxu0
    %v412 = vadd.f32 0.0, %v411
    %v413 = vpop.f32.mrf.mxu0
    %v414 = vadd.f32 0.0, %v413
    %415 = vmatmul.bf16.gmra.mxu0 %v224
    %v416 = vpop.f32.mrf.mxu0
    %v417 = vadd.f32 0.0, %v416
    %v418 = vpop.f32.mrf.mxu0
    %v419 = vadd.f32 0.0, %v418
    %420 = vmatmul.bf16.gmra.mxu0 %v227
    %v421 = vpop.f32.mrf.mxu0
    %v422 = vadd.f32 0.0, %v421
    %v423 = vpop.f32.mrf.mxu0
    %v424 = vadd.f32 0.0, %v423
    %425 = vmatmul.bf16.gmra.mxu0 %v230
    %v426 = vpop.f32.mrf.mxu0
    %v427 = vadd.f32 0.0, %v426
    %v428 = vpop.f32.mrf.mxu0
    %v429 = vadd.f32 0.0, %v428
    %430 = vdwg.mxu0
    %431 = vmatpush.bf16.msra.mxu0 %v336
    %432 = vmatpush.bf16.msra.mxu0 %v335
    %433 = vmatpush.bf16.msra.mxu0 %v334
    %434 = vmatpush.bf16.msra.mxu0 %v333
    %435 = vmatpush.bf16.msra.mxu0 %v332
    %436 = vmatpush.bf16.msra.mxu0 %v331
    %437 = vmatpush.bf16.msra.mxu0 %v330
    %438 = vmatpush.bf16.msra.mxu0 %v329
    %439 = vmatmul.bf16.gmra.mxu0 %v210
    %v440 = vpop.f32.mrf.mxu0
    %v441 = vadd.f32 %v392, %v440
    %v442 = vpop.f32.mrf.mxu0
    %v443 = vadd.f32 %v394, %v442
    %444 = vmatmul.bf16.gmra.mxu0 %v213
    %v445 = vpop.f32.mrf.mxu0
    %v446 = vadd.f32 %v397, %v445
    %v447 = vpop.f32.mrf.mxu0
    %v448 = vadd.f32 %v399, %v447
    %449 = vmatmul.bf16.gmra.mxu0 %v216
    %v450 = vpop.f32.mrf.mxu0
    %v451 = vadd.f32 %v402, %v450
    %v452 = vpop.f32.mrf.mxu0
    %v453 = vadd.f32 %v404, %v452
    %454 = vmatmul.bf16.gmra.mxu0 %v219
    %v455 = vpop.f32.mrf.mxu0
    %v456 = vadd.f32 %v407, %v455
    %v457 = vpop.f32.mrf.mxu0
    %v458 = vadd.f32 %v409, %v457
    %459 = vmatmul.bf16.gmra.mxu0 %v222
    %v460 = vpop.f32.mrf.mxu0
    %v461 = vadd.f32 %v412, %v460
    %v462 = vpop.f32.mrf.mxu0
    %v463 = vadd.f32 %v414, %v462
    %464 = vmatmul.bf16.gmra.mxu0 %v225
    %v465 = vpop.f32.mrf.mxu0
    %v466 = vadd.f32 %v417, %v465
    %v467 = vpop.f32.mrf.mxu0
    %v468 = vadd.f32 %v419, %v467
    %469 = vmatmul.bf16.gmra.mxu0 %v228
    %v470 = vpop.f32.mrf.mxu0
    %v471 = vadd.f32 %v422, %v470
    %v472 = vpop.f32.mrf.mxu0
    %v473 = vadd.f32 %v424, %v472
    %474 = vmatmul.bf16.gmra.mxu0 %v231
    %v475 = vpop.f32.mrf.mxu0
    %v476 = vadd.f32 %v427, %v475
    %v477 = vpop.f32.mrf.mxu0
    %v478 = vadd.f32 %v429, %v477
    %479 = vdwg.mxu0
    %480 = vmatpush.bf16.msra.mxu0 0
    %481 = vmatpush.bf16.msra.mxu0 0
    %482 = vmatpush.bf16.msra.mxu0 0
    %483 = vmatpush.bf16.msra.mxu0 0
    %484 = vmatpush.bf16.msra.mxu0 0
    %485 = vmatpush.bf16.msra.mxu0 0
    %486 = vmatpush.bf16.msra.mxu0 %v338
    %487 = vmatpush.bf16.msra.mxu0 %v337
    %488 = vmatmul.bf16.gmra.mxu0 %v359
    %v489 = vpop.f32.mrf.mxu0
    %v490 = vadd.f32 %v441, %v489
    %v491 = vpop.f32.mrf.mxu0
    %v492 = vadd.f32 %v443, %v491
    %493 = vmatmul.bf16.gmra.mxu0 %v362
    %v494 = vpop.f32.mrf.mxu0
    %v495 = vadd.f32 %v446, %v494
    %v496 = vpop.f32.mrf.mxu0
    %v497 = vadd.f32 %v448, %v496
    %498 = vmatmul.bf16.gmra.mxu0 %v365
    %v499 = vpop.f32.mrf.mxu0
    %v500 = vadd.f32 %v451, %v499
    %v501 = vpop.f32.mrf.mxu0
    %v502 = vadd.f32 %v453, %v501
    %503 = vmatmul.bf16.gmra.mxu0 %v368
    %v504 = vpop.f32.mrf.mxu0
    %v505 = vadd.f32 %v456, %v504
    %v506 = vpop.f32.mrf.mxu0
    %v507 = vadd.f32 %v458, %v506
    %508 = vmatmul.bf16.gmra.mxu0 %v371
    %v509 = vpop.f32.mrf.mxu0
    %v510 = vadd.f32 %v461, %v509
    %v511 = vpop.f32.mrf.mxu0
    %v512 = vadd.f32 %v463, %v511
    %513 = vmatmul.bf16.gmra.mxu0 %v374
    %v514 = vpop.f32.mrf.mxu0
    %v515 = vadd.f32 %v466, %v514
    %v516 = vpop.f32.mrf.mxu0
    %v517 = vadd.f32 %v468, %v516
    %518 = vmatmul.bf16.gmra.mxu0 %v377
    %v519 = vpop.f32.mrf.mxu0
    %v520 = vadd.f32 %v471, %v519
    %v521 = vpop.f32.mrf.mxu0
    %v522 = vadd.f32 %v473, %v521
    %523 = vmatmul.bf16.gmra.mxu0 %v380
    %v524 = vpop.f32.mrf.mxu0
    %v525 = vadd.f32 %v476, %v524
    %v526 = vpop.f32.mrf.mxu0
    %v527 = vadd.f32 %v478, %v526
    %528 = vdwg.mxu0
    %v529 = vadd.f32 %v490, %v492
    %v530 = vadd.f32 %v529, %v495
    %v531 = vadd.f32 %v530, %v497
    %v532 = vadd.f32 %v531, %v500
    %v533 = vadd.f32 %v532, %v502
    %v534 = vadd.f32 %v533, %v505
    %v535 = vadd.f32 %v534, %v507
    %v536 = vadd.f32 %v535, %v510
    %v537 = vadd.f32 %v536, %v512
    %v538 = vadd.f32 %v537, %v515
    %v539 = vadd.f32 %v538, %v517
    %v540 = vadd.f32 %v539, %v520
    %v541 = vadd.f32 %v540, %v522
    %v542 = vadd.f32 %v541, %v525
    %v543 = vadd.f32 %v542, %v527
    %v544 = vrot.slane %v543, 4
    %v545 = vadd.f32 %v543, %v544
    %v546 = vrot.slane %v545, 2
    %v547 = vadd.f32 %v545, %v546
    %v548 = vrot.slane %v547, 1
    %v549 = vadd.f32 %v547, %v548
    %v550 = vmul.f32 %v490, %v490
    %v551 = vmul.f32 %v492, %v492
    %v552 = vmul.f32 %v495, %v495
    %v553 = vmul.f32 %v497, %v497
    %v554 = vmul.f32 %v500, %v500
    %v555 = vmul.f32 %v502, %v502
    %v556 = vmul.f32 %v505, %v505
    %v557 = vmul.f32 %v507, %v507
    %v558 = vmul.f32 %v510, %v510
    %v559 = vmul.f32 %v512, %v512
    %v560 = vmul.f32 %v515, %v515
    %v561 = vmul.f32 %v517, %v517
    %v562 = vmul.f32 %v520, %v520
    %v563 = vmul.f32 %v522, %v522
    %v564 = vmul.f32 %v525, %v525
    %v565 = vmul.f32 %v527, %v527
    %v566 = vadd.f32 %v550, %v551
    %v567 = vadd.f32 %v566, %v552
    %v568 = vadd.f32 %v567, %v553
    %v569 = vadd.f32 %v568, %v554
    %v570 = vadd.f32 %v569, %v555
    %v571 = vadd.f32 %v570, %v556
    %v572 = vadd.f32 %v571, %v557
    %v573 = vadd.f32 %v572, %v558
    %v574 = vadd.f32 %v573, %v559
    %v575 = vadd.f32 %v574, %v560
    %v576 = vadd.f32 %v575, %v561
    %v577 = vadd.f32 %v576, %v562
    %v578 = vadd.f32 %v577, %v563
    %v579 = vadd.f32 %v578, %v564
    %v580 = vadd.f32 %v579, %v565
    %v581 = vrot.slane %v580, 4
    %v582 = vadd.f32 %v580, %v581
    %v583 = vrot.slane %v582, 2
    %v584 = vadd.f32 %v582, %v583
    %v585 = vrot.slane %v584, 1
    %v586 = vadd.f32 %v584, %v585
    %588 = vrot.lane.b32.xlu0 %v549, 96
    %v589 = vpop.permute.xlu0 %588
    %v591 = vadd.f32 %v549, %v589
    %593 = vrot.lane.b32.xlu0 %v586, 96
    %v594 = vpop.permute.xlu0 %593
    %v596 = vadd.f32 %v586, %v594
    %597 = vrot.lane.b32.xlu0 %v549, 64
    %v598 = vpop.permute.xlu0 %597
    %v600 = vadd.f32 %v591, %v598
    %601 = vrot.lane.b32.xlu0 %v586, 64
    %v602 = vpop.permute.xlu0 %601
    %v604 = vadd.f32 %v596, %v602
    %605 = vrot.lane.b32.xlu0 %v549, 32
    %v606 = vpop.permute.xlu0 %605
    %v608 = vadd.f32 %v600, %v606
    %609 = vrot.lane.b32.xlu0 %v586, 32
    %v610 = vpop.permute.xlu0 %609
    %v612 = vadd.f32 %v604, %v610
    %v613 = vmul.f32 %v608, 0.001953125
    %v614 = vmul.f32 %v612, 0.001953125
    %v615 = vmul.f32 %v613, %v613
    %v616 = vsub.f32 %v614, %v615
    %v617 = vmax.f32 %v616, 0.0
    %v618 = vld [vmem:[#allocation4] sm:$0x1]
    %v619 = vadd.f32 %v617, 1e-05
    %v620 = vrsqrt.pop %v619
    %v621 = vmul.f32 %v620, %v619
    %v622 = vmul.f32 %v621, %v620
    %v623 = vmul.f32 0.5, %v622
    %v624 = vsub.f32 1.5, %v623
    %v625 = vmul.f32 %v620, %v624
    %vm626 = vweird.f32 %v619
    %vm627 = vweird.f32 %v620
    %vm628 = vmor %vm626, %vm627
    %v629 = vsel %vm628, %v620, %v625
    %v630 = vmul.f32 %v618, %v629
    %v631 = vld [vmem:[#allocation6] sm:$0x1]
    %v632 = vmul.f32 %v613, %v630
    %v633 = vsub.f32 %v631, %v632
    %v635 = vperm.slane %v630, 0
    %636 = vrot.lane.b32.xlu0 %v635, 32
    %v637 = vpop.permute.xlu0 %636
    %639 = vrot.lane.b32.xlu0 %v635, 64
    %v640 = vpop.permute.xlu0 %639
    %642 = vrot.lane.b32.xlu0 %v635, 96
    %v643 = vpop.permute.xlu0 %642
    %v645 = vsel %vm357, %v630, %v637
    %vm646 = vcmask 523264
    %v647 = vsel %vm646, %v645, %v640
    %vm648 = vcmask 785408
    %v649 = vsel %vm648, %v647, %v643
    %v651 = vperm.slane %v633, 0
    %652 = vrot.lane.b32.xlu0 %v651, 32
    %v653 = vpop.permute.xlu0 %652
    %655 = vrot.lane.b32.xlu0 %v651, 64
    %v656 = vpop.permute.xlu0 %655
    %658 = vrot.lane.b32.xlu0 %v651, 96
    %v659 = vpop.permute.xlu0 %658
    %v661 = vsel %vm357, %v633, %v653
    %v662 = vsel %vm646, %v661, %v656
    %v663 = vsel %vm648, %v662, %v659
    %v664 = vperm.slane %v649, 0
    %v665 = vmul.f32 %v490, %v664
    %v666 = vmul.f32 %v492, %v664
    %v667 = vmul.f32 %v495, %v664
    %v668 = vmul.f32 %v497, %v664
    %v669 = vmul.f32 %v500, %v664
    %v670 = vmul.f32 %v502, %v664
    %v671 = vmul.f32 %v505, %v664
    %v672 = vmul.f32 %v507, %v664
    %v673 = vmul.f32 %v510, %v664
    %v674 = vmul.f32 %v512, %v664
    %v675 = vmul.f32 %v515, %v664
    %v676 = vmul.f32 %v517, %v664
    %v677 = vmul.f32 %v520, %v664
    %v678 = vmul.f32 %v522, %v664
    %v679 = vmul.f32 %v525, %v664
    %v680 = vmul.f32 %v527, %v664
    %v681 = vperm.slane %v663, 0
    %v682 = vadd.f32 %v665, %v681
    %v683 = vadd.f32 %v666, %v681
    %v684 = vadd.f32 %v667, %v681
    %v685 = vadd.f32 %v668, %v681
    %v686 = vadd.f32 %v669, %v681
    %v687 = vadd.f32 %v670, %v681
    %v688 = vadd.f32 %v671, %v681
    %v689 = vadd.f32 %v672, %v681
    %v690 = vadd.f32 %v673, %v681
    %v691 = vadd.f32 %v674, %v681
    %v692 = vadd.f32 %v675, %v681
    %v693 = vadd.f32 %v676, %v681
    %v694 = vadd.f32 %v677, %v681
    %v695 = vadd.f32 %v678, %v681
    %v696 = vadd.f32 %v679, %v681
    %v697 = vadd.f32 %v680, %v681
    %v698 = vmax.f32 %v682, 0.0
    %v699 = vmax.f32 %v683, 0.0
    %v700 = vmax.f32 %v684, 0.0
    %v701 = vmax.f32 %v685, 0.0
    %v702 = vmax.f32 %v686, 0.0
    %v703 = vmax.f32 %v687, 0.0
    %v704 = vmax.f32 %v688, 0.0
    %v705 = vmax.f32 %v689, 0.0
    %v706 = vmax.f32 %v690, 0.0
    %v707 = vmax.f32 %v691, 0.0
    %v708 = vmax.f32 %v692, 0.0
    %v709 = vmax.f32 %v693, 0.0
    %v710 = vmax.f32 %v694, 0.0
    %v711 = vmax.f32 %v695, 0.0
    %v712 = vmax.f32 %v696, 0.0
    %v713 = vmax.f32 %v697, 0.0
    %v714 = vpack.c.bf16 %v698, %v698
    %v715 = vpack.c.bf16 %v699, %v699
    %v716 = vpack.c.bf16 %v700, %v700
    %v717 = vpack.c.bf16 %v701, %v701
    %v718 = vpack.c.bf16 %v702, %v702
    %v719 = vpack.c.bf16 %v703, %v703
    %v720 = vpack.c.bf16 %v704, %v704
    %v721 = vpack.c.bf16 %v705, %v705
    %v722 = vpack.c.bf16 %v706, %v706
    %v723 = vpack.c.bf16 %v707, %v707
    %v724 = vpack.c.bf16 %v708, %v708
    %v725 = vpack.c.bf16 %v709, %v709
    %v726 = vpack.c.bf16 %v710, %v710
    %v727 = vpack.c.bf16 %v711, %v711
    %v728 = vpack.c.bf16 %v712, %v712
    %v729 = vpack.c.bf16 %v713, %v713
    %730 = vst [vmem:[%s4] sm:$0xf] %v714
    %731 = vst [vmem:[%s4 + $0x4] sm:$0xf] %v715
    %732 = vst [vmem:[%s4 + $0x8] sm:$0xf] %v716
    %733 = vst [vmem:[%s4 + $0xc] sm:$0xf] %v717
    %734 = vst [vmem:[%s4 + $0x10] sm:$0xf] %v718
    %735 = vst [vmem:[%s4 + $0x14] sm:$0xf] %v719
    %736 = vst [vmem:[%s4 + $0x18] sm:$0xf] %v720
    %737 = vst [vmem:[%s4 + $0x1c] sm:$0xf] %v721
    %738 = vst [vmem:[%s4 + $0x20] sm:$0xf] %v722
    %739 = vst [vmem:[%s4 + $0x24] sm:$0xf] %v723
    %740 = vst [vmem:[%s4 + $0x28] sm:$0xf] %v724
    %741 = vst [vmem:[%s4 + $0x2c] sm:$0xf] %v725
    %742 = vst [vmem:[%s4 + $0x30] sm:$0xf] %v726
    %743 = vst [vmem:[%s4 + $0x34] sm:$0xf] %v727
    %744 = vst [vmem:[%s4 + $0x38] sm:$0xf] %v728
    %745 = vst [vmem:[%s4 + $0x3c] sm:$0xf] %v729
    // Predicated region
    $region30: #{generator_forward.7} parent=1 // pred_check
      _
    $region31: #{generator_forward.7} parent=1 // pred_check_branch
      %747 = sbr.rel (0) target = $region33
    $region32: #{generator_forward.7} parent=1 // pred_region
      _
    $region33: #{generator_forward.7} parent=1 // pred_fallthru
      _
    // Predicated region
    $region34: #{generator_forward.7} parent=1 // pred_check
      _
    $region35: #{generator_forward.7} parent=1 // pred_check_branch
      %749 = sbr.rel (0) target = $region37
    $region36: #{generator_forward.7} parent=1 // pred_region
      _
    $region37: #{generator_forward.7} parent=1 // pred_fallthru
      _
    %750 = vsyncpa [#allocation3], 1
    %751 = vsyncpa [#allocation5], 1

// kernel: generator_forward.8
$region0: #{generator_forward.8}
  #allocation0 [shape = 'u32[]', space=smem, size = 0x4, offset = 0x4, fixed_abs, tag = 'smem constant byte address 0x4 - core index']
  #allocation1 [shape = 'u32[72,128]{1,0:T(1,128)}', space=vmem, size = 0x9000, scoped, tag = 'internal scratch']
  %s0 = inlined_call_operand.vmem [shape: bf16[512,288], index: 0, kind: input, shape index: {}]
  %s1 = inlined_call_operand.vmem [shape: bf16[288,128], index: 1, kind: input, shape index: {}]
  %s2 = inlined_call_operand.vmem [shape: f32[1,32], index: 2, kind: input, shape index: {}]
  %s3 = inlined_call_operand.vmem [shape: f32[1,32], index: 3, kind: input, shape index: {}]
  %s4 = inlined_call_operand.vmem [shape: bf16[512,128], index: 4, kind: output, shape index: {}]
  %s5 = sld [smem:[#allocation0]]
  $region26: #{generator_forward.8} parent=0
    _
  %s7 = ssub.s32 1, %s5
  %s8 = scalar_select 0, %s7, %s5
  // Predicated region
  $region2: #{generator_forward.8} parent=0 // pred_check
    _
  $region3: #{generator_forward.8} parent=0 // pred_check_branch
    %10 = sbr.rel (0) target = $region5
  $region4: #{generator_forward.8} parent=0 // pred_region
    _
  $region5: #{generator_forward.8} parent=0 // pred_fallthru
    _
  // Predicated region
  $region6: #{generator_forward.8} parent=0 // pred_check
    _
  $region7: #{generator_forward.8} parent=0 // pred_check_branch
    %12 = sbr.rel (0) target = $region9
  $region8: #{generator_forward.8} parent=0 // pred_region
    _
  $region9: #{generator_forward.8} parent=0 // pred_fallthru
    _
  // Predicated region
  $region10: #{generator_forward.8} parent=0 // pred_check
    _
  $region11: #{generator_forward.8} parent=0 // pred_check_branch
    %14 = sbr.rel (0) target = $region13
  $region12: #{generator_forward.8} parent=0 // pred_region
    _
  $region13: #{generator_forward.8} parent=0 // pred_fallthru
    _
  // Predicated region
  $region14: #{generator_forward.8} parent=0 // pred_check
    _
  $region15: #{generator_forward.8} parent=0 // pred_check_branch
    %16 = sbr.rel (0) target = $region17
  $region16: #{generator_forward.8} parent=0 // pred_region
    _
  $region17: #{generator_forward.8} parent=0 // pred_fallthru
    _
  %v18 = vld [vmem:[%s0] sm:$0xff]
  %v19 = vld [vmem:[%s0 + $0x8] sm:$0xf]
  %v20 = vld [vmem:[%s0 + $0xc] sm:$0xff]
  %v21 = vld [vmem:[%s0 + $0x14] sm:$0xf]
  %v22 = vld [vmem:[%s0 + $0x18] sm:$0xff]
  %v23 = vld [vmem:[%s0 + $0x20] sm:$0xf]
  %v24 = vld [vmem:[%s0 + $0x24] sm:$0xff]
  %v25 = vld [vmem:[%s0 + $0x2c] sm:$0xf]
  %v26 = vld [vmem:[%s0 + $0x30] sm:$0xff]
  %v27 = vld [vmem:[%s0 + $0x38] sm:$0xf]
  %v28 = vld [vmem:[%s0 + $0x3c] sm:$0xff]
  %v29 = vld [vmem:[%s0 + $0x44] sm:$0xf]
  %v30 = vld [vmem:[%s0 + $0x48] sm:$0xff]
  %v31 = vld [vmem:[%s0 + $0x50] sm:$0xf]
  %v32 = vld [vmem:[%s0 + $0x54] sm:$0xff]
  %v33 = vld [vmem:[%s0 + $0x5c] sm:$0xf]
  %v34 = vld [vmem:[%s0 + $0x60] sm:$0xff]
  %v35 = vld [vmem:[%s0 + $0x68] sm:$0xf]
  %v36 = vld [vmem:[%s0 + $0x6c] sm:$0xff]
  %v37 = vld [vmem:[%s0 + $0x74] sm:$0xf]
  %v38 = vld [vmem:[%s0 + $0x78] sm:$0xff]
  %v39 = vld [vmem:[%s0 + $0x80] sm:$0xf]
  %v40 = vld [vmem:[%s0 + $0x84] sm:$0xff]
  %v41 = vld [vmem:[%s0 + $0x8c] sm:$0xf]
  %v42 = vld [vmem:[%s0 + $0x90] sm:$0xff]
  %v43 = vld [vmem:[%s0 + $0x98] sm:$0xf]
  %v44 = vld [vmem:[%s0 + $0x9c] sm:$0xff]
  %v45 = vld [vmem:[%s0 + $0xa4] sm:$0xf]
  %v46 = vld [vmem:[%s0 + $0xa8] sm:$0xff]
  %v47 = vld [vmem:[%s0 + $0xb0] sm:$0xf]
  %v48 = vld [vmem:[%s0 + $0xb4] sm:$0xff]
  %v49 = vld [vmem:[%s0 + $0xbc] sm:$0xf]
  %v50 = vld [vmem:[%s0 + $0xc0] sm:$0xff]
  %v51 = vld [vmem:[%s0 + $0xc8] sm:$0xf]
  %v52 = vld [vmem:[%s0 + $0xcc] sm:$0xff]
  %v53 = vld [vmem:[%s0 + $0xd4] sm:$0xf]
  %v54 = vld [vmem:[%s0 + $0xd8] sm:$0xff]
  %v55 = vld [vmem:[%s0 + $0xe0] sm:$0xf]
  %v56 = vld [vmem:[%s0 + $0xe4] sm:$0xff]
  %v57 = vld [vmem:[%s0 + $0xec] sm:$0xf]
  %v58 = vld [vmem:[%s0 + $0xf0] sm:$0xff]
  %v59 = vld [vmem:[%s0 + $0xf8] sm:$0xf]
  %v60 = vld [vmem:[%s0 + $0xfc] sm:$0xff]
  %v61 = vld [vmem:[%s0 + $0x104] sm:$0xf]
  %v62 = vld [vmem:[%s0 + $0x108] sm:$0xff]
  %v63 = vld [vmem:[%s0 + $0x110] sm:$0xf]
  %v64 = vld [vmem:[%s0 + $0x114] sm:$0xff]
  %v65 = vld [vmem:[%s0 + $0x11c] sm:$0xf]
  %v66 = vld [vmem:[%s0 + $0x120] sm:$0xff]
  %v67 = vld [vmem:[%s0 + $0x128] sm:$0xf]
  %v68 = vld [vmem:[%s0 + $0x12c] sm:$0xff]
  %v69 = vld [vmem:[%s0 + $0x134] sm:$0xf]
  %v70 = vld [vmem:[%s0 + $0x138] sm:$0xff]
  %v71 = vld [vmem:[%s0 + $0x140] sm:$0xf]
  %v72 = vld [vmem:[%s0 + $0x144] sm:$0xff]
  %v73 = vld [vmem:[%s0 + $0x14c] sm:$0xf]
  %v74 = vld [vmem:[%s0 + $0x150] sm:$0xff]
  %v75 = vld [vmem:[%s0 + $0x158] sm:$0xf]
  %v76 = vld [vmem:[%s0 + $0x15c] sm:$0xff]
  %v77 = vld [vmem:[%s0 + $0x164] sm:$0xf]
  %v78 = vld [vmem:[%s0 + $0x168] sm:$0xff]
  %v79 = vld [vmem:[%s0 + $0x170] sm:$0xf]
  %v80 = vld [vmem:[%s0 + $0x174] sm:$0xff]
  %v81 = vld [vmem:[%s0 + $0x17c] sm:$0xf]
  %v82 = vld [vmem:[%s0 + $0x180] sm:$0xff]
  %v83 = vld [vmem:[%s0 + $0x188] sm:$0xf]
  %v84 = vld [vmem:[%s0 + $0x18c] sm:$0xff]
  %v85 = vld [vmem:[%s0 + $0x194] sm:$0xf]
  %v86 = vld [vmem:[%s0 + $0x198] sm:$0xff]
  %v87 = vld [vmem:[%s0 + $0x1a0] sm:$0xf]
  %v88 = vld [vmem:[%s0 + $0x1a4] sm:$0xff]
  %v89 = vld [vmem:[%s0 + $0x1ac] sm:$0xf]
  %v90 = vld [vmem:[%s0 + $0x1b0] sm:$0xff]
  %v91 = vld [vmem:[%s0 + $0x1b8] sm:$0xf]
  %v92 = vld [vmem:[%s0 + $0x1bc] sm:$0xff]
  %v93 = vld [vmem:[%s0 + $0x1c4] sm:$0xf]
  %v94 = vld [vmem:[%s0 + $0x1c8] sm:$0xff]
  %v95 = vld [vmem:[%s0 + $0x1d0] sm:$0xf]
  %v96 = vld [vmem:[%s0 + $0x1d4] sm:$0xff]
  %v97 = vld [vmem:[%s0 + $0x1dc] sm:$0xf]
  %v98 = vld [vmem:[%s0 + $0x1e0] sm:$0xff]
  %v99 = vld [vmem:[%s0 + $0x1e8] sm:$0xf]
  %v100 = vld [vmem:[%s0 + $0x1ec] sm:$0xff]
  %v101 = vld [vmem:[%s0 + $0x1f4] sm:$0xf]
  %v102 = vld [vmem:[%s0 + $0x1f8] sm:$0xff]
  %v103 = vld [vmem:[%s0 + $0x200] sm:$0xf]
  %v104 = vld [vmem:[%s0 + $0x204] sm:$0xff]
  %v105 = vld [vmem:[%s0 + $0x20c] sm:$0xf]
  %v106 = vld [vmem:[%s0 + $0x210] sm:$0xff]
  %v107 = vld [vmem:[%s0 + $0x218] sm:$0xf]
  %v108 = vld [vmem:[%s0 + $0x21c] sm:$0xff]
  %v109 = vld [vmem:[%s0 + $0x224] sm:$0xf]
  %v110 = vld [vmem:[%s0 + $0x228] sm:$0xff]
  %v111 = vld [vmem:[%s0 + $0x230] sm:$0xf]
  %v112 = vld [vmem:[%s0 + $0x234] sm:$0xff]
  %v113 = vld [vmem:[%s0 + $0x23c] sm:$0xf]
  %v114 = vld [vmem:[%s0 + $0x240] sm:$0xff]
  %v115 = vld [vmem:[%s0 + $0x248] sm:$0xf]
  %v116 = vld [vmem:[%s0 + $0x24c] sm:$0xff]
  %v117 = vld [vmem:[%s0 + $0x254] sm:$0xf]
  %v118 = vld [vmem:[%s0 + $0x258] sm:$0xff]
  %v119 = vld [vmem:[%s0 + $0x260] sm:$0xf]
  %v120 = vld [vmem:[%s0 + $0x264] sm:$0xff]
  %v121 = vld [vmem:[%s0 + $0x26c] sm:$0xf]
  %v122 = vld [vmem:[%s0 + $0x270] sm:$0xff]
  %v123 = vld [vmem:[%s0 + $0x278] sm:$0xf]
  %v124 = vld [vmem:[%s0 + $0x27c] sm:$0xff]
  %v125 = vld [vmem:[%s0 + $0x284] sm:$0xf]
  %v126 = vld [vmem:[%s0 + $0x288] sm:$0xff]
  %v127 = vld [vmem:[%s0 + $0x290] sm:$0xf]
  %v128 = vld [vmem:[%s0 + $0x294] sm:$0xff]
  %v129 = vld [vmem:[%s0 + $0x29c] sm:$0xf]
  %v130 = vld [vmem:[%s0 + $0x2a0] sm:$0xff]
  %v131 = vld [vmem:[%s0 + $0x2a8] sm:$0xf]
  %v132 = vld [vmem:[%s0 + $0x2ac] sm:$0xff]
  %v133 = vld [vmem:[%s0 + $0x2b4] sm:$0xf]
  %v134 = vld [vmem:[%s0 + $0x2b8] sm:$0xff]
  %v135 = vld [vmem:[%s0 + $0x2c0] sm:$0xf]
  %v136 = vld [vmem:[%s0 + $0x2c4] sm:$0xff]
  %v137 = vld [vmem:[%s0 + $0x2cc] sm:$0xf]
  %v138 = vld [vmem:[%s0 + $0x2d0] sm:$0xff]
  %v139 = vld [vmem:[%s0 + $0x2d8] sm:$0xf]
  %v140 = vld [vmem:[%s0 + $0x2dc] sm:$0xff]
  %v141 = vld [vmem:[%s0 + $0x2e4] sm:$0xf]
  %v142 = vld [vmem:[%s0 + $0x2e8] sm:$0xff]
  %v143 = vld [vmem:[%s0 + $0x2f0] sm:$0xf]
  %v144 = vld [vmem:[%s0 + $0x2f4] sm:$0xff]
  %v145 = vld [vmem:[%s0 + $0x2fc] sm:$0xf]
  %v146 = vld [vmem:[%s1] sm:$0xf]
  %v147 = vld [vmem:[%s1 + $0x4] sm:$0xf]
  %v148 = vld [vmem:[%s1 + $0x8] sm:$0xf]
  %v149 = vld [vmem:[%s1 + $0xc] sm:$0xf]
  %v150 = vld [vmem:[%s1 + $0x10] sm:$0xf]
  %v151 = vld [vmem:[%s1 + $0x14] sm:$0xf]
  %v152 = vld [vmem:[%s1 + $0x18] sm:$0xf]
  %v153 = vld [vmem:[%s1 + $0x1c] sm:$0xf]
  %v154 = vld [vmem:[%s1 + $0x20] sm:$0xf]
  %v155 = vld [vmem:[%s1 + $0x24] sm:$0xf]
  %v156 = vld [vmem:[%s1 + $0x28] sm:$0xf]
  %v157 = vld [vmem:[%s1 + $0x2c] sm:$0xf]
  %v158 = vld [vmem:[%s1 + $0x30] sm:$0xf]
  %v159 = vld [vmem:[%s1 + $0x34] sm:$0xf]
  %v160 = vld [vmem:[%s1 + $0x38] sm:$0xf]
  %v161 = vld [vmem:[%s1 + $0x3c] sm:$0xf]
  %v162 = vld [vmem:[%s1 + $0x40] sm:$0xf]
  %v163 = vld [vmem:[%s1 + $0x44] sm:$0xf]
  %v164 = vld [vmem:[%s1 + $0x48] sm:$0xf]
  %v165 = vld [vmem:[%s1 + $0x4c] sm:$0xf]
  %v166 = vld [vmem:[%s1 + $0x50] sm:$0xf]
  %v167 = vld [vmem:[%s1 + $0x54] sm:$0xf]
  %v168 = vld [vmem:[%s1 + $0x58] sm:$0xf]
  %v169 = vld [vmem:[%s1 + $0x5c] sm:$0xf]
  %v170 = vld [vmem:[%s1 + $0x60] sm:$0xf]
  %v171 = vld [vmem:[%s1 + $0x64] sm:$0xf]
  %v172 = vld [vmem:[%s1 + $0x68] sm:$0xf]
  %v173 = vld [vmem:[%s1 + $0x6c] sm:$0xf]
  %v174 = vld [vmem:[%s1 + $0x70] sm:$0xf]
  %v175 = vld [vmem:[%s1 + $0x74] sm:$0xf]
  %v176 = vld [vmem:[%s1 + $0x78] sm:$0xf]
  %v177 = vld [vmem:[%s1 + $0x7c] sm:$0xf]
  %v178 = vld [vmem:[%s1 + $0x80] sm:$0xf]
  %v179 = vld [vmem:[%s1 + $0x84] sm:$0xf]
  %v180 = vld [vmem:[%s1 + $0x88] sm:$0xf]
  %v181 = vld [vmem:[%s1 + $0x8c] sm:$0xf]
  %v310 = vunpack.c.l.b16 %v18
  %v311 = vunpack.c.h.b16 %v18
  %v312 = vunpack.c.l.b16 %v19
  %v313 = vunpack.c.l.b16 %v20
  %v314 = vunpack.c.h.b16 %v20
  %v315 = vunpack.c.l.b16 %v21
  %v316 = vunpack.c.l.b16 %v22
  %v317 = vunpack.c.h.b16 %v22
  %v318 = vunpack.c.l.b16 %v23
  %v319 = vunpack.c.l.b16 %v24
  %v320 = vunpack.c.h.b16 %v24
  %v321 = vunpack.c.l.b16 %v25
  %v322 = vunpack.c.l.b16 %v26
  %v323 = vunpack.c.h.b16 %v26
  %v324 = vunpack.c.l.b16 %v27
  %v325 = vunpack.c.l.b16 %v28
  %v326 = vunpack.c.h.b16 %v28
  %v327 = vunpack.c.l.b16 %v29
  %v328 = vunpack.c.l.b16 %v30
  %v329 = vunpack.c.h.b16 %v30
  %v330 = vunpack.c.l.b16 %v31
  %v331 = vunpack.c.l.b16 %v32
  %v332 = vunpack.c.h.b16 %v32
  %v333 = vunpack.c.l.b16 %v33
  %v334 = vunpack.c.l.b16 %v34
  %v335 = vunpack.c.h.b16 %v34
  %v336 = vunpack.c.l.b16 %v35
  %v337 = vunpack.c.l.b16 %v36
  %v338 = vunpack.c.h.b16 %v36
  %v339 = vunpack.c.l.b16 %v37
  %v340 = vunpack.c.l.b16 %v38
  %v341 = vunpack.c.h.b16 %v38
  %v342 = vunpack.c.l.b16 %v39
  %v343 = vunpack.c.l.b16 %v40
  %v344 = vunpack.c.h.b16 %v40
  %v345 = vunpack.c.l.b16 %v41
  %v346 = vunpack.c.l.b16 %v42
  %v347 = vunpack.c.h.b16 %v42
  %v348 = vunpack.c.l.b16 %v43
  %v349 = vunpack.c.l.b16 %v44
  %v350 = vunpack.c.h.b16 %v44
  %v351 = vunpack.c.l.b16 %v45
  %v352 = vunpack.c.l.b16 %v46
  %v353 = vunpack.c.h.b16 %v46
  %v354 = vunpack.c.l.b16 %v47
  %v355 = vunpack.c.l.b16 %v48
  %v356 = vunpack.c.h.b16 %v48
  %v357 = vunpack.c.l.b16 %v49
  %v358 = vunpack.c.l.b16 %v50
  %v359 = vunpack.c.h.b16 %v50
  %v360 = vunpack.c.l.b16 %v51
  %v361 = vunpack.c.l.b16 %v52
  %v362 = vunpack.c.h.b16 %v52
  %v363 = vunpack.c.l.b16 %v53
  %v364 = vunpack.c.l.b16 %v54
  %v365 = vunpack.c.h.b16 %v54
  %v366 = vunpack.c.l.b16 %v55
  %v367 = vunpack.c.l.b16 %v56
  %v368 = vunpack.c.h.b16 %v56
  %v369 = vunpack.c.l.b16 %v57
  %v370 = vunpack.c.l.b16 %v58
  %v371 = vunpack.c.h.b16 %v58
  %v372 = vunpack.c.l.b16 %v59
  %v373 = vunpack.c.l.b16 %v60
  %v374 = vunpack.c.h.b16 %v60
  %v375 = vunpack.c.l.b16 %v61
  %v376 = vunpack.c.l.b16 %v62
  %v377 = vunpack.c.h.b16 %v62
  %v378 = vunpack.c.l.b16 %v63
  %v379 = vunpack.c.l.b16 %v64
  %v380 = vunpack.c.h.b16 %v64
  %v381 = vunpack.c.l.b16 %v65
  %v382 = vunpack.c.l.b16 %v66
  %v383 = vunpack.c.h.b16 %v66
  %v384 = vunpack.c.l.b16 %v67
  %v385 = vunpack.c.l.b16 %v68
  %v386 = vunpack.c.h.b16 %v68
  %v387 = vunpack.c.l.b16 %v69
  %v388 = vunpack.c.l.b16 %v70
  %v389 = vunpack.c.h.b16 %v70
  %v390 = vunpack.c.l.b16 %v71
  %v391 = vunpack.c.l.b16 %v72
  %v392 = vunpack.c.h.b16 %v72
  %v393 = vunpack.c.l.b16 %v73
  %v394 = vunpack.c.l.b16 %v74
  %v395 = vunpack.c.h.b16 %v74
  %v396 = vunpack.c.l.b16 %v75
  %v397 = vunpack.c.l.b16 %v76
  %v398 = vunpack.c.h.b16 %v76
  %v399 = vunpack.c.l.b16 %v77
  %v400 = vunpack.c.l.b16 %v78
  %v401 = vunpack.c.h.b16 %v78
  %v402 = vunpack.c.l.b16 %v79
  %v403 = vunpack.c.l.b16 %v80
  %v404 = vunpack.c.h.b16 %v80
  %v405 = vunpack.c.l.b16 %v81
  %v406 = vunpack.c.l.b16 %v82
  %v407 = vunpack.c.h.b16 %v82
  %v408 = vunpack.c.l.b16 %v83
  %v409 = vunpack.c.l.b16 %v84
  %v410 = vunpack.c.h.b16 %v84
  %v411 = vunpack.c.l.b16 %v85
  %v412 = vunpack.c.l.b16 %v86
  %v413 = vunpack.c.h.b16 %v86
  %v414 = vunpack.c.l.b16 %v87
  %v415 = vunpack.c.l.b16 %v88
  %v416 = vunpack.c.h.b16 %v88
  %v417 = vunpack.c.l.b16 %v89
  %v418 = vunpack.c.l.b16 %v90
  %v419 = vunpack.c.h.b16 %v90
  %v420 = vunpack.c.l.b16 %v91
  %v421 = vunpack.c.l.b16 %v92
  %v422 = vunpack.c.h.b16 %v92
  %v423 = vunpack.c.l.b16 %v93
  %v424 = vunpack.c.l.b16 %v94
  %v425 = vunpack.c.h.b16 %v94
  %v426 = vunpack.c.l.b16 %v95
  %v427 = vunpack.c.l.b16 %v96
  %v428 = vunpack.c.h.b16 %v96
  %v429 = vunpack.c.l.b16 %v97
  %v430 = vunpack.c.l.b16 %v98
  %v431 = vunpack.c.h.b16 %v98
  %v432 = vunpack.c.l.b16 %v99
  %v433 = vunpack.c.l.b16 %v100
  %v434 = vunpack.c.h.b16 %v100
  %v435 = vunpack.c.l.b16 %v101
  %v436 = vunpack.c.l.b16 %v102
  %v437 = vunpack.c.h.b16 %v102
  %v438 = vunpack.c.l.b16 %v103
  %v439 = vunpack.c.l.b16 %v104
  %v440 = vunpack.c.h.b16 %v104
  %v441 = vunpack.c.l.b16 %v105
  %v442 = vunpack.c.l.b16 %v106
  %v443 = vunpack.c.h.b16 %v106
  %v444 = vunpack.c.l.b16 %v107
  %v445 = vunpack.c.l.b16 %v108
  %v446 = vunpack.c.h.b16 %v108
  %v447 = vunpack.c.l.b16 %v109
  %v448 = vunpack.c.l.b16 %v110
  %v449 = vunpack.c.h.b16 %v110
  %v450 = vunpack.c.l.b16 %v111
  %v451 = vunpack.c.l.b16 %v112
  %v452 = vunpack.c.h.b16 %v112
  %v453 = vunpack.c.l.b16 %v113
  %v454 = vunpack.c.l.b16 %v114
  %v455 = vunpack.c.h.b16 %v114
  %v456 = vunpack.c.l.b16 %v115
  %v457 = vunpack.c.l.b16 %v116
  %v458 = vunpack.c.h.b16 %v116
  %v459 = vunpack.c.l.b16 %v117
  %v460 = vunpack.c.l.b16 %v118
  %v461 = vunpack.c.h.b16 %v118
  %v462 = vunpack.c.l.b16 %v119
  %v463 = vunpack.c.l.b16 %v120
  %v464 = vunpack.c.h.b16 %v120
  %v465 = vunpack.c.l.b16 %v121
  %v466 = vunpack.c.l.b16 %v122
  %v467 = vunpack.c.h.b16 %v122
  %v468 = vunpack.c.l.b16 %v123
  %v469 = vunpack.c.l.b16 %v124
  %v470 = vunpack.c.h.b16 %v124
  %v471 = vunpack.c.l.b16 %v125
  %v472 = vunpack.c.l.b16 %v126
  %v473 = vunpack.c.h.b16 %v126
  %v474 = vunpack.c.l.b16 %v127
  %v475 = vunpack.c.l.b16 %v128
  %v476 = vunpack.c.h.b16 %v128
  %v477 = vunpack.c.l.b16 %v129
  %v478 = vunpack.c.l.b16 %v130
  %v479 = vunpack.c.h.b16 %v130
  %v480 = vunpack.c.l.b16 %v131
  %v481 = vunpack.c.l.b16 %v132
  %v482 = vunpack.c.h.b16 %v132
  %v483 = vunpack.c.l.b16 %v133
  %v484 = vunpack.c.l.b16 %v134
  %v485 = vunpack.c.h.b16 %v134
  %v486 = vunpack.c.l.b16 %v135
  %v487 = vunpack.c.l.b16 %v136
  %v488 = vunpack.c.h.b16 %v136
  %v489 = vunpack.c.l.b16 %v137
  %v490 = vunpack.c.l.b16 %v138
  %v491 = vunpack.c.h.b16 %v138
  %v492 = vunpack.c.l.b16 %v139
  %v493 = vunpack.c.l.b16 %v140
  %v494 = vunpack.c.h.b16 %v140
  %v495 = vunpack.c.l.b16 %v141
  %v496 = vunpack.c.l.b16 %v142
  %v497 = vunpack.c.h.b16 %v142
  %v498 = vunpack.c.l.b16 %v143
  %v499 = vunpack.c.l.b16 %v144
  %v500 = vunpack.c.h.b16 %v144
  %v501 = vunpack.c.l.b16 %v145
  %v502 = vpack.c.b16 %v313, %v310
  %v503 = vpack.c.b16 %v314, %v311
  %v504 = vpack.c.b16 %v315, %v312
  %v505 = vpack.c.b16 %v319, %v316
  %v506 = vpack.c.b16 %v320, %v317
  %v507 = vpack.c.b16 %v321, %v318
  %v508 = vpack.c.b16 %v325, %v322
  %v509 = vpack.c.b16 %v326, %v323
  %v510 = vpack.c.b16 %v327, %v324
  %v511 = vpack.c.b16 %v331, %v328
  %v512 = vpack.c.b16 %v332, %v329
  %v513 = vpack.c.b16 %v333, %v330
  %v514 = vpack.c.b16 %v337, %v334
  %v515 = vpack.c.b16 %v338, %v335
  %v516 = vpack.c.b16 %v339, %v336
  %v517 = vpack.c.b16 %v343, %v340
  %v518 = vpack.c.b16 %v344, %v341
  %v519 = vpack.c.b16 %v345, %v342
  %v520 = vpack.c.b16 %v349, %v346
  %v521 = vpack.c.b16 %v350, %v347
  %v522 = vpack.c.b16 %v351, %v348
  %v523 = vpack.c.b16 %v355, %v352
  %v524 = vpack.c.b16 %v356, %v353
  %v525 = vpack.c.b16 %v357, %v354
  %v526 = vpack.c.b16 %v361, %v358
  %v527 = vpack.c.b16 %v362, %v359
  %v528 = vpack.c.b16 %v363, %v360
  %v529 = vpack.c.b16 %v367, %v364
  %v530 = vpack.c.b16 %v368, %v365
  %v531 = vpack.c.b16 %v369, %v366
  %v532 = vpack.c.b16 %v373, %v370
  %v533 = vpack.c.b16 %v374, %v371
  %v534 = vpack.c.b16 %v375, %v372
  %v535 = vpack.c.b16 %v379, %v376
  %v536 = vpack.c.b16 %v380, %v377
  %v537 = vpack.c.b16 %v381, %v378
  %v538 = vpack.c.b16 %v385, %v382
  %v539 = vpack.c.b16 %v386, %v383
  %v540 = vpack.c.b16 %v387, %v384
  %v541 = vpack.c.b16 %v391, %v388
  %v542 = vpack.c.b16 %v392, %v389
  %v543 = vpack.c.b16 %v393, %v390
  %v544 = vpack.c.b16 %v397, %v394
  %v545 = vpack.c.b16 %v398, %v395
  %v546 = vpack.c.b16 %v399, %v396
  %v547 = vpack.c.b16 %v403, %v400
  %v548 = vpack.c.b16 %v404, %v401
  %v549 = vpack.c.b16 %v405, %v402
  %v550 = vpack.c.b16 %v409, %v406
  %v551 = vpack.c.b16 %v410, %v407
  %v552 = vpack.c.b16 %v411, %v408
  %v553 = vpack.c.b16 %v415, %v412
  %v554 = vpack.c.b16 %v416, %v413
  %v555 = vpack.c.b16 %v417, %v414
  %v556 = vpack.c.b16 %v421, %v418
  %v557 = vpack.c.b16 %v422, %v419
  %v558 = vpack.c.b16 %v423, %v420
  %v559 = vpack.c.b16 %v427, %v424
  %v560 = vpack.c.b16 %v428, %v425
  %v561 = vpack.c.b16 %v429, %v426
  %v562 = vpack.c.b16 %v433, %v430
  %v563 = vpack.c.b16 %v434, %v431
  %v564 = vpack.c.b16 %v435, %v432
  %v565 = vpack.c.b16 %v439, %v436
  %v566 = vpack.c.b16 %v440, %v437
  %v567 = vpack.c.b16 %v441, %v438
  %v568 = vpack.c.b16 %v445, %v442
  %v569 = vpack.c.b16 %v446, %v443
  %v570 = vpack.c.b16 %v447, %v444
  %v571 = vpack.c.b16 %v451, %v448
  %v572 = vpack.c.b16 %v452, %v449
  %v573 = vpack.c.b16 %v453, %v450
  %v574 = vpack.c.b16 %v457, %v454
  %v575 = vpack.c.b16 %v458, %v455
  %v576 = vpack.c.b16 %v459, %v456
  %v577 = vpack.c.b16 %v463, %v460
  %v578 = vpack.c.b16 %v464, %v461
  %v579 = vpack.c.b16 %v465, %v462
  %v580 = vpack.c.b16 %v469, %v466
  %v581 = vpack.c.b16 %v470, %v467
  %v582 = vpack.c.b16 %v471, %v468
  %v583 = vpack.c.b16 %v475, %v472
  %v584 = vpack.c.b16 %v476, %v473
  %v585 = vpack.c.b16 %v477, %v474
  %v586 = vpack.c.b16 %v481, %v478
  %v587 = vpack.c.b16 %v482, %v479
  %v588 = vpack.c.b16 %v483, %v480
  %v589 = vpack.c.b16 %v487, %v484
  %v590 = vpack.c.b16 %v488, %v485
  %v591 = vpack.c.b16 %v489, %v486
  %v592 = vpack.c.b16 %v493, %v490
  %v593 = vpack.c.b16 %v494, %v491
  %v594 = vpack.c.b16 %v495, %v492
  %v595 = vpack.c.b16 %v499, %v496
  %v596 = vpack.c.b16 %v500, %v497
  %v597 = vpack.c.b16 %v501, %v498
  %v698 = vunpack.c.l.b16 %v146
  %v699 = vunpack.c.l.b16 %v147
  %v700 = vunpack.c.l.b16 %v148
  %v701 = vunpack.c.l.b16 %v149
  %v702 = vunpack.c.l.b16 %v150
  %v703 = vunpack.c.l.b16 %v151
  %v704 = vunpack.c.l.b16 %v152
  %v705 = vunpack.c.l.b16 %v153
  %v706 = vunpack.c.l.b16 %v154
  %v707 = vunpack.c.l.b16 %v155
  %v708 = vunpack.c.l.b16 %v156
  %v709 = vunpack.c.l.b16 %v157
  %v710 = vunpack.c.l.b16 %v158
  %v711 = vunpack.c.l.b16 %v159
  %v712 = vunpack.c.l.b16 %v160
  %v713 = vunpack.c.l.b16 %v161
  %v714 = vunpack.c.l.b16 %v162
  %v715 = vunpack.c.l.b16 %v163
  %v716 = vunpack.c.l.b16 %v164
  %v717 = vunpack.c.l.b16 %v165
  %v718 = vunpack.c.l.b16 %v166
  %v719 = vunpack.c.l.b16 %v167
  %v720 = vunpack.c.l.b16 %v168
  %v721 = vunpack.c.l.b16 %v169
  %v722 = vunpack.c.l.b16 %v170
  %v723 = vunpack.c.l.b16 %v171
  %v724 = vunpack.c.l.b16 %v172
  %v725 = vunpack.c.l.b16 %v173
  %v726 = vunpack.c.l.b16 %v174
  %v727 = vunpack.c.l.b16 %v175
  %v728 = vunpack.c.l.b16 %v176
  %v729 = vunpack.c.l.b16 %v177
  %v730 = vunpack.c.l.b16 %v178
  %v731 = vunpack.c.l.b16 %v179
  %v732 = vunpack.c.l.b16 %v180
  %v733 = vunpack.c.l.b16 %v181
  %v734 = vpack.c.b16 %v699, %v698
  %v735 = vpack.c.b16 %v701, %v700
  %v736 = vpack.c.b16 %v703, %v702
  %v737 = vpack.c.b16 %v705, %v704
  %v738 = vpack.c.b16 %v707, %v706
  %v739 = vpack.c.b16 %v709, %v708
  %v740 = vpack.c.b16 %v711, %v710
  %v741 = vpack.c.b16 %v713, %v712
  %v742 = vpack.c.b16 %v715, %v714
  %v743 = vpack.c.b16 %v717, %v716
  %v744 = vpack.c.b16 %v719, %v718
  %v745 = vpack.c.b16 %v721, %v720
  %v746 = vpack.c.b16 %v723, %v722
  %v747 = vpack.c.b16 %v725, %v724
  %v748 = vpack.c.b16 %v727, %v726
  %v749 = vpack.c.b16 %v729, %v728
  %v750 = vpack.c.b16 %v731, %v730
  %v751 = vpack.c.b16 %v733, %v732
  %vm770 = vcmask 261120
  %v772 = vsel %vm770, %v504, 0
  %v775 = vsel %vm770, %v507, 0
  %v778 = vsel %vm770, %v510, 0
  %v781 = vsel %vm770, %v513, 0
  %v784 = vsel %vm770, %v516, 0
  %v787 = vsel %vm770, %v519, 0
  %v790 = vsel %vm770, %v522, 0
  %v793 = vsel %vm770, %v525, 0
  %v796 = vsel %vm770, %v528, 0
  %v799 = vsel %vm770, %v531, 0
  %v802 = vsel %vm770, %v534, 0
  %v805 = vsel %vm770, %v537, 0
  %v808 = vsel %vm770, %v540, 0
  %v811 = vsel %vm770, %v543, 0
  %v814 = vsel %vm770, %v546, 0
  %v817 = vsel %vm770, %v549, 0
  %v820 = vsel %vm770, %v552, 0
  %v823 = vsel %vm770, %v555, 0
  %v826 = vsel %vm770, %v558, 0
  %v829 = vsel %vm770, %v561, 0
  %v832 = vsel %vm770, %v564, 0
  %v835 = vsel %vm770, %v567, 0
  %v838 = vsel %vm770, %v570, 0
  %v841 = vsel %vm770, %v573, 0
  %v844 = vsel %vm770, %v576, 0
  %v847 = vsel %vm770, %v579, 0
  %v850 = vsel %vm770, %v582, 0
  %v853 = vsel %vm770, %v585, 0
  %v856 = vsel %vm770, %v588, 0
  %v859 = vsel %vm770, %v591, 0
  %v862 = vsel %vm770, %v594, 0
  %v865 = vsel %vm770, %v597, 0
  %867 = vmatpush.bf16.msra.mxu0 %v741
  %868 = vmatpush.bf16.msra.mxu0 %v740
  %869 = vmatpush.bf16.msra.mxu0 %v739
  %870 = vmatpush.bf16.msra.mxu0 %v738
  %871 = vmatpush.bf16.msra.mxu0 %v737
  %872 = vmatpush.bf16.msra.mxu0 %v736
  %873 = vmatpush.bf16.msra.mxu0 %v735
  %874 = vmatpush.bf16.msra.mxu0 %v734
  %875 = vmatmul.bf16.gmra.mxu0 %v502
  %v876 = vpop.f32.mrf.mxu0
  %v877 = vadd.f32 0.0, %v876
  %v878 = vpop.f32.mrf.mxu0
  %v879 = vadd.f32 0.0, %v878
  %880 = vmatmul.bf16.gmra.mxu0 %v505
  %v881 = vpop.f32.mrf.mxu0
  %v882 = vadd.f32 0.0, %v881
  %v883 = vpop.f32.mrf.mxu0
  %v884 = vadd.f32 0.0, %v883
  %885 = vmatmul.bf16.gmra.mxu0 %v508
  %v886 = vpop.f32.mrf.mxu0
  %v887 = vadd.f32 0.0, %v886
  %v888 = vpop.f32.mrf.mxu0
  %v889 = vadd.f32 0.0, %v888
  %890 = vmatmul.bf16.gmra.mxu0 %v511
  %v891 = vpop.f32.mrf.mxu0
  %v892 = vadd.f32 0.0, %v891
  %v893 = vpop.f32.mrf.mxu0
  %v894 = vadd.f32 0.0, %v893
  %895 = vmatmul.bf16.gmra.mxu0 %v514
  %v896 = vpop.f32.mrf.mxu0
  %v897 = vadd.f32 0.0, %v896
  %v898 = vpop.f32.mrf.mxu0
  %v899 = vadd.f32 0.0, %v898
  %900 = vmatmul.bf16.gmra.mxu0 %v517
  %v901 = vpop.f32.mrf.mxu0
  %v902 = vadd.f32 0.0, %v901
  %v903 = vpop.f32.mrf.mxu0
  %v904 = vadd.f32 0.0, %v903
  %905 = vmatmul.bf16.gmra.mxu0 %v520
  %v906 = vpop.f32.mrf.mxu0
  %v907 = vadd.f32 0.0, %v906
  %v908 = vpop.f32.mrf.mxu0
  %v909 = vadd.f32 0.0, %v908
  %910 = vmatmul.bf16.gmra.mxu0 %v523
  %v911 = vpop.f32.mrf.mxu0
  %v912 = vadd.f32 0.0, %v911
  %v913 = vpop.f32.mrf.mxu0
  %v914 = vadd.f32 0.0, %v913
  %915 = vmatmul.bf16.gmra.mxu0 %v526
  %v916 = vpop.f32.mrf.mxu0
  %v917 = vadd.f32 0.0, %v916
  %v918 = vpop.f32.mrf.mxu0
  %v919 = vadd.f32 0.0, %v918
  %920 = vmatmul.bf16.gmra.mxu0 %v529
  %v921 = vpop.f32.mrf.mxu0
  %v922 = vadd.f32 0.0, %v921
  %v923 = vpop.f32.mrf.mxu0
  %v924 = vadd.f32 0.0, %v923
  %925 = vmatmul.bf16.gmra.mxu0 %v532
  %v926 = vpop.f32.mrf.mxu0
  %v927 = vadd.f32 0.0, %v926
  %v928 = vpop.f32.mrf.mxu0
  %v929 = vadd.f32 0.0, %v928
  %930 = vmatmul.bf16.gmra.mxu0 %v535
  %v931 = vpop.f32.mrf.mxu0
  %v932 = vadd.f32 0.0, %v931
  %v933 = vpop.f32.mrf.mxu0
  %v934 = vadd.f32 0.0, %v933
  %935 = vmatmul.bf16.gmra.mxu0 %v538
  %v936 = vpop.f32.mrf.mxu0
  %v937 = vadd.f32 0.0, %v936
  %v938 = vpop.f32.mrf.mxu0
  %v939 = vadd.f32 0.0, %v938
  %940 = vmatmul.bf16.gmra.mxu0 %v541
  %v941 = vpop.f32.mrf.mxu0
  %v942 = vadd.f32 0.0, %v941
  %v943 = vpop.f32.mrf.mxu0
  %v944 = vadd.f32 0.0, %v943
  %945 = vmatmul.bf16.gmra.mxu0 %v544
  %v946 = vpop.f32.mrf.mxu0
  %v947 = vadd.f32 0.0, %v946
  %v948 = vpop.f32.mrf.mxu0
  %v949 = vadd.f32 0.0, %v948
  %950 = vmatmul.bf16.gmra.mxu0 %v547
  %v951 = vpop.f32.mrf.mxu0
  %v952 = vadd.f32 0.0, %v951
  %v953 = vpop.f32.mrf.mxu0
  %v954 = vadd.f32 0.0, %v953
  %955 = vmatmul.bf16.gmra.mxu0 %v550
  %v956 = vpop.f32.mrf.mxu0
  %v957 = vadd.f32 0.0, %v956
  %v958 = vpop.f32.mrf.mxu0
  %v959 = vadd.f32 0.0, %v958
  %960 = vmatmul.bf16.gmra.mxu0 %v553
  %v961 = vpop.f32.mrf.mxu0
  %v962 = vadd.f32 0.0, %v961
  %v963 = vpop.f32.mrf.mxu0
  %v964 = vadd.f32 0.0, %v963
  %965 = vmatmul.bf16.gmra.mxu0 %v556
  %v966 = vpop.f32.mrf.mxu0
  %v967 = vadd.f32 0.0, %v966
  %v968 = vpop.f32.mrf.mxu0
  %v969 = vadd.f32 0.0, %v968
  %970 = vmatmul.bf16.gmra.mxu0 %v559
  %v971 = vpop.f32.mrf.mxu0
  %v972 = vadd.f32 0.0, %v971
  %v973 = vpop.f32.mrf.mxu0
  %v974 = vadd.f32 0.0, %v973
  %975 = vmatmul.bf16.gmra.mxu0 %v562
  %v976 = vpop.f32.mrf.mxu0
  %v977 = vadd.f32 0.0, %v976
  %v978 = vpop.f32.mrf.mxu0
  %v979 = vadd.f32 0.0, %v978
  %980 = vmatmul.bf16.gmra.mxu0 %v565
  %v981 = vpop.f32.mrf.mxu0
  %v982 = vadd.f32 0.0, %v981
  %v983 = vpop.f32.mrf.mxu0
  %v984 = vadd.f32 0.0, %v983
  %985 = vmatmul.bf16.gmra.mxu0 %v568
  %v986 = vpop.f32.mrf.mxu0
  %v987 = vadd.f32 0.0, %v986
  %v988 = vpop.f32.mrf.mxu0
  %v989 = vadd.f32 0.0, %v988
  %990 = vmatmul.bf16.gmra.mxu0 %v571
  %v991 = vpop.f32.mrf.mxu0
  %v992 = vadd.f32 0.0, %v991
  %v993 = vpop.f32.mrf.mxu0
  %v994 = vadd.f32 0.0, %v993
  %995 = vmatmul.bf16.gmra.mxu0 %v574
  %v996 = vpop.f32.mrf.mxu0
  %v997 = vadd.f32 0.0, %v996
  %v998 = vpop.f32.mrf.mxu0
  %v999 = vadd.f32 0.0, %v998
  %1000 = vmatmul.bf16.gmra.mxu0 %v577
  %v1001 = vpop.f32.mrf.mxu0
  %v1002 = vadd.f32 0.0, %v1001
  %v1003 = vpop.f32.mrf.mxu0
  %v1004 = vadd.f32 0.0, %v1003
  %1005 = vmatmul.bf16.gmra.mxu0 %v580
  %v1006 = vpop.f32.mrf.mxu0
  %v1007 = vadd.f32 0.0, %v1006
  %v1008 = vpop.f32.mrf.mxu0
  %v1009 = vadd.f32 0.0, %v1008
  %1010 = vmatmul.bf16.gmra.mxu0 %v583
  %v1011 = vpop.f32.mrf.mxu0
  %v1012 = vadd.f32 0.0, %v1011
  %v1013 = vpop.f32.mrf.mxu0
  %v1014 = vadd.f32 0.0, %v1013
  %1015 = vmatmul.bf16.gmra.mxu0 %v586
  %v1016 = vpop.f32.mrf.mxu0
  %v1017 = vadd.f32 0.0, %v1016
  %v1018 = vpop.f32.mrf.mxu0
  %v1019 = vadd.f32 0.0, %v1018
  %1020 = vmatmul.bf16.gmra.mxu0 %v589
  %v1021 = vpop.f32.mrf.mxu0
  %v1022 = vadd.f32 0.0, %v1021
  %v1023 = vpop.f32.mrf.mxu0
  %v1024 = vadd.f32 0.0, %v1023
  %1025 = vmatmul.bf16.gmra.mxu0 %v592
  %v1026 = vpop.f32.mrf.mxu0
  %v1027 = vadd.f32 0.0, %v1026
  %v1028 = vpop.f32.mrf.mxu0
  %v1029 = vadd.f32 0.0, %v1028
  %1030 = vmatmul.bf16.gmra.mxu0 %v595
  %v1031 = vpop.f32.mrf.mxu0
  %v1032 = vadd.f32 0.0, %v1031
  %v1033 = vpop.f32.mrf.mxu0
  %v1034 = vadd.f32 0.0, %v1033
  %1035 = vdwg.mxu0
  %1036 = vmatpush.bf16.msra.mxu0 %v749
  %1037 = vmatpush.bf16.msra.mxu0 %v748
  %1038 = vmatpush.bf16.msra.mxu0 %v747
  %1039 = vmatpush.bf16.msra.mxu0 %v746
  %1040 = vmatpush.bf16.msra.mxu0 %v745
  %1041 = vmatpush.bf16.msra.mxu0 %v744
  %1042 = vmatpush.bf16.msra.mxu0 %v743
  %1043 = vmatpush.bf16.msra.mxu0 %v742
  %1044 = vmatmul.bf16.gmra.mxu0 %v503
  %v1045 = vpop.f32.mrf.mxu0
  %v1046 = vadd.f32 %v877, %v1045
  %v1047 = vpop.f32.mrf.mxu0
  %v1048 = vadd.f32 %v879, %v1047
  %1049 = vmatmul.bf16.gmra.mxu0 %v506
  %v1050 = vpop.f32.mrf.mxu0
  %v1051 = vadd.f32 %v882, %v1050
  %v1052 = vpop.f32.mrf.mxu0
  %v1053 = vadd.f32 %v884, %v1052
  %1054 = vmatmul.bf16.gmra.mxu0 %v509
  %v1055 = vpop.f32.mrf.mxu0
  %v1056 = vadd.f32 %v887, %v1055
  %v1057 = vpop.f32.mrf.mxu0
  %v1058 = vadd.f32 %v889, %v1057
  %1059 = vmatmul.bf16.gmra.mxu0 %v512
  %v1060 = vpop.f32.mrf.mxu0
  %v1061 = vadd.f32 %v892, %v1060
  %v1062 = vpop.f32.mrf.mxu0
  %v1063 = vadd.f32 %v894, %v1062
  %1064 = vmatmul.bf16.gmra.mxu0 %v515
  %v1065 = vpop.f32.mrf.mxu0
  %v1066 = vadd.f32 %v897, %v1065
  %v1067 = vpop.f32.mrf.mxu0
  %v1068 = vadd.f32 %v899, %v1067
  %1069 = vmatmul.bf16.gmra.mxu0 %v518
  %v1070 = vpop.f32.mrf.mxu0
  %v1071 = vadd.f32 %v902, %v1070
  %v1072 = vpop.f32.mrf.mxu0
  %v1073 = vadd.f32 %v904, %v1072
  %1074 = vmatmul.bf16.gmra.mxu0 %v521
  %v1075 = vpop.f32.mrf.mxu0
  %v1076 = vadd.f32 %v907, %v1075
  %v1077 = vpop.f32.mrf.mxu0
  %v1078 = vadd.f32 %v909, %v1077
  %1079 = vmatmul.bf16.gmra.mxu0 %v524
  %v1080 = vpop.f32.mrf.mxu0
  %v1081 = vadd.f32 %v912, %v1080
  %v1082 = vpop.f32.mrf.mxu0
  %v1083 = vadd.f32 %v914, %v1082
  %1084 = vmatmul.bf16.gmra.mxu0 %v527
  %v1085 = vpop.f32.mrf.mxu0
  %v1086 = vadd.f32 %v917, %v1085
  %v1087 = vpop.f32.mrf.mxu0
  %v1088 = vadd.f32 %v919, %v1087
  %1089 = vmatmul.bf16.gmra.mxu0 %v530
  %v1090 = vpop.f32.mrf.mxu0
  %v1091 = vadd.f32 %v922, %v1090
  %v1092 = vpop.f32.mrf.mxu0
  %v1093 = vadd.f32 %v924, %v1092
  %1094 = vmatmul.bf16.gmra.mxu0 %v533
  %v1095 = vpop.f32.mrf.mxu0
  %v1096 = vadd.f32 %v927, %v1095
  %v1097 = vpop.f32.mrf.mxu0
  %v1098 = vadd.f32 %v929, %v1097
  %1099 = vmatmul.bf16.gmra.mxu0 %v536
  %v1100 = vpop.f32.mrf.mxu0
  %v1101 = vadd.f32 %v932, %v1100
  %v1102 = vpop.f32.mrf.mxu0
  %v1103 = vadd.f32 %v934, %v1102
  %1104 = vmatmul.bf16.gmra.mxu0 %v539
  %v1105 = vpop.f32.mrf.mxu0
  %v1106 = vadd.f32 %v937, %v1105
  %v1107 = vpop.f32.mrf.mxu0
  %v1108 = vadd.f32 %v939, %v1107
  %1109 = vmatmul.bf16.gmra.mxu0 %v542
  %v1110 = vpop.f32.mrf.mxu0
  %v1111 = vadd.f32 %v942, %v1110
  %v1112 = vpop.f32.mrf.mxu0
  %v1113 = vadd.f32 %v944, %v1112
  %1114 = vmatmul.bf16.gmra.mxu0 %v545
  %v1115 = vpop.f32.mrf.mxu0
  %v1116 = vadd.f32 %v947, %v1115
  %v1117 = vpop.f32.mrf.mxu0
  %v1118 = vadd.f32 %v949, %v1117
  %1119 = vmatmul.bf16.gmra.mxu0 %v548
  %v1120 = vpop.f32.mrf.mxu0
  %v1121 = vadd.f32 %v952, %v1120
  %v1122 = vpop.f32.mrf.mxu0
  %v1123 = vadd.f32 %v954, %v1122
  %1124 = vmatmul.bf16.gmra.mxu0 %v551
  %v1125 = vpop.f32.mrf.mxu0
  %v1126 = vadd.f32 %v957, %v1125
  %v1127 = vpop.f32.mrf.mxu0
  %v1128 = vadd.f32 %v959, %v1127
  %1129 = vmatmul.bf16.gmra.mxu0 %v554
  %v1130 = vpop.f32.mrf.mxu0
  %v1131 = vadd.f32 %v962, %v1130
  %v1132 = vpop.f32.mrf.mxu0
  %v1133 = vadd.f32 %v964, %v1132
  %1134 = vmatmul.bf16.gmra.mxu0 %v557
  %v1135 = vpop.f32.mrf.mxu0
  %v1136 = vadd.f32 %v967, %v1135
  %v1137 = vpop.f32.mrf.mxu0
  %v1138 = vadd.f32 %v969, %v1137
  %1139 = vmatmul.bf16.gmra.mxu0 %v560
  %v1140 = vpop.f32.mrf.mxu0
  %v1141 = vadd.f32 %v972, %v1140
  %v1142 = vpop.f32.mrf.mxu0
  %v1143 = vadd.f32 %v974, %v1142
  %1144 = vmatmul.bf16.gmra.mxu0 %v563
  %v1145 = vpop.f32.mrf.mxu0
  %v1146 = vadd.f32 %v977, %v1145
  %v1147 = vpop.f32.mrf.mxu0
  %v1148 = vadd.f32 %v979, %v1147
  %1149 = vmatmul.bf16.gmra.mxu0 %v566
  %v1150 = vpop.f32.mrf.mxu0
  %v1151 = vadd.f32 %v982, %v1150
  %v1152 = vpop.f32.mrf.mxu0
  %v1153 = vadd.f32 %v984, %v1152
  %1154 = vmatmul.bf16.gmra.mxu0 %v569
  %v1155 = vpop.f32.mrf.mxu0
  %v1156 = vadd.f32 %v987, %v1155
  %v1157 = vpop.f32.mrf.mxu0
  %v1158 = vadd.f32 %v989, %v1157
  %1159 = vmatmul.bf16.gmra.mxu0 %v572
  %v1160 = vpop.f32.mrf.mxu0
  %v1161 = vadd.f32 %v992, %v1160
  %v1162 = vpop.f32.mrf.mxu0
  %v1163 = vadd.f32 %v994, %v1162
  %1164 = vmatmul.bf16.gmra.mxu0 %v575
  %v1165 = vpop.f32.mrf.mxu0
  %v1166 = vadd.f32 %v997, %v1165
  %v1167 = vpop.f32.mrf.mxu0
  %v1168 = vadd.f32 %v999, %v1167
  %1169 = vmatmul.bf16.gmra.mxu0 %v578
  %v1170 = vpop.f32.mrf.mxu0
  %v1171 = vadd.f32 %v1002, %v1170
  %v1172 = vpop.f32.mrf.mxu0
  %v1173 = vadd.f32 %v1004, %v1172
  %1174 = vmatmul.bf16.gmra.mxu0 %v581
  %v1175 = vpop.f32.mrf.mxu0
  %v1176 = vadd.f32 %v1007, %v1175
  %v1177 = vpop.f32.mrf.mxu0
  %v1178 = vadd.f32 %v1009, %v1177
  %1179 = vmatmul.bf16.gmra.mxu0 %v584
  %v1180 = vpop.f32.mrf.mxu0
  %v1181 = vadd.f32 %v1012, %v1180
  %v1182 = vpop.f32.mrf.mxu0
  %v1183 = vadd.f32 %v1014, %v1182
  %1184 = vmatmul.bf16.gmra.mxu0 %v587
  %v1185 = vpop.f32.mrf.mxu0
  %v1186 = vadd.f32 %v1017, %v1185
  %v1187 = vpop.f32.mrf.mxu0
  %v1188 = vadd.f32 %v1019, %v1187
  %1189 = vmatmul.bf16.gmra.mxu0 %v590
  %v1190 = vpop.f32.mrf.mxu0
  %v1191 = vadd.f32 %v1022, %v1190
  %v1192 = vpop.f32.mrf.mxu0
  %v1193 = vadd.f32 %v1024, %v1192
  %1194 = vmatmul.bf16.gmra.mxu0 %v593
  %v1195 = vpop.f32.mrf.mxu0
  %v1196 = vadd.f32 %v1027, %v1195
  %v1197 = vpop.f32.mrf.mxu0
  %v1198 = vadd.f32 %v1029, %v1197
  %1199 = vmatmul.bf16.gmra.mxu0 %v596
  %v1200 = vpop.f32.mrf.mxu0
  %v1201 = vadd.f32 %v1032, %v1200
  %v1202 = vpop.f32.mrf.mxu0
  %v1203 = vadd.f32 %v1034, %v1202
  %1204 = vdwg.mxu0
  %1205 = vmatpush.bf16.msra.mxu0 0
  %1206 = vmatpush.bf16.msra.mxu0 0
  %1207 = vmatpush.bf16.msra.mxu0 0
  %1208 = vmatpush.bf16.msra.mxu0 0
  %1209 = vmatpush.bf16.msra.mxu0 0
  %1210 = vmatpush.bf16.msra.mxu0 0
  %1211 = vmatpush.bf16.msra.mxu0 %v751
  %1212 = vmatpush.bf16.msra.mxu0 %v750
  %1213 = vmatmul.bf16.gmra.mxu0 %v772
  %v1214 = vpop.f32.mrf.mxu0
  %v1215 = vadd.f32 %v1046, %v1214
  %v1216 = vpop.f32.mrf.mxu0
  %v1217 = vadd.f32 %v1048, %v1216
  %1218 = vmatmul.bf16.gmra.mxu0 %v775
  %v1219 = vpop.f32.mrf.mxu0
  %v1220 = vadd.f32 %v1051, %v1219
  %v1221 = vpop.f32.mrf.mxu0
  %v1222 = vadd.f32 %v1053, %v1221
  %1223 = vmatmul.bf16.gmra.mxu0 %v778
  %v1224 = vpop.f32.mrf.mxu0
  %v1225 = vadd.f32 %v1056, %v1224
  %v1226 = vpop.f32.mrf.mxu0
  %v1227 = vadd.f32 %v1058, %v1226
  %1228 = vmatmul.bf16.gmra.mxu0 %v781
  %v1229 = vpop.f32.mrf.mxu0
  %v1230 = vadd.f32 %v1061, %v1229
  %v1231 = vpop.f32.mrf.mxu0
  %v1232 = vadd.f32 %v1063, %v1231
  %1233 = vmatmul.bf16.gmra.mxu0 %v784
  %v1234 = vpop.f32.mrf.mxu0
  %v1235 = vadd.f32 %v1066, %v1234
  %v1236 = vpop.f32.mrf.mxu0
  %v1237 = vadd.f32 %v1068, %v1236
  %1238 = vmatmul.bf16.gmra.mxu0 %v787
  %v1239 = vpop.f32.mrf.mxu0
  %v1240 = vadd.f32 %v1071, %v1239
  %v1241 = vpop.f32.mrf.mxu0
  %v1242 = vadd.f32 %v1073, %v1241
  %1243 = vmatmul.bf16.gmra.mxu0 %v790
  %v1244 = vpop.f32.mrf.mxu0
  %v1245 = vadd.f32 %v1076, %v1244
  %v1246 = vpop.f32.mrf.mxu0
  %v1247 = vadd.f32 %v1078, %v1246
  %1248 = vmatmul.bf16.gmra.mxu0 %v793
  %v1249 = vpop.f32.mrf.mxu0
  %v1250 = vadd.f32 %v1081, %v1249
  %v1251 = vpop.f32.mrf.mxu0
  %v1252 = vadd.f32 %v1083, %v1251
  %1253 = vmatmul.bf16.gmra.mxu0 %v796
  %v1254 = vpop.f32.mrf.mxu0
  %v1255 = vadd.f32 %v1086, %v1254
  %v1256 = vpop.f32.mrf.mxu0
  %v1257 = vadd.f32 %v1088, %v1256
  %1258 = vmatmul.bf16.gmra.mxu0 %v799
  %v1259 = vpop.f32.mrf.mxu0
  %v1260 = vadd.f32 %v1091, %v1259
  %v1261 = vpop.f32.mrf.mxu0
  %v1262 = vadd.f32 %v1093, %v1261
  %1263 = vmatmul.bf16.gmra.mxu0 %v802
  %v1264 = vpop.f32.mrf.mxu0
  %v1265 = vadd.f32 %v1096, %v1264
  %v1266 = vpop.f32.mrf.mxu0
  %v1267 = vadd.f32 %v1098, %v1266
  %1268 = vmatmul.bf16.gmra.mxu0 %v805
  %v1269 = vpop.f32.mrf.mxu0
  %v1270 = vadd.f32 %v1101, %v1269
  %v1271 = vpop.f32.mrf.mxu0
  %v1272 = vadd.f32 %v1103, %v1271
  %1273 = vmatmul.bf16.gmra.mxu0 %v808
  %v1274 = vpop.f32.mrf.mxu0
  %v1275 = vadd.f32 %v1106, %v1274
  %v1276 = vpop.f32.mrf.mxu0
  %v1277 = vadd.f32 %v1108, %v1276
  %1278 = vmatmul.bf16.gmra.mxu0 %v811
  %v1279 = vpop.f32.mrf.mxu0
  %v1280 = vadd.f32 %v1111, %v1279
  %v1281 = vpop.f32.mrf.mxu0
  %v1282 = vadd.f32 %v1113, %v1281
  %1283 = vmatmul.bf16.gmra.mxu0 %v814
  %v1284 = vpop.f32.mrf.mxu0
  %v1285 = vadd.f32 %v1116, %v1284
  %v1286 = vpop.f32.mrf.mxu0
  %v1287 = vadd.f32 %v1118, %v1286
  %1288 = vmatmul.bf16.gmra.mxu0 %v817
  %v1289 = vpop.f32.mrf.mxu0
  %v1290 = vadd.f32 %v1121, %v1289
  %v1291 = vpop.f32.mrf.mxu0
  %v1292 = vadd.f32 %v1123, %v1291
  %1293 = vmatmul.bf16.gmra.mxu0 %v820
  %v1294 = vpop.f32.mrf.mxu0
  %v1295 = vadd.f32 %v1126, %v1294
  %v1296 = vpop.f32.mrf.mxu0
  %v1297 = vadd.f32 %v1128, %v1296
  %1298 = vmatmul.bf16.gmra.mxu0 %v823
  %v1299 = vpop.f32.mrf.mxu0
  %v1300 = vadd.f32 %v1131, %v1299
  %v1301 = vpop.f32.mrf.mxu0
  %v1302 = vadd.f32 %v1133, %v1301
  %1303 = vmatmul.bf16.gmra.mxu0 %v826
  %v1304 = vpop.f32.mrf.mxu0
  %v1305 = vadd.f32 %v1136, %v1304
  %v1306 = vpop.f32.mrf.mxu0
  %v1307 = vadd.f32 %v1138, %v1306
  %1308 = vmatmul.bf16.gmra.mxu0 %v829
  %v1309 = vpop.f32.mrf.mxu0
  %v1310 = vadd.f32 %v1141, %v1309
  %v1311 = vpop.f32.mrf.mxu0
  %v1312 = vadd.f32 %v1143, %v1311
  %1313 = vmatmul.bf16.gmra.mxu0 %v832
  %v1314 = vpop.f32.mrf.mxu0
  %v1315 = vadd.f32 %v1146, %v1314
  %v1316 = vpop.f32.mrf.mxu0
  %v1317 = vadd.f32 %v1148, %v1316
  %1318 = vmatmul.bf16.gmra.mxu0 %v835
  %v1319 = vpop.f32.mrf.mxu0
  %v1320 = vadd.f32 %v1151, %v1319
  %v1321 = vpop.f32.mrf.mxu0
  %v1322 = vadd.f32 %v1153, %v1321
  %1323 = vmatmul.bf16.gmra.mxu0 %v838
  %v1324 = vpop.f32.mrf.mxu0
  %v1325 = vadd.f32 %v1156, %v1324
  %v1326 = vpop.f32.mrf.mxu0
  %v1327 = vadd.f32 %v1158, %v1326
  %1328 = vmatmul.bf16.gmra.mxu0 %v841
  %v1329 = vpop.f32.mrf.mxu0
  %v1330 = vadd.f32 %v1161, %v1329
  %v1331 = vpop.f32.mrf.mxu0
  %v1332 = vadd.f32 %v1163, %v1331
  %1333 = vmatmul.bf16.gmra.mxu0 %v844
  %v1334 = vpop.f32.mrf.mxu0
  %v1335 = vadd.f32 %v1166, %v1334
  %v1336 = vpop.f32.mrf.mxu0
  %v1337 = vadd.f32 %v1168, %v1336
  %1338 = vmatmul.bf16.gmra.mxu0 %v847
  %v1339 = vpop.f32.mrf.mxu0
  %v1340 = vadd.f32 %v1171, %v1339
  %v1341 = vpop.f32.mrf.mxu0
  %v1342 = vadd.f32 %v1173, %v1341
  %1343 = vmatmul.bf16.gmra.mxu0 %v850
  %v1344 = vpop.f32.mrf.mxu0
  %v1345 = vadd.f32 %v1176, %v1344
  %v1346 = vpop.f32.mrf.mxu0
  %v1347 = vadd.f32 %v1178, %v1346
  %1348 = vmatmul.bf16.gmra.mxu0 %v853
  %v1349 = vpop.f32.mrf.mxu0
  %v1350 = vadd.f32 %v1181, %v1349
  %v1351 = vpop.f32.mrf.mxu0
  %v1352 = vadd.f32 %v1183, %v1351
  %1353 = vmatmul.bf16.gmra.mxu0 %v856
  %v1354 = vpop.f32.mrf.mxu0
  %v1355 = vadd.f32 %v1186, %v1354
  %v1356 = vpop.f32.mrf.mxu0
  %v1357 = vadd.f32 %v1188, %v1356
  %1358 = vmatmul.bf16.gmra.mxu0 %v859
  %v1359 = vpop.f32.mrf.mxu0
  %v1360 = vadd.f32 %v1191, %v1359
  %v1361 = vpop.f32.mrf.mxu0
  %v1362 = vadd.f32 %v1193, %v1361
  %1363 = vmatmul.bf16.gmra.mxu0 %v862
  %v1364 = vpop.f32.mrf.mxu0
  %v1365 = vadd.f32 %v1196, %v1364
  %v1366 = vpop.f32.mrf.mxu0
  %v1367 = vadd.f32 %v1198, %v1366
  %1368 = vmatmul.bf16.gmra.mxu0 %v865
  %v1369 = vpop.f32.mrf.mxu0
  %v1370 = vadd.f32 %v1201, %v1369
  %v1371 = vpop.f32.mrf.mxu0
  %v1372 = vadd.f32 %v1203, %v1371
  %1373 = vdwg.mxu0
  %v1374 = vadd.f32 %v1215, %v1217
  %v1375 = vadd.f32 %v1374, %v1220
  %v1376 = vadd.f32 %v1375, %v1222
  %v1377 = vadd.f32 %v1376, %v1225
  %v1378 = vadd.f32 %v1377, %v1227
  %v1379 = vadd.f32 %v1378, %v1230
  %v1380 = vadd.f32 %v1379, %v1232
  %v1381 = vadd.f32 %v1380, %v1235
  %v1382 = vadd.f32 %v1381, %v1237
  %v1383 = vadd.f32 %v1382, %v1240
  %v1384 = vadd.f32 %v1383, %v1242
  %v1385 = vadd.f32 %v1384, %v1245
  %v1386 = vadd.f32 %v1385, %v1247
  %v1387 = vadd.f32 %v1386, %v1250
  %v1388 = vadd.f32 %v1387, %v1252
  %v1389 = vadd.f32 %v1388, %v1255
  %v1390 = vadd.f32 %v1389, %v1257
  %v1391 = vadd.f32 %v1390, %v1260
  %v1392 = vadd.f32 %v1391, %v1262
  %v1393 = vadd.f32 %v1392, %v1265
  %v1394 = vadd.f32 %v1393, %v1267
  %v1395 = vadd.f32 %v1394, %v1270
  %v1396 = vadd.f32 %v1395, %v1272
  %v1397 = vadd.f32 %v1396, %v1275
  %v1398 = vadd.f32 %v1397, %v1277
  %v1399 = vadd.f32 %v1398, %v1280
  %v1400 = vadd.f32 %v1399, %v1282
  %v1401 = vadd.f32 %v1400, %v1285
  %v1402 = vadd.f32 %v1401, %v1287
  %v1403 = vadd.f32 %v1402, %v1290
  %v1404 = vadd.f32 %v1403, %v1292
  %v1405 = vadd.f32 %v1404, %v1295
  %v1406 = vadd.f32 %v1405, %v1297
  %v1407 = vadd.f32 %v1406, %v1300
  %v1408 = vadd.f32 %v1407, %v1302
  %v1409 = vadd.f32 %v1408, %v1305
  %v1410 = vadd.f32 %v1409, %v1307
  %v1411 = vadd.f32 %v1410, %v1310
  %v1412 = vadd.f32 %v1411, %v1312
  %v1413 = vadd.f32 %v1412, %v1315
  %v1414 = vadd.f32 %v1413, %v1317
  %v1415 = vadd.f32 %v1414, %v1320
  %v1416 = vadd.f32 %v1415, %v1322
  %v1417 = vadd.f32 %v1416, %v1325
  %v1418 = vadd.f32 %v1417, %v1327
  %v1419 = vadd.f32 %v1418, %v1330
  %v1420 = vadd.f32 %v1419, %v1332
  %v1421 = vadd.f32 %v1420, %v1335
  %v1422 = vadd.f32 %v1421, %v1337
  %v1423 = vadd.f32 %v1422, %v1340
  %v1424 = vadd.f32 %v1423, %v1342
  %v1425 = vadd.f32 %v1424, %v1345
  %v1426 = vadd.f32 %v1425, %v1347
  %v1427 = vadd.f32 %v1426, %v1350
  %v1428 = vadd.f32 %v1427, %v1352
  %v1429 = vadd.f32 %v1428, %v1355
  %v1430 = vadd.f32 %v1429, %v1357
  %v1431 = vadd.f32 %v1430, %v1360
  %v1432 = vadd.f32 %v1431, %v1362
  %v1433 = vadd.f32 %v1432, %v1365
  %v1434 = vadd.f32 %v1433, %v1367
  %v1435 = vadd.f32 %v1434, %v1370
  %v1436 = vadd.f32 %v1435, %v1372
  %v1437 = vrot.slane %v1436, 4
  %v1438 = vadd.f32 %v1436, %v1437
  %v1439 = vrot.slane %v1438, 2
  %v1440 = vadd.f32 %v1438, %v1439
  %v1441 = vrot.slane %v1440, 1
  %v1442 = vadd.f32 %v1440, %v1441
  %v1443 = vmul.f32 %v1215, %v1215
  %v1444 = vmul.f32 %v1217, %v1217
  %v1445 = vmul.f32 %v1220, %v1220
  %v1446 = vmul.f32 %v1222, %v1222
  %v1447 = vmul.f32 %v1225, %v1225
  %v1448 = vmul.f32 %v1227, %v1227
  %v1449 = vmul.f32 %v1230, %v1230
  %v1450 = vmul.f32 %v1232, %v1232
  %v1451 = vmul.f32 %v1235, %v1235
  %v1452 = vmul.f32 %v1237, %v1237
  %v1453 = vmul.f32 %v1240, %v1240
  %v1454 = vmul.f32 %v1242, %v1242
  %v1455 = vmul.f32 %v1245, %v1245
  %v1456 = vmul.f32 %v1247, %v1247
  %v1457 = vmul.f32 %v1250, %v1250
  %v1458 = vmul.f32 %v1252, %v1252
  %v1459 = vmul.f32 %v1255, %v1255
  %v1460 = vmul.f32 %v1257, %v1257
  %v1461 = vmul.f32 %v1260, %v1260
  %v1462 = vmul.f32 %v1262, %v1262
  %v1463 = vmul.f32 %v1265, %v1265
  %v1464 = vmul.f32 %v1267, %v1267
  %v1465 = vmul.f32 %v1270, %v1270
  %v1466 = vmul.f32 %v1272, %v1272
  %v1467 = vmul.f32 %v1275, %v1275
  %v1468 = vmul.f32 %v1277, %v1277
  %v1469 = vmul.f32 %v1280, %v1280
  %v1470 = vmul.f32 %v1282, %v1282
  %v1471 = vmul.f32 %v1285, %v1285
  %v1472 = vmul.f32 %v1287, %v1287
  %v1473 = vmul.f32 %v1290, %v1290
  %v1474 = vmul.f32 %v1292, %v1292
  %v1475 = vmul.f32 %v1295, %v1295
  %v1476 = vmul.f32 %v1297, %v1297
  %v1477 = vmul.f32 %v1300, %v1300
  %v1478 = vmul.f32 %v1302, %v1302
  %v1479 = vmul.f32 %v1305, %v1305
  %v1480 = vmul.f32 %v1307, %v1307
  %v1481 = vmul.f32 %v1310, %v1310
  %v1482 = vmul.f32 %v1312, %v1312
  %v1483 = vmul.f32 %v1315, %v1315
  %v1484 = vmul.f32 %v1317, %v1317
  %v1485 = vmul.f32 %v1320, %v1320
  %v1486 = vmul.f32 %v1322, %v1322
  %v1487 = vmul.f32 %v1325, %v1325
  %v1488 = vmul.f32 %v1327, %v1327
  %v1489 = vmul.f32 %v1330, %v1330
  %v1490 = vmul.f32 %v1332, %v1332
  %v1491 = vmul.f32 %v1335, %v1335
  %v1492 = vmul.f32 %v1337, %v1337
  %v1493 = vmul.f32 %v1340, %v1340
  %v1494 = vmul.f32 %v1342, %v1342
  %v1495 = vmul.f32 %v1345, %v1345
  %v1496 = vmul.f32 %v1347, %v1347
  %v1497 = vmul.f32 %v1350, %v1350
  %v1498 = vmul.f32 %v1352, %v1352
  %v1499 = vmul.f32 %v1355, %v1355
  %v1500 = vmul.f32 %v1357, %v1357
  %v1501 = vmul.f32 %v1360, %v1360
  %v1502 = vmul.f32 %v1362, %v1362
  %v1503 = vmul.f32 %v1365, %v1365
  %v1504 = vmul.f32 %v1367, %v1367
  %v1505 = vmul.f32 %v1370, %v1370
  %v1506 = vmul.f32 %v1372, %v1372
  %v1507 = vadd.f32 %v1443, %v1444
  %v1508 = vadd.f32 %v1507, %v1445
  %v1509 = vadd.f32 %v1508, %v1446
  %v1510 = vadd.f32 %v1509, %v1447
  %v1511 = vadd.f32 %v1510, %v1448
  %v1512 = vadd.f32 %v1511, %v1449
  %v1513 = vadd.f32 %v1512, %v1450
  %v1514 = vadd.f32 %v1513, %v1451
  %v1515 = vadd.f32 %v1514, %v1452
  %v1516 = vadd.f32 %v1515, %v1453
  %v1517 = vadd.f32 %v1516, %v1454
  %v1518 = vadd.f32 %v1517, %v1455
  %v1519 = vadd.f32 %v1518, %v1456
  %v1520 = vadd.f32 %v1519, %v1457
  %v1521 = vadd.f32 %v1520, %v1458
  %v1522 = vadd.f32 %v1521, %v1459
  %v1523 = vadd.f32 %v1522, %v1460
  %v1524 = vadd.f32 %v1523, %v1461
  %v1525 = vadd.f32 %v1524, %v1462
  %v1526 = vadd.f32 %v1525, %v1463
  %v1527 = vadd.f32 %v1526, %v1464
  %v1528 = vadd.f32 %v1527, %v1465
  %v1529 = vadd.f32 %v1528, %v1466
  %v1530 = vadd.f32 %v1529, %v1467
  %v1531 = vadd.f32 %v1530, %v1468
  %v1532 = vadd.f32 %v1531, %v1469
  %v1533 = vadd.f32 %v1532, %v1470
  %v1534 = vadd.f32 %v1533, %v1471
  %v1535 = vadd.f32 %v1534, %v1472
  %v1536 = vadd.f32 %v1535, %v1473
  %v1537 = vadd.f32 %v1536, %v1474
  %v1538 = vadd.f32 %v1537, %v1475
  %v1539 = vadd.f32 %v1538, %v1476
  %v1540 = vadd.f32 %v1539, %v1477
  %v1541 = vadd.f32 %v1540, %v1478
  %v1542 = vadd.f32 %v1541, %v1479
  %v1543 = vadd.f32 %v1542, %v1480
  %v1544 = vadd.f32 %v1543, %v1481
  %v1545 = vadd.f32 %v1544, %v1482
  %v1546 = vadd.f32 %v1545, %v1483
  %v1547 = vadd.f32 %v1546, %v1484
  %v1548 = vadd.f32 %v1547, %v1485
  %v1549 = vadd.f32 %v1548, %v1486
  %v1550 = vadd.f32 %v1549, %v1487
  %v1551 = vadd.f32 %v1550, %v1488
  %v1552 = vadd.f32 %v1551, %v1489
  %v1553 = vadd.f32 %v1552, %v1490
  %v1554 = vadd.f32 %v1553, %v1491
  %v1555 = vadd.f32 %v1554, %v1492
  %v1556 = vadd.f32 %v1555, %v1493
  %v1557 = vadd.f32 %v1556, %v1494
  %v1558 = vadd.f32 %v1557, %v1495
  %v1559 = vadd.f32 %v1558, %v1496
  %v1560 = vadd.f32 %v1559, %v1497
  %v1561 = vadd.f32 %v1560, %v1498
  %v1562 = vadd.f32 %v1561, %v1499
  %v1563 = vadd.f32 %v1562, %v1500
  %v1564 = vadd.f32 %v1563, %v1501
  %v1565 = vadd.f32 %v1564, %v1502
  %v1566 = vadd.f32 %v1565, %v1503
  %v1567 = vadd.f32 %v1566, %v1504
  %v1568 = vadd.f32 %v1567, %v1505
  %v1569 = vadd.f32 %v1568, %v1506
  %v1570 = vrot.slane %v1569, 4
  %v1571 = vadd.f32 %v1569, %v1570
  %v1572 = vrot.slane %v1571, 2
  %v1573 = vadd.f32 %v1571, %v1572
  %v1574 = vrot.slane %v1573, 1
  %v1575 = vadd.f32 %v1573, %v1574
  %1577 = vrot.lane.b32.xlu0 %v1442, 96
  %v1578 = vpop.permute.xlu0 %1577
  %v1580 = vadd.f32 %v1442, %v1578
  %1582 = vrot.lane.b32.xlu0 %v1575, 96
  %v1583 = vpop.permute.xlu0 %1582
  %v1585 = vadd.f32 %v1575, %v1583
  %1586 = vrot.lane.b32.xlu0 %v1442, 64
  %v1587 = vpop.permute.xlu0 %1586
  %v1589 = vadd.f32 %v1580, %v1587
  %1590 = vrot.lane.b32.xlu0 %v1575, 64
  %v1591 = vpop.permute.xlu0 %1590
  %v1593 = vadd.f32 %v1585, %v1591
  %1594 = vrot.lane.b32.xlu0 %v1442, 32
  %v1595 = vpop.permute.xlu0 %1594
  %v1597 = vadd.f32 %v1589, %v1595
  %1598 = vrot.lane.b32.xlu0 %v1575, 32
  %v1599 = vpop.permute.xlu0 %1598
  %v1601 = vadd.f32 %v1593, %v1599
  %v1602 = vmul.f32 %v1597, 0.00048828125
  %v1603 = vmul.f32 %v1601, 0.00048828125
  %v1604 = vmul.f32 %v1602, %v1602
  %v1605 = vsub.f32 %v1603, %v1604
  %v1606 = vmax.f32 %v1605, 0.0
  %v1607 = vld [vmem:[%s2] sm:$0x1]
  %v1608 = vadd.f32 %v1606, 1e-05
  %v1609 = vrsqrt.pop %v1608
  %v1610 = vmul.f32 %v1609, %v1608
  %v1611 = vmul.f32 %v1610, %v1609
  %v1612 = vmul.f32 0.5, %v1611
  %v1613 = vsub.f32 1.5, %v1612
  %v1614 = vmul.f32 %v1609, %v1613
  %vm1615 = vweird.f32 %v1608
  %vm1616 = vweird.f32 %v1609
  %vm1617 = vmor %vm1615, %vm1616
  %v1618 = vsel %vm1617, %v1609, %v1614
  %v1619 = vmul.f32 %v1607, %v1618
  %v1620 = vld [vmem:[%s3] sm:$0x1]
  %v1621 = vmul.f32 %v1602, %v1619
  %v1622 = vsub.f32 %v1620, %v1621
  %v1624 = vperm.slane %v1619, 0
  %1625 = vrot.lane.b32.xlu0 %v1624, 32
  %v1626 = vpop.permute.xlu0 %1625
  %1628 = vrot.lane.b32.xlu0 %v1624, 64
  %v1629 = vpop.permute.xlu0 %1628
  %1631 = vrot.lane.b32.xlu0 %v1624, 96
  %v1632 = vpop.permute.xlu0 %1631
  %v1634 = vsel %vm770, %v1619, %v1626
  %vm1635 = vcmask 523264
  %v1636 = vsel %vm1635, %v1634, %v1629
  %vm1637 = vcmask 785408
  %v1638 = vsel %vm1637, %v1636, %v1632
  %v1640 = vperm.slane %v1622, 0
  %1641 = vrot.lane.b32.xlu0 %v1640, 32
  %v1642 = vpop.permute.xlu0 %1641
  %1644 = vrot.lane.b32.xlu0 %v1640, 64
  %v1645 = vpop.permute.xlu0 %1644
  %1647 = vrot.lane.b32.xlu0 %v1640, 96
  %v1648 = vpop.permute.xlu0 %1647
  %v1650 = vsel %vm770, %v1622, %v1642
  %v1651 = vsel %vm1635, %v1650, %v1645
  %v1652 = vsel %vm1637, %v1651, %v1648
  %v1653 = vperm.slane %v1638, 0
  %v1654 = vmul.f32 %v1215, %v1653
  %v1655 = vmul.f32 %v1217, %v1653
  %v1656 = vmul.f32 %v1220, %v1653
  %v1657 = vmul.f32 %v1222, %v1653
  %v1658 = vmul.f32 %v1225, %v1653
  %v1659 = vmul.f32 %v1227, %v1653
  %v1660 = vmul.f32 %v1230, %v1653
  %v1661 = vmul.f32 %v1232, %v1653
  %v1662 = vmul.f32 %v1235, %v1653
  %v1663 = vmul.f32 %v1237, %v1653
  %v1664 = vmul.f32 %v1240, %v1653
  %v1665 = vmul.f32 %v1242, %v1653
  %v1666 = vmul.f32 %v1245, %v1653
  %v1667 = vmul.f32 %v1247, %v1653
  %v1668 = vmul.f32 %v1250, %v1653
  %v1669 = vmul.f32 %v1252, %v1653
  %v1670 = vmul.f32 %v1255, %v1653
  %v1671 = vmul.f32 %v1257, %v1653
  %v1672 = vmul.f32 %v1260, %v1653
  %v1673 = vmul.f32 %v1262, %v1653
  %v1674 = vmul.f32 %v1265, %v1653
  %v1675 = vmul.f32 %v1267, %v1653
  %v1676 = vmul.f32 %v1270, %v1653
  %v1677 = vmul.f32 %v1272, %v1653
  %v1678 = vmul.f32 %v1275, %v1653
  %v1679 = vmul.f32 %v1277, %v1653
  %v1680 = vmul.f32 %v1280, %v1653
  %v1681 = vmul.f32 %v1282, %v1653
  %v1682 = vmul.f32 %v1285, %v1653
  %v1683 = vmul.f32 %v1287, %v1653
  %v1684 = vmul.f32 %v1290, %v1653
  %v1685 = vmul.f32 %v1292, %v1653
  %v1686 = vmul.f32 %v1295, %v1653
  %v1687 = vmul.f32 %v1297, %v1653
  %v1688 = vmul.f32 %v1300, %v1653
  %v1689 = vmul.f32 %v1302, %v1653
  %v1690 = vmul.f32 %v1305, %v1653
  %v1691 = vmul.f32 %v1307, %v1653
  %v1692 = vmul.f32 %v1310, %v1653
  %v1693 = vmul.f32 %v1312, %v1653
  %v1694 = vmul.f32 %v1315, %v1653
  %v1695 = vmul.f32 %v1317, %v1653
  %v1696 = vmul.f32 %v1320, %v1653
  %v1697 = vmul.f32 %v1322, %v1653
  %v1698 = vmul.f32 %v1325, %v1653
  %v1699 = vmul.f32 %v1327, %v1653
  %v1700 = vmul.f32 %v1330, %v1653
  %v1701 = vmul.f32 %v1332, %v1653
  %v1702 = vmul.f32 %v1335, %v1653
  %v1703 = vmul.f32 %v1337, %v1653
  %v1704 = vmul.f32 %v1340, %v1653
  %v1705 = vmul.f32 %v1342, %v1653
  %v1706 = vmul.f32 %v1345, %v1653
  %v1707 = vmul.f32 %v1347, %v1653
  %v1708 = vmul.f32 %v1350, %v1653
  %v1709 = vmul.f32 %v1352, %v1653
  %v1710 = vmul.f32 %v1355, %v1653
  %v1711 = vmul.f32 %v1357, %v1653
  %v1712 = vmul.f32 %v1360, %v1653
  %v1713 = vmul.f32 %v1362, %v1653
  %v1714 = vmul.f32 %v1365, %v1653
  %v1715 = vmul.f32 %v1367, %v1653
  %v1716 = vmul.f32 %v1370, %v1653
  %v1717 = vmul.f32 %v1372, %v1653
  %v1718 = vperm.slane %v1652, 0
  %v1719 = vadd.f32 %v1654, %v1718
  %v1720 = vadd.f32 %v1655, %v1718
  %v1721 = vadd.f32 %v1656, %v1718
  %v1722 = vadd.f32 %v1657, %v1718
  %v1723 = vadd.f32 %v1658, %v1718
  %v1724 = vadd.f32 %v1659, %v1718
  %v1725 = vadd.f32 %v1660, %v1718
  %v1726 = vadd.f32 %v1661, %v1718
  %v1727 = vadd.f32 %v1662, %v1718
  %v1728 = vadd.f32 %v1663, %v1718
  %v1729 = vadd.f32 %v1664, %v1718
  %v1730 = vadd.f32 %v1665, %v1718
  %v1731 = vadd.f32 %v1666, %v1718
  %v1732 = vadd.f32 %v1667, %v1718
  %v1733 = vadd.f32 %v1668, %v1718
  %v1734 = vadd.f32 %v1669, %v1718
  %v1735 = vadd.f32 %v1670, %v1718
  %v1736 = vadd.f32 %v1671, %v1718
  %v1737 = vadd.f32 %v1672, %v1718
  %v1738 = vadd.f32 %v1673, %v1718
  %v1739 = vadd.f32 %v1674, %v1718
  %v1740 = vadd.f32 %v1675, %v1718
  %v1741 = vadd.f32 %v1676, %v1718
  %v1742 = vadd.f32 %v1677, %v1718
  %v1743 = vadd.f32 %v1678, %v1718
  %v1744 = vadd.f32 %v1679, %v1718
  %v1745 = vadd.f32 %v1680, %v1718
  %v1746 = vadd.f32 %v1681, %v1718
  %v1747 = vadd.f32 %v1682, %v1718
  %v1748 = vadd.f32 %v1683, %v1718
  %v1749 = vadd.f32 %v1684, %v1718
  %v1750 = vadd.f32 %v1685, %v1718
  %v1751 = vadd.f32 %v1686, %v1718
  %v1752 = vadd.f32 %v1687, %v1718
  %v1753 = vadd.f32 %v1688, %v1718
  %v1754 = vadd.f32 %v1689, %v1718
  %v1755 = vadd.f32 %v1690, %v1718
  %v1756 = vadd.f32 %v1691, %v1718
  %v1757 = vadd.f32 %v1692, %v1718
  %v1758 = vadd.f32 %v1693, %v1718
  %v1759 = vadd.f32 %v1694, %v1718
  %v1760 = vadd.f32 %v1695, %v1718
  %v1761 = vadd.f32 %v1696, %v1718
  %v1762 = vadd.f32 %v1697, %v1718
  %v1763 = vadd.f32 %v1698, %v1718
  %v1764 = vadd.f32 %v1699, %v1718
  %v1765 = vadd.f32 %v1700, %v1718
  %v1766 = vadd.f32 %v1701, %v1718
  %v1767 = vadd.f32 %v1702, %v1718
  %v1768 = vadd.f32 %v1703, %v1718
  %v1769 = vadd.f32 %v1704, %v1718
  %v1770 = vadd.f32 %v1705, %v1718
  %v1771 = vadd.f32 %v1706, %v1718
  %v1772 = vadd.f32 %v1707, %v1718
  %v1773 = vadd.f32 %v1708, %v1718
  %v1774 = vadd.f32 %v1709, %v1718
  %v1775 = vadd.f32 %v1710, %v1718
  %v1776 = vadd.f32 %v1711, %v1718
  %v1777 = vadd.f32 %v1712, %v1718
  %v1778 = vadd.f32 %v1713, %v1718
  %v1779 = vadd.f32 %v1714, %v1718
  %v1780 = vadd.f32 %v1715, %v1718
  %v1781 = vadd.f32 %v1716, %v1718
  %v1782 = vadd.f32 %v1717, %v1718
  %v1783 = vmax.f32 %v1719, 0.0
  %v1784 = vmax.f32 %v1720, 0.0
  %v1785 = vmax.f32 %v1721, 0.0
  %v1786 = vmax.f32 %v1722, 0.0
  %v1787 = vmax.f32 %v1723, 0.0
  %v1788 = vmax.f32 %v1724, 0.0
  %v1789 = vmax.f32 %v1725, 0.0
  %v1790 = vmax.f32 %v1726, 0.0
  %v1791 = vmax.f32 %v1727, 0.0
  %v1792 = vmax.f32 %v1728, 0.0
  %v1793 = vmax.f32 %v1729, 0.0
  %v1794 = vmax.f32 %v1730, 0.0
  %v1795 = vmax.f32 %v1731, 0.0
  %v1796 = vmax.f32 %v1732, 0.0
  %v1797 = vmax.f32 %v1733, 0.0
  %v1798 = vmax.f32 %v1734, 0.0
  %v1799 = vmax.f32 %v1735, 0.0
  %v1800 = vmax.f32 %v1736, 0.0
  %v1801 = vmax.f32 %v1737, 0.0
  %v1802 = vmax.f32 %v1738, 0.0
  %v1803 = vmax.f32 %v1739, 0.0
  %v1804 = vmax.f32 %v1740, 0.0
  %v1805 = vmax.f32 %v1741, 0.0
  %v1806 = vmax.f32 %v1742, 0.0
  %v1807 = vmax.f32 %v1743, 0.0
  %v1808 = vmax.f32 %v1744, 0.0
  %v1809 = vmax.f32 %v1745, 0.0
  %v1810 = vmax.f32 %v1746, 0.0
  %v1811 = vmax.f32 %v1747, 0.0
  %v1812 = vmax.f32 %v1748, 0.0
  %v1813 = vmax.f32 %v1749, 0.0
  %v1814 = vmax.f32 %v1750, 0.0
  %v1815 = vmax.f32 %v1751, 0.0
  %v1816 = vmax.f32 %v1752, 0.0
  %v1817 = vmax.f32 %v1753, 0.0
  %v1818 = vmax.f32 %v1754, 0.0
  %v1819 = vmax.f32 %v1755, 0.0
  %v1820 = vmax.f32 %v1756, 0.0
  %v1821 = vmax.f32 %v1757, 0.0
  %v1822 = vmax.f32 %v1758, 0.0
  %v1823 = vmax.f32 %v1759, 0.0
  %v1824 = vmax.f32 %v1760, 0.0
  %v1825 = vmax.f32 %v1761, 0.0
  %v1826 = vmax.f32 %v1762, 0.0
  %v1827 = vmax.f32 %v1763, 0.0
  %v1828 = vmax.f32 %v1764, 0.0
  %v1829 = vmax.f32 %v1765, 0.0
  %v1830 = vmax.f32 %v1766, 0.0
  %v1831 = vmax.f32 %v1767, 0.0
  %v1832 = vmax.f32 %v1768, 0.0
  %v1833 = vmax.f32 %v1769, 0.0
  %v1834 = vmax.f32 %v1770, 0.0
  %v1835 = vmax.f32 %v1771, 0.0
  %v1836 = vmax.f32 %v1772, 0.0
  %v1837 = vmax.f32 %v1773, 0.0
  %v1838 = vmax.f32 %v1774, 0.0
  %v1839 = vmax.f32 %v1775, 0.0
  %v1840 = vmax.f32 %v1776, 0.0
  %v1841 = vmax.f32 %v1777, 0.0
  %v1842 = vmax.f32 %v1778, 0.0
  %v1843 = vmax.f32 %v1779, 0.0
  %v1844 = vmax.f32 %v1780, 0.0
  %v1845 = vmax.f32 %v1781, 0.0
  %v1846 = vmax.f32 %v1782, 0.0
  %v1847 = vpack.c.bf16 %v1783, %v1783
  %v1848 = vpack.c.bf16 %v1784, %v1784
  %v1849 = vpack.c.bf16 %v1785, %v1785
  %v1850 = vpack.c.bf16 %v1786, %v1786
  %v1851 = vpack.c.bf16 %v1787, %v1787
  %v1852 = vpack.c.bf16 %v1788, %v1788
  %v1853 = vpack.c.bf16 %v1789, %v1789
  %v1854 = vpack.c.bf16 %v1790, %v1790
  %v1855 = vpack.c.bf16 %v1791, %v1791
  %v1856 = vpack.c.bf16 %v1792, %v1792
  %v1857 = vpack.c.bf16 %v1793, %v1793
  %v1858 = vpack.c.bf16 %v1794, %v1794
  %v1859 = vpack.c.bf16 %v1795, %v1795
  %v1860 = vpack.c.bf16 %v1796, %v1796
  %v1861 = vpack.c.bf16 %v1797, %v1797
  %v1862 = vpack.c.bf16 %v1798, %v1798
  %v1863 = vpack.c.bf16 %v1799, %v1799
  %v1864 = vpack.c.bf16 %v1800, %v1800
  %v1865 = vpack.c.bf16 %v1801, %v1801
  %v1866 = vpack.c.bf16 %v1802, %v1802
  %v1867 = vpack.c.bf16 %v1803, %v1803
  %v1868 = vpack.c.bf16 %v1804, %v1804
  %v1869 = vpack.c.bf16 %v1805, %v1805
  %v1870 = vpack.c.bf16 %v1806, %v1806
  %v1871 = vpack.c.bf16 %v1807, %v1807
  %v1872 = vpack.c.bf16 %v1808, %v1808
  %v1873 = vpack.c.bf16 %v1809, %v1809
  %v1874 = vpack.c.bf16 %v1810, %v1810
  %v1875 = vpack.c.bf16 %v1811, %v1811
  %v1876 = vpack.c.bf16 %v1812, %v1812
  %v1877 = vpack.c.bf16 %v1813, %v1813
  %v1878 = vpack.c.bf16 %v1814, %v1814
  %v1879 = vpack.c.bf16 %v1815, %v1815
  %v1880 = vpack.c.bf16 %v1816, %v1816
  %v1881 = vpack.c.bf16 %v1817, %v1817
  %v1882 = vpack.c.bf16 %v1818, %v1818
  %v1883 = vpack.c.bf16 %v1819, %v1819
  %v1884 = vpack.c.bf16 %v1820, %v1820
  %v1885 = vpack.c.bf16 %v1821, %v1821
  %v1886 = vpack.c.bf16 %v1822, %v1822
  %v1887 = vpack.c.bf16 %v1823, %v1823
  %v1888 = vpack.c.bf16 %v1824, %v1824
  %v1889 = vpack.c.bf16 %v1825, %v1825
  %v1890 = vpack.c.bf16 %v1826, %v1826
  %v1891 = vpack.c.bf16 %v1827, %v1827
  %v1892 = vpack.c.bf16 %v1828, %v1828
  %v1893 = vpack.c.bf16 %v1829, %v1829
  %v1894 = vpack.c.bf16 %v1830, %v1830
  %v1895 = vpack.c.bf16 %v1831, %v1831
  %v1896 = vpack.c.bf16 %v1832, %v1832
  %v1897 = vpack.c.bf16 %v1833, %v1833
  %v1898 = vpack.c.bf16 %v1834, %v1834
  %v1899 = vpack.c.bf16 %v1835, %v1835
  %v1900 = vpack.c.bf16 %v1836, %v1836
  %v1901 = vpack.c.bf16 %v1837, %v1837
  %v1902 = vpack.c.bf16 %v1838, %v1838
  %v1903 = vpack.c.bf16 %v1839, %v1839
  %v1904 = vpack.c.bf16 %v1840, %v1840
  %v1905 = vpack.c.bf16 %v1841, %v1841
  %v1906 = vpack.c.bf16 %v1842, %v1842
  %v1907 = vpack.c.bf16 %v1843, %v1843
  %v1908 = vpack.c.bf16 %v1844, %v1844
  %v1909 = vpack.c.bf16 %v1845, %v1845
  %v1910 = vpack.c.bf16 %v1846, %v1846
  %1911 = vst [vmem:[%s4] sm:$0xf] %v1847
  %1912 = vst [vmem:[%s4 + $0x4] sm:$0xf] %v1848
  %1913 = vst [vmem:[%s4 + $0x8] sm:$0xf] %v1849
  %1914 = vst [vmem:[%s4 + $0xc] sm:$0xf] %v1850
  %1915 = vst [vmem:[%s4 + $0x10] sm:$0xf] %v1851
  %1916 = vst [vmem:[%s4 + $0x14] sm:$0xf] %v1852
  %1917 = vst [vmem:[%s4 + $0x18] sm:$0xf] %v1853
  %1918 = vst [vmem:[%s4 + $0x1c] sm:$0xf] %v1854
  %1919 = vst [vmem:[%s4 + $0x20] sm:$0xf] %v1855
  %1920 = vst [vmem:[%s4 + $0x24] sm:$0xf] %v1856
  %1921 = vst [vmem:[%s4 + $0x28] sm:$0xf] %v1857
  %1922 = vst [vmem:[%s4 + $0x2c] sm:$0xf] %v1858
  %1923 = vst [vmem:[%s4 + $0x30] sm:$0xf] %v1859
  %1924 = vst [vmem:[%s4 + $0x34] sm:$0xf] %v1860
  %1925 = vst [vmem:[%s4 + $0x38] sm:$0xf] %v1861
  %1926 = vst [vmem:[%s4 + $0x3c] sm:$0xf] %v1862
  %1927 = vst [vmem:[%s4 + $0x40] sm:$0xf] %v1863
  %1928 = vst [vmem:[%s4 + $0x44] sm:$0xf] %v1864
  %1929 = vst [vmem:[%s4 + $0x48] sm:$0xf] %v1865
  %1930 = vst [vmem:[%s4 + $0x4c] sm:$0xf] %v1866
  %1931 = vst [vmem:[%s4 + $0x50] sm:$0xf] %v1867
  %1932 = vst [vmem:[%s4 + $0x54] sm:$0xf] %v1868
  %1933 = vst [vmem:[%s4 + $0x58] sm:$0xf] %v1869
  %1934 = vst [vmem:[%s4 + $0x5c] sm:$0xf] %v1870
  %1935 = vst [vmem:[%s4 + $0x60] sm:$0xf] %v1871
  %1936 = vst [vmem:[%s4 + $0x64] sm:$0xf] %v1872
  %1937 = vst [vmem:[%s4 + $0x68] sm:$0xf] %v1873
  %1938 = vst [vmem:[%s4 + $0x6c] sm:$0xf] %v1874
  %1939 = vst [vmem:[%s4 + $0x70] sm:$0xf] %v1875
  %1940 = vst [vmem:[%s4 + $0x74] sm:$0xf] %v1876
  %1941 = vst [vmem:[%s4 + $0x78] sm:$0xf] %v1877
  %1942 = vst [vmem:[%s4 + $0x7c] sm:$0xf] %v1878
  %1943 = vst [vmem:[%s4 + $0x80] sm:$0xf] %v1879
  %1944 = vst [vmem:[%s4 + $0x84] sm:$0xf] %v1880
  %1945 = vst [vmem:[%s4 + $0x88] sm:$0xf] %v1881
  %1946 = vst [vmem:[%s4 + $0x8c] sm:$0xf] %v1882
  %1947 = vst [vmem:[%s4 + $0x90] sm:$0xf] %v1883
  %1948 = vst [vmem:[%s4 + $0x94] sm:$0xf] %v1884
  %1949 = vst [vmem:[%s4 + $0x98] sm:$0xf] %v1885
  %1950 = vst [vmem:[%s4 + $0x9c] sm:$0xf] %v1886
  %1951 = vst [vmem:[%s4 + $0xa0] sm:$0xf] %v1887
  %1952 = vst [vmem:[%s4 + $0xa4] sm:$0xf] %v1888
  %1953 = vst [vmem:[%s4 + $0xa8] sm:$0xf] %v1889
  %1954 = vst [vmem:[%s4 + $0xac] sm:$0xf] %v1890
  %1955 = vst [vmem:[%s4 + $0xb0] sm:$0xf] %v1891
  %1956 = vst [vmem:[%s4 + $0xb4] sm:$0xf] %v1892
  %1957 = vst [vmem:[%s4 + $0xb8] sm:$0xf] %v1893
  %1958 = vst [vmem:[%s4 + $0xbc] sm:$0xf] %v1894
  %1959 = vst [vmem:[%s4 + $0xc0] sm:$0xf] %v1895
  %1960 = vst [vmem:[%s4 + $0xc4] sm:$0xf] %v1896
  %1961 = vst [vmem:[%s4 + $0xc8] sm:$0xf] %v1897
  %1962 = vst [vmem:[%s4 + $0xcc] sm:$0xf] %v1898
  %1963 = vst [vmem:[%s4 + $0xd0] sm:$0xf] %v1899
  %1964 = vst [vmem:[%s4 + $0xd4] sm:$0xf] %v1900
  %1965 = vst [vmem:[%s4 + $0xd8] sm:$0xf] %v1901
  %1966 = vst [vmem:[%s4 + $0xdc] sm:$0xf] %v1902
  %1967 = vst [vmem:[%s4 + $0xe0] sm:$0xf] %v1903
  %1968 = vst [vmem:[%s4 + $0xe4] sm:$0xf] %v1904
  %1969 = vst [vmem:[%s4 + $0xe8] sm:$0xf] %v1905
  %1970 = vst [vmem:[%s4 + $0xec] sm:$0xf] %v1906
  %1971 = vst [vmem:[%s4 + $0xf0] sm:$0xf] %v1907
  %1972 = vst [vmem:[%s4 + $0xf4] sm:$0xf] %v1908
  %1973 = vst [vmem:[%s4 + $0xf8] sm:$0xf] %v1909
  %1974 = vst [vmem:[%s4 + $0xfc] sm:$0xf] %v1910
  // Predicated region
  $region18: #{generator_forward.8} parent=0 // pred_check
    _
  $region19: #{generator_forward.8} parent=0 // pred_check_branch
    %1976 = sbr.rel (0) target = $region21
  $region20: #{generator_forward.8} parent=0 // pred_region
    _
  $region21: #{generator_forward.8} parent=0 // pred_fallthru
    _
  // Predicated region
  $region22: #{generator_forward.8} parent=0 // pred_check
    _
  $region23: #{generator_forward.8} parent=0 // pred_check_branch
    %1978 = sbr.rel (0) target = $region25
  $region24: #{generator_forward.8} parent=0 // pred_region
    _
  $region25: #{generator_forward.8} parent=0 // pred_fallthru
    _

// kernel: generator_forward.9
$region0: #{generator_forward.9}
  #allocation0 [shape = 'u32[]', space=smem, size = 0x4, offset = 0x4, fixed_abs, tag = 'smem constant byte address 0x4 - core index']
  #allocation1 [shape = 'u32[72,128]{1,0:T(1,128)}', space=vmem, size = 0x9000, scoped, tag = 'internal scratch']
  %s0 = inlined_call_operand.vmem [shape: bf16[2048,144], index: 0, kind: input, shape index: {}]
  %s1 = inlined_call_operand.vmem [shape: bf16[144,128], index: 1, kind: input, shape index: {}]
  %s2 = inlined_call_operand.vmem [shape: f32[1,128], index: 2, kind: input, shape index: {}]
  %s3 = inlined_call_operand.vmem [shape: f32[2048,128], index: 3, kind: output, shape index: {}]
  %s4 = sld [smem:[#allocation0]]
  $region45: #{generator_forward.9} parent=0
    _
  %s6 = ssub.s32 1, %s4
  %s7 = scalar_select 0, %s6, %s4
  loop: start=0, step=1, limit=6
  $region2: #{generator_forward.9} parent=0 // loop_pre_header
    _
  $region3: #{generator_forward.9} parent=0 // loop_header
    %s9 = sphi 0, %s13
    %p10 = scmp.ge.s32.totalorder %s9, 6
    %s19 = sphi 0, %s21
    %s22 = sphi 0, %s19
    %s23 = sphi 0, %s22
    %s39 = sphi 0, %s23
    %s43 = sphi 0, %s43
    %s45 = sphi 0, %s43
    %s46 = sphi 0, %s45
    %s60 = sphi 0, %s46
    %s64 = sphi 0, %s64
    %s66 = sphi 0, %s64
    %s67 = sphi 0, %s66
    %s81 = sphi 0, %s67
    %s87 = sphi 0, %s89
    %s90 = sphi 0, %s87
    %s91 = sphi 0, %s90
    %s107 = sphi 0, %s91
  $region4: #{generator_forward.9} parent=0 // loop_header_branch
    %12 = sbr.rel (%p10) target = $region8
  $region5: #{generator_forward.9} parent=0 // loop_body
    %s14 = ssub.s32 %s9, 1
    %s15 = ssub.s32 %s9, 2
    %s16 = sadd.s32 %s9, 1
    %s17 = ssub.s32 %s9, %s16
    %p18 = scmp.eq.s32.totalorder %s17, 0
    %s20 = sadd.s32 %s19, 1
    %s21 = scalar_select %p18, %s19, %s20
    %p24 = pneg %p18
    %p25 = scmp.eq.s32.totalorder %s9, 3
    %p26 = por %p24, %p25
    %p27 = scmp.ne.s32.totalorder %s19, %s22
    %p28 = scmp.eq.s32.totalorder %s9, 0
    %p29 = por %p27, %p28
    %p30 = scmp.ne.s32.totalorder %s19, %s22
    %p31 = scmp.eq.s32.totalorder %s14, 3
    %p32 = por %p30, %p31
    %p33 = scmp.ne.s32.totalorder %s22, %s23
    %p34 = scmp.eq.s32.totalorder %s14, 0
    %p35 = por %p33, %p34
    %p36 = scmp.ne.s32.totalorder %s22, %s23
    %p37 = scmp.eq.s32.totalorder %s15, 3
    %p38 = por %p36, %p37
    %p40 = scmp.ne.s32.totalorder %s23, %s39
    %p41 = scmp.eq.s32.totalorder %s15, 0
    %p42 = por %p40, %p41
    %s44 = sadd.s32 %s43, 1
    %p47 = scmp.eq.s32.totalorder %s9, 3
    %p48 = scmp.ne.s32.totalorder %s43, %s45
    %p49 = scmp.eq.s32.totalorder %s9, 0
    %p50 = por %p48, %p49
    %p51 = scmp.ne.s32.totalorder %s43, %s45
    %p52 = scmp.eq.s32.totalorder %s14, 3
    %p53 = por %p51, %p52
    %p54 = scmp.ne.s32.totalorder %s45, %s46
    %p55 = scmp.eq.s32.totalorder %s14, 0
    %p56 = por %p54, %p55
    %p57 = scmp.ne.s32.totalorder %s45, %s46
    %p58 = scmp.eq.s32.totalorder %s15, 3
    %p59 = por %p57, %p58
    %p61 = scmp.ne.s32.totalorder %s46, %s60
    %p62 = scmp.eq.s32.totalorder %s15, 0
    %p63 = por %p61, %p62
    %s65 = sadd.s32 %s64, 1
    %p68 = scmp.eq.s32.totalorder %s9, 3
    %p69 = scmp.ne.s32.totalorder %s64, %s66
    %p70 = scmp.eq.s32.totalorder %s9, 0
    %p71 = por %p69, %p70
    %p72 = scmp.ne.s32.totalorder %s64, %s66
    %p73 = scmp.eq.s32.totalorder %s14, 3
    %p74 = por %p72, %p73
    %p75 = scmp.ne.s32.totalorder %s66, %s67
    %p76 = scmp.eq.s32.totalorder %s14, 0
    %p77 = por %p75, %p76
    %p78 = scmp.ne.s32.totalorder %s66, %s67
    %p79 = scmp.eq.s32.totalorder %s15, 3
    %p80 = por %p78, %p79
    %p82 = scmp.ne.s32.totalorder %s67, %s81
    %p83 = scmp.eq.s32.totalorder %s15, 0
    %p84 = por %p82, %p83
    %s85 = ssub.s32 %s9, %s16
    %p86 = scmp.eq.s32.totalorder %s85, 0
    %s88 = sadd.s32 %s87, 1
    %s89 = scalar_select %p86, %s87, %s88
    %p92 = pneg %p86
    %p93 = scmp.eq.s32.totalorder %s9, 3
    %p94 = por %p92, %p93
    %p95 = scmp.ne.s32.totalorder %s87, %s90
    %p96 = scmp.eq.s32.totalorder %s9, 0
    %p97 = por %p95, %p96
    %p98 = scmp.ne.s32.totalorder %s87, %s90
    %p99 = scmp.eq.s32.totalorder %s14, 3
    %p100 = por %p98, %p99
    %p101 = scmp.ne.s32.totalorder %s90, %s91
    %p102 = scmp.eq.s32.totalorder %s14, 0
    %p103 = por %p101, %p102
    %p104 = scmp.ne.s32.totalorder %s90, %s91
    %p105 = scmp.eq.s32.totalorder %s15, 3
    %p106 = por %p104, %p105
    %p108 = scmp.ne.s32.totalorder %s91, %s107
    %p109 = scmp.eq.s32.totalorder %s15, 0
    %p110 = por %p108, %p109
    %p111 = scmp.le.s32.totalorder 1, %s9
    %p112 = scmp.lt.s32.totalorder %s9, 5
    %p113 = pnand %p111, %p112
    %p114 = pneg %p113
    // Predicated region
    $region9: #{generator_forward.9} parent=5 // pred_check
      _
    $region10: #{generator_forward.9} parent=5 // pred_check_branch
      %116 = sbr.rel (%p113) target = $region12
    $region11: #{generator_forward.9} parent=5 // pred_region
      %s117 = ssub.s32 %s9, 1
      // Predicated region
      $region13: #{generator_forward.9} parent=11 // pred_check
        %p118 = pneg %p56
      $region14: #{generator_forward.9} parent=11 // pred_check_branch
        %120 = sbr.rel (%p118) target = $region16
      $region15: #{generator_forward.9} parent=11 // pred_region
        _
      $region16: #{generator_forward.9} parent=11 // pred_fallthru
        _
      // Predicated region
      $region17: #{generator_forward.9} parent=11 // pred_check
        %p121 = pneg %p77
      $region18: #{generator_forward.9} parent=11 // pred_check_branch
        %123 = sbr.rel (%p121) target = $region20
      $region19: #{generator_forward.9} parent=11 // pred_region
        _
      $region20: #{generator_forward.9} parent=11 // pred_fallthru
        _
    $region12: #{generator_forward.9} parent=5 // pred_fallthru
      _
    %p124 = scmp.lt.s32.totalorder %s9, 4
    // Predicated region
    $region21: #{generator_forward.9} parent=5 // pred_check
      %p125 = pneg %p124
    $region22: #{generator_forward.9} parent=5 // pred_check_branch
      %127 = sbr.rel (%p125) target = $region24
    $region23: #{generator_forward.9} parent=5 // pred_region
      // Predicated region
      $region25: #{generator_forward.9} parent=23 // pred_check
        %p128 = pneg %p29
      $region26: #{generator_forward.9} parent=23 // pred_check_branch
        %130 = sbr.rel (%p128) target = $region28
      $region27: #{generator_forward.9} parent=23 // pred_region
        %s131 = smul.u32 64, %s9
        %p132 = scmp.lt.s32.totalorder %s131, 255
        %s133 = scalar_select %p132, %s131, 255
        %s134 = smul.addr %s133, 2
        %s135 = smul.addr %s134, 4
        %s136 = scalar_lea.vmem %s0, %s135
        %s137 = smul.u32 64, %s9
      $region28: #{generator_forward.9} parent=23 // pred_fallthru
        _
    $region24: #{generator_forward.9} parent=5 // pred_fallthru
      _
    %p138 = scmp.le.s32.totalorder 1, %s9
    %p139 = scmp.lt.s32.totalorder %s9, 5
    %p140 = pnand %p138, %p139
    %p141 = pneg %p140
    // Predicated region
    $region29: #{generator_forward.9} parent=5 // pred_check
      _
    $region30: #{generator_forward.9} parent=5 // pred_check_branch
      %143 = sbr.rel (%p140) target = $region32
    $region31: #{generator_forward.9} parent=5 // pred_region
      %s144 = ssub.s32 %s9, 1
      %s145 = smul.u32 64, %s14
      %p146 = scmp.lt.s32.totalorder %s145, 255
      %s147 = scalar_select %p146, %s145, 255
      %s148 = smul.addr %s147, 2
      %s149 = smul.addr %s148, 4
      %s150 = scalar_lea.vmem %s0, %s149
      %p151 = pneg %p35
      %p152 = pneg %p32
      %p153 = pneg %p56
      %p154 = pneg %p53
      %p155 = pneg %p77
      %p156 = pneg %p74
      %p157 = pneg %p103
      %p158 = pneg %p100
      %s159 = smul.u32 64, %s14
      %p160 = scmp.lt.s32.totalorder %s159, 255
      %s161 = scalar_select %p160, %s159, 255
      %s162 = smul.addr %s161, 8
      %s163 = scalar_lea.vmem %s3, %s162
      %s164 = smul.u32 64, %s14
      %p165 = scmp.lt.s32.totalorder %s164, 255
      %s166 = scalar_select %p165, %s164, 255
      %s167 = smul.addr %s166, 2
      %s168 = smul.addr %s167, 4
      %s169 = scalar_lea.vmem %s0, %s168
      %s170 = smul.u32 64, %s14
      %s171 = smul.u32 64, %s14
      %p172 = scmp.lt.s32.totalorder %s171, 255
      %s173 = scalar_select %p172, %s171, 255
      %s174 = smul.addr %s173, 8
      %s175 = scalar_lea.vmem %s3, %s174
      %s176 = smul.u32 64, %s14
      %v178 = vld [vmem:[%s169] sm:$0xff]
      %v179 = vld [vmem:[%s169 + $0x8] sm:$0xff]
      %v180 = vld [vmem:[%s169 + $0x10] sm:$0xff]
      %v181 = vld [vmem:[%s169 + $0x18] sm:$0xff]
      %v182 = vld [vmem:[%s169 + $0x20] sm:$0xff]
      %v183 = vld [vmem:[%s169 + $0x28] sm:$0xff]
      %v184 = vld [vmem:[%s169 + $0x30] sm:$0xff]
      %v185 = vld [vmem:[%s169 + $0x38] sm:$0xff]
      %v186 = vld [vmem:[%s169 + $0x40] sm:$0xff]
      %v187 = vld [vmem:[%s169 + $0x48] sm:$0xff]
      %v188 = vld [vmem:[%s169 + $0x50] sm:$0xff]
      %v189 = vld [vmem:[%s169 + $0x58] sm:$0xff]
      %v190 = vld [vmem:[%s169 + $0x60] sm:$0xff]
      %v191 = vld [vmem:[%s169 + $0x68] sm:$0xff]
      %v192 = vld [vmem:[%s169 + $0x70] sm:$0xff]
      %v193 = vld [vmem:[%s169 + $0x78] sm:$0xff]
      %v194 = vld [vmem:[%s169 + $0x80] sm:$0xff]
      %v195 = vld [vmem:[%s169 + $0x88] sm:$0xff]
      %v196 = vld [vmem:[%s169 + $0x90] sm:$0xff]
      %v197 = vld [vmem:[%s169 + $0x98] sm:$0xff]
      %v198 = vld [vmem:[%s169 + $0xa0] sm:$0xff]
      %v199 = vld [vmem:[%s169 + $0xa8] sm:$0xff]
      %v200 = vld [vmem:[%s169 + $0xb0] sm:$0xff]
      %v201 = vld [vmem:[%s169 + $0xb8] sm:$0xff]
      %v202 = vld [vmem:[%s169 + $0xc0] sm:$0xff]
      %v203 = vld [vmem:[%s169 + $0xc8] sm:$0xff]
      %v204 = vld [vmem:[%s169 + $0xd0] sm:$0xff]
      %v205 = vld [vmem:[%s169 + $0xd8] sm:$0xff]
      %v206 = vld [vmem:[%s169 + $0xe0] sm:$0xff]
      %v207 = vld [vmem:[%s169 + $0xe8] sm:$0xff]
      %v208 = vld [vmem:[%s169 + $0xf0] sm:$0xff]
      %v209 = vld [vmem:[%s169 + $0xf8] sm:$0xff]
      %v210 = vld [vmem:[%s169 + $0x100] sm:$0xff]
      %v211 = vld [vmem:[%s169 + $0x108] sm:$0xff]
      %v212 = vld [vmem:[%s169 + $0x110] sm:$0xff]
      %v213 = vld [vmem:[%s169 + $0x118] sm:$0xff]
      %v214 = vld [vmem:[%s169 + $0x120] sm:$0xff]
      %v215 = vld [vmem:[%s169 + $0x128] sm:$0xff]
      %v216 = vld [vmem:[%s169 + $0x130] sm:$0xff]
      %v217 = vld [vmem:[%s169 + $0x138] sm:$0xff]
      %v218 = vld [vmem:[%s169 + $0x140] sm:$0xff]
      %v219 = vld [vmem:[%s169 + $0x148] sm:$0xff]
      %v220 = vld [vmem:[%s169 + $0x150] sm:$0xff]
      %v221 = vld [vmem:[%s169 + $0x158] sm:$0xff]
      %v222 = vld [vmem:[%s169 + $0x160] sm:$0xff]
      %v223 = vld [vmem:[%s169 + $0x168] sm:$0xff]
      %v224 = vld [vmem:[%s169 + $0x170] sm:$0xff]
      %v225 = vld [vmem:[%s169 + $0x178] sm:$0xff]
      %v226 = vld [vmem:[%s169 + $0x180] sm:$0xff]
      %v227 = vld [vmem:[%s169 + $0x188] sm:$0xff]
      %v228 = vld [vmem:[%s169 + $0x190] sm:$0xff]
      %v229 = vld [vmem:[%s169 + $0x198] sm:$0xff]
      %v230 = vld [vmem:[%s169 + $0x1a0] sm:$0xff]
      %v231 = vld [vmem:[%s169 + $0x1a8] sm:$0xff]
      %v232 = vld [vmem:[%s169 + $0x1b0] sm:$0xff]
      %v233 = vld [vmem:[%s169 + $0x1b8] sm:$0xff]
      %v234 = vld [vmem:[%s169 + $0x1c0] sm:$0xff]
      %v235 = vld [vmem:[%s169 + $0x1c8] sm:$0xff]
      %v236 = vld [vmem:[%s169 + $0x1d0] sm:$0xff]
      %v237 = vld [vmem:[%s169 + $0x1d8] sm:$0xff]
      %v238 = vld [vmem:[%s169 + $0x1e0] sm:$0xff]
      %v239 = vld [vmem:[%s169 + $0x1e8] sm:$0xff]
      %v240 = vld [vmem:[%s169 + $0x1f0] sm:$0xff]
      %v241 = vld [vmem:[%s169 + $0x1f8] sm:$0xff]
      %v242 = vld [vmem:[%s1] sm:$0xf]
      %v243 = vld [vmem:[%s1 + $0x4] sm:$0xf]
      %v244 = vld [vmem:[%s1 + $0x8] sm:$0xf]
      %v245 = vld [vmem:[%s1 + $0xc] sm:$0xf]
      %v246 = vld [vmem:[%s1 + $0x10] sm:$0xf]
      %v247 = vld [vmem:[%s1 + $0x14] sm:$0xf]
      %v248 = vld [vmem:[%s1 + $0x18] sm:$0xf]
      %v249 = vld [vmem:[%s1 + $0x1c] sm:$0xf]
      %v250 = vld [vmem:[%s1 + $0x20] sm:$0xf]
      %v251 = vld [vmem:[%s1 + $0x24] sm:$0xf]
      %v252 = vld [vmem:[%s1 + $0x28] sm:$0xf]
      %v253 = vld [vmem:[%s1 + $0x2c] sm:$0xf]
      %v254 = vld [vmem:[%s1 + $0x30] sm:$0xf]
      %v255 = vld [vmem:[%s1 + $0x34] sm:$0xf]
      %v256 = vld [vmem:[%s1 + $0x38] sm:$0xf]
      %v257 = vld [vmem:[%s1 + $0x3c] sm:$0xf]
      %v258 = vld [vmem:[%s1 + $0x40] sm:$0xf]
      %v259 = vld [vmem:[%s1 + $0x44] sm:$0xf]
      %v260 = vld [vmem:[%s2] sm:$0x1]
      %v262 = vperm.slane %v260, 0
      %v328 = vunpack.c.l.b16 %v178
      %v329 = vunpack.c.h.b16 %v178
      %v330 = vunpack.c.l.b16 %v179
      %v331 = vunpack.c.h.b16 %v179
      %v332 = vunpack.c.l.b16 %v180
      %v333 = vunpack.c.h.b16 %v180
      %v334 = vunpack.c.l.b16 %v181
      %v335 = vunpack.c.h.b16 %v181
      %v336 = vunpack.c.l.b16 %v182
      %v337 = vunpack.c.h.b16 %v182
      %v338 = vunpack.c.l.b16 %v183
      %v339 = vunpack.c.h.b16 %v183
      %v340 = vunpack.c.l.b16 %v184
      %v341 = vunpack.c.h.b16 %v184
      %v342 = vunpack.c.l.b16 %v185
      %v343 = vunpack.c.h.b16 %v185
      %v344 = vunpack.c.l.b16 %v186
      %v345 = vunpack.c.h.b16 %v186
      %v346 = vunpack.c.l.b16 %v187
      %v347 = vunpack.c.h.b16 %v187
      %v348 = vunpack.c.l.b16 %v188
      %v349 = vunpack.c.h.b16 %v188
      %v350 = vunpack.c.l.b16 %v189
      %v351 = vunpack.c.h.b16 %v189
      %v352 = vunpack.c.l.b16 %v190
      %v353 = vunpack.c.h.b16 %v190
      %v354 = vunpack.c.l.b16 %v191
      %v355 = vunpack.c.h.b16 %v191
      %v356 = vunpack.c.l.b16 %v192
      %v357 = vunpack.c.h.b16 %v192
      %v358 = vunpack.c.l.b16 %v193
      %v359 = vunpack.c.h.b16 %v193
      %v360 = vunpack.c.l.b16 %v194
      %v361 = vunpack.c.h.b16 %v194
      %v362 = vunpack.c.l.b16 %v195
      %v363 = vunpack.c.h.b16 %v195
      %v364 = vunpack.c.l.b16 %v196
      %v365 = vunpack.c.h.b16 %v196
      %v366 = vunpack.c.l.b16 %v197
      %v367 = vunpack.c.h.b16 %v197
      %v368 = vunpack.c.l.b16 %v198
      %v369 = vunpack.c.h.b16 %v198
      %v370 = vunpack.c.l.b16 %v199
      %v371 = vunpack.c.h.b16 %v199
      %v372 = vunpack.c.l.b16 %v200
      %v373 = vunpack.c.h.b16 %v200
      %v374 = vunpack.c.l.b16 %v201
      %v375 = vunpack.c.h.b16 %v201
      %v376 = vunpack.c.l.b16 %v202
      %v377 = vunpack.c.h.b16 %v202
      %v378 = vunpack.c.l.b16 %v203
      %v379 = vunpack.c.h.b16 %v203
      %v380 = vunpack.c.l.b16 %v204
      %v381 = vunpack.c.h.b16 %v204
      %v382 = vunpack.c.l.b16 %v205
      %v383 = vunpack.c.h.b16 %v205
      %v384 = vunpack.c.l.b16 %v206
      %v385 = vunpack.c.h.b16 %v206
      %v386 = vunpack.c.l.b16 %v207
      %v387 = vunpack.c.h.b16 %v207
      %v388 = vunpack.c.l.b16 %v208
      %v389 = vunpack.c.h.b16 %v208
      %v390 = vunpack.c.l.b16 %v209
      %v391 = vunpack.c.h.b16 %v209
      %v392 = vunpack.c.l.b16 %v210
      %v393 = vunpack.c.h.b16 %v210
      %v394 = vunpack.c.l.b16 %v211
      %v395 = vunpack.c.h.b16 %v211
      %v396 = vunpack.c.l.b16 %v212
      %v397 = vunpack.c.h.b16 %v212
      %v398 = vunpack.c.l.b16 %v213
      %v399 = vunpack.c.h.b16 %v213
      %v400 = vunpack.c.l.b16 %v214
      %v401 = vunpack.c.h.b16 %v214
      %v402 = vunpack.c.l.b16 %v215
      %v403 = vunpack.c.h.b16 %v215
      %v404 = vunpack.c.l.b16 %v216
      %v405 = vunpack.c.h.b16 %v216
      %v406 = vunpack.c.l.b16 %v217
      %v407 = vunpack.c.h.b16 %v217
      %v408 = vunpack.c.l.b16 %v218
      %v409 = vunpack.c.h.b16 %v218
      %v410 = vunpack.c.l.b16 %v219
      %v411 = vunpack.c.h.b16 %v219
      %v412 = vunpack.c.l.b16 %v220
      %v413 = vunpack.c.h.b16 %v220
      %v414 = vunpack.c.l.b16 %v221
      %v415 = vunpack.c.h.b16 %v221
      %v416 = vunpack.c.l.b16 %v222
      %v417 = vunpack.c.h.b16 %v222
      %v418 = vunpack.c.l.b16 %v223
      %v419 = vunpack.c.h.b16 %v223
      %v420 = vunpack.c.l.b16 %v224
      %v421 = vunpack.c.h.b16 %v224
      %v422 = vunpack.c.l.b16 %v225
      %v423 = vunpack.c.h.b16 %v225
      %v424 = vunpack.c.l.b16 %v226
      %v425 = vunpack.c.h.b16 %v226
      %v426 = vunpack.c.l.b16 %v227
      %v427 = vunpack.c.h.b16 %v227
      %v428 = vunpack.c.l.b16 %v228
      %v429 = vunpack.c.h.b16 %v228
      %v430 = vunpack.c.l.b16 %v229
      %v431 = vunpack.c.h.b16 %v229
      %v432 = vunpack.c.l.b16 %v230
      %v433 = vunpack.c.h.b16 %v230
      %v434 = vunpack.c.l.b16 %v231
      %v435 = vunpack.c.h.b16 %v231
      %v436 = vunpack.c.l.b16 %v232
      %v437 = vunpack.c.h.b16 %v232
      %v438 = vunpack.c.l.b16 %v233
      %v439 = vunpack.c.h.b16 %v233
      %v440 = vunpack.c.l.b16 %v234
      %v441 = vunpack.c.h.b16 %v234
      %v442 = vunpack.c.l.b16 %v235
      %v443 = vunpack.c.h.b16 %v235
      %v444 = vunpack.c.l.b16 %v236
      %v445 = vunpack.c.h.b16 %v236
      %v446 = vunpack.c.l.b16 %v237
      %v447 = vunpack.c.h.b16 %v237
      %v448 = vunpack.c.l.b16 %v238
      %v449 = vunpack.c.h.b16 %v238
      %v450 = vunpack.c.l.b16 %v239
      %v451 = vunpack.c.h.b16 %v239
      %v452 = vunpack.c.l.b16 %v240
      %v453 = vunpack.c.h.b16 %v240
      %v454 = vunpack.c.l.b16 %v241
      %v455 = vunpack.c.h.b16 %v241
      %v456 = vpack.c.b16 %v330, %v328
      %v457 = vpack.c.b16 %v331, %v329
      %v458 = vpack.c.b16 %v334, %v332
      %v459 = vpack.c.b16 %v335, %v333
      %v460 = vpack.c.b16 %v338, %v336
      %v461 = vpack.c.b16 %v339, %v337
      %v462 = vpack.c.b16 %v342, %v340
      %v463 = vpack.c.b16 %v343, %v341
      %v464 = vpack.c.b16 %v346, %v344
      %v465 = vpack.c.b16 %v347, %v345
      %v466 = vpack.c.b16 %v350, %v348
      %v467 = vpack.c.b16 %v351, %v349
      %v468 = vpack.c.b16 %v354, %v352
      %v469 = vpack.c.b16 %v355, %v353
      %v470 = vpack.c.b16 %v358, %v356
      %v471 = vpack.c.b16 %v359, %v357
      %v472 = vpack.c.b16 %v362, %v360
      %v473 = vpack.c.b16 %v363, %v361
      %v474 = vpack.c.b16 %v366, %v364
      %v475 = vpack.c.b16 %v367, %v365
      %v476 = vpack.c.b16 %v370, %v368
      %v477 = vpack.c.b16 %v371, %v369
      %v478 = vpack.c.b16 %v374, %v372
      %v479 = vpack.c.b16 %v375, %v373
      %v480 = vpack.c.b16 %v378, %v376
      %v481 = vpack.c.b16 %v379, %v377
      %v482 = vpack.c.b16 %v382, %v380
      %v483 = vpack.c.b16 %v383, %v381
      %v484 = vpack.c.b16 %v386, %v384
      %v485 = vpack.c.b16 %v387, %v385
      %v486 = vpack.c.b16 %v390, %v388
      %v487 = vpack.c.b16 %v391, %v389
      %v488 = vpack.c.b16 %v394, %v392
      %v489 = vpack.c.b16 %v395, %v393
      %v490 = vpack.c.b16 %v398, %v396
      %v491 = vpack.c.b16 %v399, %v397
      %v492 = vpack.c.b16 %v402, %v400
      %v493 = vpack.c.b16 %v403, %v401
      %v494 = vpack.c.b16 %v406, %v404
      %v495 = vpack.c.b16 %v407, %v405
      %v496 = vpack.c.b16 %v410, %v408
      %v497 = vpack.c.b16 %v411, %v409
      %v498 = vpack.c.b16 %v414, %v412
      %v499 = vpack.c.b16 %v415, %v413
      %v500 = vpack.c.b16 %v418, %v416
      %v501 = vpack.c.b16 %v419, %v417
      %v502 = vpack.c.b16 %v422, %v420
      %v503 = vpack.c.b16 %v423, %v421
      %v504 = vpack.c.b16 %v426, %v424
      %v505 = vpack.c.b16 %v427, %v425
      %v506 = vpack.c.b16 %v430, %v428
      %v507 = vpack.c.b16 %v431, %v429
      %v508 = vpack.c.b16 %v434, %v432
      %v509 = vpack.c.b16 %v435, %v433
      %v510 = vpack.c.b16 %v438, %v436
      %v511 = vpack.c.b16 %v439, %v437
      %v512 = vpack.c.b16 %v442, %v440
      %v513 = vpack.c.b16 %v443, %v441
      %v514 = vpack.c.b16 %v446, %v444
      %v515 = vpack.c.b16 %v447, %v445
      %v516 = vpack.c.b16 %v450, %v448
      %v517 = vpack.c.b16 %v451, %v449
      %v518 = vpack.c.b16 %v454, %v452
      %v519 = vpack.c.b16 %v455, %v453
      %v570 = vunpack.c.l.b16 %v242
      %v571 = vunpack.c.l.b16 %v243
      %v572 = vunpack.c.l.b16 %v244
      %v573 = vunpack.c.l.b16 %v245
      %v574 = vunpack.c.l.b16 %v246
      %v575 = vunpack.c.l.b16 %v247
      %v576 = vunpack.c.l.b16 %v248
      %v577 = vunpack.c.l.b16 %v249
      %v578 = vunpack.c.l.b16 %v250
      %v579 = vunpack.c.l.b16 %v251
      %v580 = vunpack.c.l.b16 %v252
      %v581 = vunpack.c.l.b16 %v253
      %v582 = vunpack.c.l.b16 %v254
      %v583 = vunpack.c.l.b16 %v255
      %v584 = vunpack.c.l.b16 %v256
      %v585 = vunpack.c.l.b16 %v257
      %v586 = vunpack.c.l.b16 %v258
      %v587 = vunpack.c.l.b16 %v259
      %v588 = vpack.c.b16 %v571, %v570
      %v589 = vpack.c.b16 %v573, %v572
      %v590 = vpack.c.b16 %v575, %v574
      %v591 = vpack.c.b16 %v577, %v576
      %v592 = vpack.c.b16 %v579, %v578
      %v593 = vpack.c.b16 %v581, %v580
      %v594 = vpack.c.b16 %v583, %v582
      %v595 = vpack.c.b16 %v585, %v584
      %v596 = vpack.c.b16 %v587, %v586
      %vm606 = vcmask 130048
      %v608 = vsel %vm606, %v457, 0
      %v611 = vsel %vm606, %v459, 0
      %v614 = vsel %vm606, %v461, 0
      %v617 = vsel %vm606, %v463, 0
      %v620 = vsel %vm606, %v465, 0
      %v623 = vsel %vm606, %v467, 0
      %v626 = vsel %vm606, %v469, 0
      %v629 = vsel %vm606, %v471, 0
      %v632 = vsel %vm606, %v473, 0
      %v635 = vsel %vm606, %v475, 0
      %v638 = vsel %vm606, %v477, 0
      %v641 = vsel %vm606, %v479, 0
      %v644 = vsel %vm606, %v481, 0
      %v647 = vsel %vm606, %v483, 0
      %v650 = vsel %vm606, %v485, 0
      %v653 = vsel %vm606, %v487, 0
      %v656 = vsel %vm606, %v489, 0
      %v659 = vsel %vm606, %v491, 0
      %v662 = vsel %vm606, %v493, 0
      %v665 = vsel %vm606, %v495, 0
      %v668 = vsel %vm606, %v497, 0
      %v671 = vsel %vm606, %v499, 0
      %v674 = vsel %vm606, %v501, 0
      %v677 = vsel %vm606, %v503, 0
      %v680 = vsel %vm606, %v505, 0
      %v683 = vsel %vm606, %v507, 0
      %v686 = vsel %vm606, %v509, 0
      %v689 = vsel %vm606, %v511, 0
      %v692 = vsel %vm606, %v513, 0
      %v695 = vsel %vm606, %v515, 0
      %v698 = vsel %vm606, %v517, 0
      %v701 = vsel %vm606, %v519, 0
      %703 = vmatpush.bf16.msra.mxu0 %v595
      %704 = vmatpush.bf16.msra.mxu0 %v594
      %705 = vmatpush.bf16.msra.mxu0 %v593
      %706 = vmatpush.bf16.msra.mxu0 %v592
      %707 = vmatpush.bf16.msra.mxu0 %v591
      %708 = vmatpush.bf16.msra.mxu0 %v590
      %709 = vmatpush.bf16.msra.mxu0 %v589
      %710 = vmatpush.bf16.msra.mxu0 %v588
      %711 = vmatmul.bf16.gmra.mxu0 %v456
      %v712 = vpop.f32.mrf.mxu0
      %v713 = vadd.f32 %v262, %v712
      %v714 = vpop.f32.mrf.mxu0
      %v715 = vadd.f32 %v262, %v714
      %716 = vmatmul.bf16.gmra.mxu0 %v458
      %v717 = vpop.f32.mrf.mxu0
      %v718 = vadd.f32 %v262, %v717
      %v719 = vpop.f32.mrf.mxu0
      %v720 = vadd.f32 %v262, %v719
      %721 = vmatmul.bf16.gmra.mxu0 %v460
      %v722 = vpop.f32.mrf.mxu0
      %v723 = vadd.f32 %v262, %v722
      %v724 = vpop.f32.mrf.mxu0
      %v725 = vadd.f32 %v262, %v724
      %726 = vmatmul.bf16.gmra.mxu0 %v462
      %v727 = vpop.f32.mrf.mxu0
      %v728 = vadd.f32 %v262, %v727
      %v729 = vpop.f32.mrf.mxu0
      %v730 = vadd.f32 %v262, %v729
      %731 = vmatmul.bf16.gmra.mxu0 %v464
      %v732 = vpop.f32.mrf.mxu0
      %v733 = vadd.f32 %v262, %v732
      %v734 = vpop.f32.mrf.mxu0
      %v735 = vadd.f32 %v262, %v734
      %736 = vmatmul.bf16.gmra.mxu0 %v466
      %v737 = vpop.f32.mrf.mxu0
      %v738 = vadd.f32 %v262, %v737
      %v739 = vpop.f32.mrf.mxu0
      %v740 = vadd.f32 %v262, %v739
      %741 = vmatmul.bf16.gmra.mxu0 %v468
      %v742 = vpop.f32.mrf.mxu0
      %v743 = vadd.f32 %v262, %v742
      %v744 = vpop.f32.mrf.mxu0
      %v745 = vadd.f32 %v262, %v744
      %746 = vmatmul.bf16.gmra.mxu0 %v470
      %v747 = vpop.f32.mrf.mxu0
      %v748 = vadd.f32 %v262, %v747
      %v749 = vpop.f32.mrf.mxu0
      %v750 = vadd.f32 %v262, %v749
      %751 = vmatmul.bf16.gmra.mxu0 %v472
      %v752 = vpop.f32.mrf.mxu0
      %v753 = vadd.f32 %v262, %v752
      %v754 = vpop.f32.mrf.mxu0
      %v755 = vadd.f32 %v262, %v754
      %756 = vmatmul.bf16.gmra.mxu0 %v474
      %v757 = vpop.f32.mrf.mxu0
      %v758 = vadd.f32 %v262, %v757
      %v759 = vpop.f32.mrf.mxu0
      %v760 = vadd.f32 %v262, %v759
      %761 = vmatmul.bf16.gmra.mxu0 %v476
      %v762 = vpop.f32.mrf.mxu0
      %v763 = vadd.f32 %v262, %v762
      %v764 = vpop.f32.mrf.mxu0
      %v765 = vadd.f32 %v262, %v764
      %766 = vmatmul.bf16.gmra.mxu0 %v478
      %v767 = vpop.f32.mrf.mxu0
      %v768 = vadd.f32 %v262, %v767
      %v769 = vpop.f32.mrf.mxu0
      %v770 = vadd.f32 %v262, %v769
      %771 = vmatmul.bf16.gmra.mxu0 %v480
      %v772 = vpop.f32.mrf.mxu0
      %v773 = vadd.f32 %v262, %v772
      %v774 = vpop.f32.mrf.mxu0
      %v775 = vadd.f32 %v262, %v774
      %776 = vmatmul.bf16.gmra.mxu0 %v482
      %v777 = vpop.f32.mrf.mxu0
      %v778 = vadd.f32 %v262, %v777
      %v779 = vpop.f32.mrf.mxu0
      %v780 = vadd.f32 %v262, %v779
      %781 = vmatmul.bf16.gmra.mxu0 %v484
      %v782 = vpop.f32.mrf.mxu0
      %v783 = vadd.f32 %v262, %v782
      %v784 = vpop.f32.mrf.mxu0
      %v785 = vadd.f32 %v262, %v784
      %786 = vmatmul.bf16.gmra.mxu0 %v486
      %v787 = vpop.f32.mrf.mxu0
      %v788 = vadd.f32 %v262, %v787
      %v789 = vpop.f32.mrf.mxu0
      %v790 = vadd.f32 %v262, %v789
      %791 = vmatmul.bf16.gmra.mxu0 %v488
      %v792 = vpop.f32.mrf.mxu0
      %v793 = vadd.f32 %v262, %v792
      %v794 = vpop.f32.mrf.mxu0
      %v795 = vadd.f32 %v262, %v794
      %796 = vmatmul.bf16.gmra.mxu0 %v490
      %v797 = vpop.f32.mrf.mxu0
      %v798 = vadd.f32 %v262, %v797
      %v799 = vpop.f32.mrf.mxu0
      %v800 = vadd.f32 %v262, %v799
      %801 = vmatmul.bf16.gmra.mxu0 %v492
      %v802 = vpop.f32.mrf.mxu0
      %v803 = vadd.f32 %v262, %v802
      %v804 = vpop.f32.mrf.mxu0
      %v805 = vadd.f32 %v262, %v804
      %806 = vmatmul.bf16.gmra.mxu0 %v494
      %v807 = vpop.f32.mrf.mxu0
      %v808 = vadd.f32 %v262, %v807
      %v809 = vpop.f32.mrf.mxu0
      %v810 = vadd.f32 %v262, %v809
      %811 = vmatmul.bf16.gmra.mxu0 %v496
      %v812 = vpop.f32.mrf.mxu0
      %v813 = vadd.f32 %v262, %v812
      %v814 = vpop.f32.mrf.mxu0
      %v815 = vadd.f32 %v262, %v814
      %816 = vmatmul.bf16.gmra.mxu0 %v498
      %v817 = vpop.f32.mrf.mxu0
      %v818 = vadd.f32 %v262, %v817
      %v819 = vpop.f32.mrf.mxu0
      %v820 = vadd.f32 %v262, %v819
      %821 = vmatmul.bf16.gmra.mxu0 %v500
      %v822 = vpop.f32.mrf.mxu0
      %v823 = vadd.f32 %v262, %v822
      %v824 = vpop.f32.mrf.mxu0
      %v825 = vadd.f32 %v262, %v824
      %826 = vmatmul.bf16.gmra.mxu0 %v502
      %v827 = vpop.f32.mrf.mxu0
      %v828 = vadd.f32 %v262, %v827
      %v829 = vpop.f32.mrf.mxu0
      %v830 = vadd.f32 %v262, %v829
      %831 = vmatmul.bf16.gmra.mxu0 %v504
      %v832 = vpop.f32.mrf.mxu0
      %v833 = vadd.f32 %v262, %v832
      %v834 = vpop.f32.mrf.mxu0
      %v835 = vadd.f32 %v262, %v834
      %836 = vmatmul.bf16.gmra.mxu0 %v506
      %v837 = vpop.f32.mrf.mxu0
      %v838 = vadd.f32 %v262, %v837
      %v839 = vpop.f32.mrf.mxu0
      %v840 = vadd.f32 %v262, %v839
      %841 = vmatmul.bf16.gmra.mxu0 %v508
      %v842 = vpop.f32.mrf.mxu0
      %v843 = vadd.f32 %v262, %v842
      %v844 = vpop.f32.mrf.mxu0
      %v845 = vadd.f32 %v262, %v844
      %846 = vmatmul.bf16.gmra.mxu0 %v510
      %v847 = vpop.f32.mrf.mxu0
      %v848 = vadd.f32 %v262, %v847
      %v849 = vpop.f32.mrf.mxu0
      %v850 = vadd.f32 %v262, %v849
      %851 = vmatmul.bf16.gmra.mxu0 %v512
      %v852 = vpop.f32.mrf.mxu0
      %v853 = vadd.f32 %v262, %v852
      %v854 = vpop.f32.mrf.mxu0
      %v855 = vadd.f32 %v262, %v854
      %856 = vmatmul.bf16.gmra.mxu0 %v514
      %v857 = vpop.f32.mrf.mxu0
      %v858 = vadd.f32 %v262, %v857
      %v859 = vpop.f32.mrf.mxu0
      %v860 = vadd.f32 %v262, %v859
      %861 = vmatmul.bf16.gmra.mxu0 %v516
      %v862 = vpop.f32.mrf.mxu0
      %v863 = vadd.f32 %v262, %v862
      %v864 = vpop.f32.mrf.mxu0
      %v865 = vadd.f32 %v262, %v864
      %866 = vmatmul.bf16.gmra.mxu0 %v518
      %v867 = vpop.f32.mrf.mxu0
      %v868 = vadd.f32 %v262, %v867
      %v869 = vpop.f32.mrf.mxu0
      %v870 = vadd.f32 %v262, %v869
      %871 = vdwg.mxu0
      %872 = vmatpush.bf16.msra.mxu0 0
      %873 = vmatpush.bf16.msra.mxu0 0
      %874 = vmatpush.bf16.msra.mxu0 0
      %875 = vmatpush.bf16.msra.mxu0 0
      %876 = vmatpush.bf16.msra.mxu0 0
      %877 = vmatpush.bf16.msra.mxu0 0
      %878 = vmatpush.bf16.msra.mxu0 0
      %879 = vmatpush.bf16.msra.mxu0 %v596
      %880 = vmatmul.bf16.gmra.mxu0 %v608
      %v881 = vpop.f32.mrf.mxu0
      %v882 = vadd.f32 %v713, %v881
      %v883 = vpop.f32.mrf.mxu0
      %v884 = vadd.f32 %v715, %v883
      %885 = vmatmul.bf16.gmra.mxu0 %v611
      %v886 = vpop.f32.mrf.mxu0
      %v887 = vadd.f32 %v718, %v886
      %v888 = vpop.f32.mrf.mxu0
      %v889 = vadd.f32 %v720, %v888
      %890 = vmatmul.bf16.gmra.mxu0 %v614
      %v891 = vpop.f32.mrf.mxu0
      %v892 = vadd.f32 %v723, %v891
      %v893 = vpop.f32.mrf.mxu0
      %v894 = vadd.f32 %v725, %v893
      %895 = vmatmul.bf16.gmra.mxu0 %v617
      %v896 = vpop.f32.mrf.mxu0
      %v897 = vadd.f32 %v728, %v896
      %v898 = vpop.f32.mrf.mxu0
      %v899 = vadd.f32 %v730, %v898
      %900 = vmatmul.bf16.gmra.mxu0 %v620
      %v901 = vpop.f32.mrf.mxu0
      %v902 = vadd.f32 %v733, %v901
      %v903 = vpop.f32.mrf.mxu0
      %v904 = vadd.f32 %v735, %v903
      %905 = vmatmul.bf16.gmra.mxu0 %v623
      %v906 = vpop.f32.mrf.mxu0
      %v907 = vadd.f32 %v738, %v906
      %v908 = vpop.f32.mrf.mxu0
      %v909 = vadd.f32 %v740, %v908
      %910 = vmatmul.bf16.gmra.mxu0 %v626
      %v911 = vpop.f32.mrf.mxu0
      %v912 = vadd.f32 %v743, %v911
      %v913 = vpop.f32.mrf.mxu0
      %v914 = vadd.f32 %v745, %v913
      %915 = vmatmul.bf16.gmra.mxu0 %v629
      %v916 = vpop.f32.mrf.mxu0
      %v917 = vadd.f32 %v748, %v916
      %v918 = vpop.f32.mrf.mxu0
      %v919 = vadd.f32 %v750, %v918
      %920 = vmatmul.bf16.gmra.mxu0 %v632
      %v921 = vpop.f32.mrf.mxu0
      %v922 = vadd.f32 %v753, %v921
      %v923 = vpop.f32.mrf.mxu0
      %v924 = vadd.f32 %v755, %v923
      %925 = vmatmul.bf16.gmra.mxu0 %v635
      %v926 = vpop.f32.mrf.mxu0
      %v927 = vadd.f32 %v758, %v926
      %v928 = vpop.f32.mrf.mxu0
      %v929 = vadd.f32 %v760, %v928
      %930 = vmatmul.bf16.gmra.mxu0 %v638
      %v931 = vpop.f32.mrf.mxu0
      %v932 = vadd.f32 %v763, %v931
      %v933 = vpop.f32.mrf.mxu0
      %v934 = vadd.f32 %v765, %v933
      %935 = vmatmul.bf16.gmra.mxu0 %v641
      %v936 = vpop.f32.mrf.mxu0
      %v937 = vadd.f32 %v768, %v936
      %v938 = vpop.f32.mrf.mxu0
      %v939 = vadd.f32 %v770, %v938
      %940 = vmatmul.bf16.gmra.mxu0 %v644
      %v941 = vpop.f32.mrf.mxu0
      %v942 = vadd.f32 %v773, %v941
      %v943 = vpop.f32.mrf.mxu0
      %v944 = vadd.f32 %v775, %v943
      %945 = vmatmul.bf16.gmra.mxu0 %v647
      %v946 = vpop.f32.mrf.mxu0
      %v947 = vadd.f32 %v778, %v946
      %v948 = vpop.f32.mrf.mxu0
      %v949 = vadd.f32 %v780, %v948
      %950 = vmatmul.bf16.gmra.mxu0 %v650
      %v951 = vpop.f32.mrf.mxu0
      %v952 = vadd.f32 %v783, %v951
      %v953 = vpop.f32.mrf.mxu0
      %v954 = vadd.f32 %v785, %v953
      %955 = vmatmul.bf16.gmra.mxu0 %v653
      %v956 = vpop.f32.mrf.mxu0
      %v957 = vadd.f32 %v788, %v956
      %v958 = vpop.f32.mrf.mxu0
      %v959 = vadd.f32 %v790, %v958
      %960 = vmatmul.bf16.gmra.mxu0 %v656
      %v961 = vpop.f32.mrf.mxu0
      %v962 = vadd.f32 %v793, %v961
      %v963 = vpop.f32.mrf.mxu0
      %v964 = vadd.f32 %v795, %v963
      %965 = vmatmul.bf16.gmra.mxu0 %v659
      %v966 = vpop.f32.mrf.mxu0
      %v967 = vadd.f32 %v798, %v966
      %v968 = vpop.f32.mrf.mxu0
      %v969 = vadd.f32 %v800, %v968
      %970 = vmatmul.bf16.gmra.mxu0 %v662
      %v971 = vpop.f32.mrf.mxu0
      %v972 = vadd.f32 %v803, %v971
      %v973 = vpop.f32.mrf.mxu0
      %v974 = vadd.f32 %v805, %v973
      %975 = vmatmul.bf16.gmra.mxu0 %v665
      %v976 = vpop.f32.mrf.mxu0
      %v977 = vadd.f32 %v808, %v976
      %v978 = vpop.f32.mrf.mxu0
      %v979 = vadd.f32 %v810, %v978
      %980 = vmatmul.bf16.gmra.mxu0 %v668
      %v981 = vpop.f32.mrf.mxu0
      %v982 = vadd.f32 %v813, %v981
      %v983 = vpop.f32.mrf.mxu0
      %v984 = vadd.f32 %v815, %v983
      %985 = vmatmul.bf16.gmra.mxu0 %v671
      %v986 = vpop.f32.mrf.mxu0
      %v987 = vadd.f32 %v818, %v986
      %v988 = vpop.f32.mrf.mxu0
      %v989 = vadd.f32 %v820, %v988
      %990 = vmatmul.bf16.gmra.mxu0 %v674
      %v991 = vpop.f32.mrf.mxu0
      %v992 = vadd.f32 %v823, %v991
      %v993 = vpop.f32.mrf.mxu0
      %v994 = vadd.f32 %v825, %v993
      %995 = vmatmul.bf16.gmra.mxu0 %v677
      %v996 = vpop.f32.mrf.mxu0
      %v997 = vadd.f32 %v828, %v996
      %v998 = vpop.f32.mrf.mxu0
      %v999 = vadd.f32 %v830, %v998
      %1000 = vmatmul.bf16.gmra.mxu0 %v680
      %v1001 = vpop.f32.mrf.mxu0
      %v1002 = vadd.f32 %v833, %v1001
      %v1003 = vpop.f32.mrf.mxu0
      %v1004 = vadd.f32 %v835, %v1003
      %1005 = vmatmul.bf16.gmra.mxu0 %v683
      %v1006 = vpop.f32.mrf.mxu0
      %v1007 = vadd.f32 %v838, %v1006
      %v1008 = vpop.f32.mrf.mxu0
      %v1009 = vadd.f32 %v840, %v1008
      %1010 = vmatmul.bf16.gmra.mxu0 %v686
      %v1011 = vpop.f32.mrf.mxu0
      %v1012 = vadd.f32 %v843, %v1011
      %v1013 = vpop.f32.mrf.mxu0
      %v1014 = vadd.f32 %v845, %v1013
      %1015 = vmatmul.bf16.gmra.mxu0 %v689
      %v1016 = vpop.f32.mrf.mxu0
      %v1017 = vadd.f32 %v848, %v1016
      %v1018 = vpop.f32.mrf.mxu0
      %v1019 = vadd.f32 %v850, %v1018
      %1020 = vmatmul.bf16.gmra.mxu0 %v692
      %v1021 = vpop.f32.mrf.mxu0
      %v1022 = vadd.f32 %v853, %v1021
      %v1023 = vpop.f32.mrf.mxu0
      %v1024 = vadd.f32 %v855, %v1023
      %1025 = vmatmul.bf16.gmra.mxu0 %v695
      %v1026 = vpop.f32.mrf.mxu0
      %v1027 = vadd.f32 %v858, %v1026
      %v1028 = vpop.f32.mrf.mxu0
      %v1029 = vadd.f32 %v860, %v1028
      %1030 = vmatmul.bf16.gmra.mxu0 %v698
      %v1031 = vpop.f32.mrf.mxu0
      %v1032 = vadd.f32 %v863, %v1031
      %v1033 = vpop.f32.mrf.mxu0
      %v1034 = vadd.f32 %v865, %v1033
      %1035 = vmatmul.bf16.gmra.mxu0 %v701
      %v1036 = vpop.f32.mrf.mxu0
      %v1037 = vadd.f32 %v868, %v1036
      %v1038 = vpop.f32.mrf.mxu0
      %v1039 = vadd.f32 %v870, %v1038
      %1040 = vdwg.mxu0
      %v1041 = vtanh.pop %v882
      %v1042 = vtanh.pop %v884
      %v1043 = vtanh.pop %v887
      %v1044 = vtanh.pop %v889
      %v1045 = vtanh.pop %v892
      %v1046 = vtanh.pop %v894
      %v1047 = vtanh.pop %v897
      %v1048 = vtanh.pop %v899
      %v1049 = vtanh.pop %v902
      %v1050 = vtanh.pop %v904
      %v1051 = vtanh.pop %v907
      %v1052 = vtanh.pop %v909
      %v1053 = vtanh.pop %v912
      %v1054 = vtanh.pop %v914
      %v1055 = vtanh.pop %v917
      %v1056 = vtanh.pop %v919
      %v1057 = vtanh.pop %v922
      %v1058 = vtanh.pop %v924
      %v1059 = vtanh.pop %v927
      %v1060 = vtanh.pop %v929
      %v1061 = vtanh.pop %v932
      %v1062 = vtanh.pop %v934
      %v1063 = vtanh.pop %v937
      %v1064 = vtanh.pop %v939
      %v1065 = vtanh.pop %v942
      %v1066 = vtanh.pop %v944
      %v1067 = vtanh.pop %v947
      %v1068 = vtanh.pop %v949
      %v1069 = vtanh.pop %v952
      %v1070 = vtanh.pop %v954
      %v1071 = vtanh.pop %v957
      %v1072 = vtanh.pop %v959
      %v1073 = vtanh.pop %v962
      %v1074 = vtanh.pop %v964
      %v1075 = vtanh.pop %v967
      %v1076 = vtanh.pop %v969
      %v1077 = vtanh.pop %v972
      %v1078 = vtanh.pop %v974
      %v1079 = vtanh.pop %v977
      %v1080 = vtanh.pop %v979
      %v1081 = vtanh.pop %v982
      %v1082 = vtanh.pop %v984
      %v1083 = vtanh.pop %v987
      %v1084 = vtanh.pop %v989
      %v1085 = vtanh.pop %v992
      %v1086 = vtanh.pop %v994
      %v1087 = vtanh.pop %v997
      %v1088 = vtanh.pop %v999
      %v1089 = vtanh.pop %v1002
      %v1090 = vtanh.pop %v1004
      %v1091 = vtanh.pop %v1007
      %v1092 = vtanh.pop %v1009
      %v1093 = vtanh.pop %v1012
      %v1094 = vtanh.pop %v1014
      %v1095 = vtanh.pop %v1017
      %v1096 = vtanh.pop %v1019
      %v1097 = vtanh.pop %v1022
      %v1098 = vtanh.pop %v1024
      %v1099 = vtanh.pop %v1027
      %v1100 = vtanh.pop %v1029
      %v1101 = vtanh.pop %v1032
      %v1102 = vtanh.pop %v1034
      %v1103 = vtanh.pop %v1037
      %v1104 = vtanh.pop %v1039
      %1105 = vst [vmem:[%s175] sm:$0xff] %v1041
      %1106 = vst [vmem:[%s175 + $0x8] sm:$0xff] %v1042
      %1107 = vst [vmem:[%s175 + $0x10] sm:$0xff] %v1043
      %1108 = vst [vmem:[%s175 + $0x18] sm:$0xff] %v1044
      %1109 = vst [vmem:[%s175 + $0x20] sm:$0xff] %v1045
      %1110 = vst [vmem:[%s175 + $0x28] sm:$0xff] %v1046
      %1111 = vst [vmem:[%s175 + $0x30] sm:$0xff] %v1047
      %1112 = vst [vmem:[%s175 + $0x38] sm:$0xff] %v1048
      %1113 = vst [vmem:[%s175 + $0x40] sm:$0xff] %v1049
      %1114 = vst [vmem:[%s175 + $0x48] sm:$0xff] %v1050
      %1115 = vst [vmem:[%s175 + $0x50] sm:$0xff] %v1051
      %1116 = vst [vmem:[%s175 + $0x58] sm:$0xff] %v1052
      %1117 = vst [vmem:[%s175 + $0x60] sm:$0xff] %v1053
      %1118 = vst [vmem:[%s175 + $0x68] sm:$0xff] %v1054
      %1119 = vst [vmem:[%s175 + $0x70] sm:$0xff] %v1055
      %1120 = vst [vmem:[%s175 + $0x78] sm:$0xff] %v1056
      %1121 = vst [vmem:[%s175 + $0x80] sm:$0xff] %v1057
      %1122 = vst [vmem:[%s175 + $0x88] sm:$0xff] %v1058
      %1123 = vst [vmem:[%s175 + $0x90] sm:$0xff] %v1059
      %1124 = vst [vmem:[%s175 + $0x98] sm:$0xff] %v1060
      %1125 = vst [vmem:[%s175 + $0xa0] sm:$0xff] %v1061
      %1126 = vst [vmem:[%s175 + $0xa8] sm:$0xff] %v1062
      %1127 = vst [vmem:[%s175 + $0xb0] sm:$0xff] %v1063
      %1128 = vst [vmem:[%s175 + $0xb8] sm:$0xff] %v1064
      %1129 = vst [vmem:[%s175 + $0xc0] sm:$0xff] %v1065
      %1130 = vst [vmem:[%s175 + $0xc8] sm:$0xff] %v1066
      %1131 = vst [vmem:[%s175 + $0xd0] sm:$0xff] %v1067
      %1132 = vst [vmem:[%s175 + $0xd8] sm:$0xff] %v1068
      %1133 = vst [vmem:[%s175 + $0xe0] sm:$0xff] %v1069
      %1134 = vst [vmem:[%s175 + $0xe8] sm:$0xff] %v1070
      %1135 = vst [vmem:[%s175 + $0xf0] sm:$0xff] %v1071
      %1136 = vst [vmem:[%s175 + $0xf8] sm:$0xff] %v1072
      %1137 = vst [vmem:[%s175 + $0x100] sm:$0xff] %v1073
      %1138 = vst [vmem:[%s175 + $0x108] sm:$0xff] %v1074
      %1139 = vst [vmem:[%s175 + $0x110] sm:$0xff] %v1075
      %1140 = vst [vmem:[%s175 + $0x118] sm:$0xff] %v1076
      %1141 = vst [vmem:[%s175 + $0x120] sm:$0xff] %v1077
      %1142 = vst [vmem:[%s175 + $0x128] sm:$0xff] %v1078
      %1143 = vst [vmem:[%s175 + $0x130] sm:$0xff] %v1079
      %1144 = vst [vmem:[%s175 + $0x138] sm:$0xff] %v1080
      %1145 = vst [vmem:[%s175 + $0x140] sm:$0xff] %v1081
      %1146 = vst [vmem:[%s175 + $0x148] sm:$0xff] %v1082
      %1147 = vst [vmem:[%s175 + $0x150] sm:$0xff] %v1083
      %1148 = vst [vmem:[%s175 + $0x158] sm:$0xff] %v1084
      %1149 = vst [vmem:[%s175 + $0x160] sm:$0xff] %v1085
      %1150 = vst [vmem:[%s175 + $0x168] sm:$0xff] %v1086
      %1151 = vst [vmem:[%s175 + $0x170] sm:$0xff] %v1087
      %1152 = vst [vmem:[%s175 + $0x178] sm:$0xff] %v1088
      %1153 = vst [vmem:[%s175 + $0x180] sm:$0xff] %v1089
      %1154 = vst [vmem:[%s175 + $0x188] sm:$0xff] %v1090
      %1155 = vst [vmem:[%s175 + $0x190] sm:$0xff] %v1091
      %1156 = vst [vmem:[%s175 + $0x198] sm:$0xff] %v1092
      %1157 = vst [vmem:[%s175 + $0x1a0] sm:$0xff] %v1093
      %1158 = vst [vmem:[%s175 + $0x1a8] sm:$0xff] %v1094
      %1159 = vst [vmem:[%s175 + $0x1b0] sm:$0xff] %v1095
      %1160 = vst [vmem:[%s175 + $0x1b8] sm:$0xff] %v1096
      %1161 = vst [vmem:[%s175 + $0x1c0] sm:$0xff] %v1097
      %1162 = vst [vmem:[%s175 + $0x1c8] sm:$0xff] %v1098
      %1163 = vst [vmem:[%s175 + $0x1d0] sm:$0xff] %v1099
      %1164 = vst [vmem:[%s175 + $0x1d8] sm:$0xff] %v1100
      %1165 = vst [vmem:[%s175 + $0x1e0] sm:$0xff] %v1101
      %1166 = vst [vmem:[%s175 + $0x1e8] sm:$0xff] %v1102
      %1167 = vst [vmem:[%s175 + $0x1f0] sm:$0xff] %v1103
      %1168 = vst [vmem:[%s175 + $0x1f8] sm:$0xff] %v1104
      %s1169 = smul.u32 64, %s14
      %p1170 = scmp.lt.s32.totalorder %s1169, 255
      %s1171 = scalar_select %p1170, %s1169, 255
      %s1172 = smul.addr %s1171, 8
      %s1173 = scalar_lea.vmem %s3, %s1172
      // Predicated region
      $region33: #{generator_forward.9} parent=31 // pred_check
        %p1174 = pneg %p100
      $region34: #{generator_forward.9} parent=31 // pred_check_branch
        %1176 = sbr.rel (%p1174) target = $region36
      $region35: #{generator_forward.9} parent=31 // pred_region
        %s1177 = smul.u32 64, %s14
      $region36: #{generator_forward.9} parent=31 // pred_fallthru
        _
    $region32: #{generator_forward.9} parent=5 // pred_fallthru
      _
    %p1178 = scmp.le.s32.totalorder 2, %s9
    // Predicated region
    $region37: #{generator_forward.9} parent=5 // pred_check
      %p1179 = pneg %p1178
    $region38: #{generator_forward.9} parent=5 // pred_check_branch
      %1181 = sbr.rel (%p1179) target = $region40
    $region39: #{generator_forward.9} parent=5 // pred_region
      %s1182 = ssub.s32 %s9, 2
      // Predicated region
      $region41: #{generator_forward.9} parent=39 // pred_check
        %p1183 = pneg %p106
      $region42: #{generator_forward.9} parent=39 // pred_check_branch
        %1185 = sbr.rel (%p1183) target = $region44
      $region43: #{generator_forward.9} parent=39 // pred_region
        %s1186 = smul.u32 64, %s15
        %p1187 = scmp.lt.s32.totalorder %s1186, 255
        %s1188 = scalar_select %p1187, %s1186, 255
        %s1189 = smul.addr %s1188, 8
        %s1190 = scalar_lea.vmem %s3, %s1189
      $region44: #{generator_forward.9} parent=39 // pred_fallthru
        _
    $region40: #{generator_forward.9} parent=5 // pred_fallthru
      _
  $region6: #{generator_forward.9} parent=0 // loop_footer
    %s13 = sadd.s32 1, %s9
  $region7: #{generator_forward.9} parent=0 // loop_footer_branch
    %8 = sbr.rel target = $region3
  $region8: #{generator_forward.9} parent=0 // loop_exit
    _

</llo_original>
